<compile_context>
chip_gen: v7x
topology: tpu7x:2x2x1
jax: 0.10.0
libtpu: 0.0.40
codegen_flags: <defaults>
</compile_context>

<pallas_src>
import functools
import math

import jax
import jax.numpy as jnp
from jax.experimental import pallas as pl
from jax.experimental.pallas import tpu as pltpu

# ----------------------- small synthetic config -----------------------
B, S, D = 2, 8, 128                 # batch, seq, hidden_size
NUM_HEADS = 4
HEAD_DIM = D // NUM_HEADS           # 32
INTERMEDIATE = 256                  # LlamaMLP intermediate_size
M_IMG, DV = 16, 32                  # image feature tokens, dim_visual
X_HEADS, X_HEAD_DIM = 4, 32         # xattn heads / head dim
X_INNER = X_HEADS * X_HEAD_DIM      # 128
FF_MULT = 4
RMS_EPS = 1e-6
LN_EPS = 1e-5
ROPE_THETA = 10000.0
LAYER_IDX = 0                       # % 4 == 0 -> xattn branch is active
NEG_INF = -1e30


# ====================== in-kernel helper functions ======================

def _layernorm(x, g, b, eps=LN_EPS):
    mu = jnp.mean(x, axis=-1, keepdims=True)
    xc = x - mu
    var = jnp.mean(xc * xc, axis=-1, keepdims=True)
    return xc * jax.lax.rsqrt(var + eps) * g + b


def _rmsnorm(x, w, eps=RMS_EPS):
    var = jnp.mean(x * x, axis=-1, keepdims=True)
    return x * jax.lax.rsqrt(var + eps) * w


def _softmax(s):
    s = s - jnp.max(s, axis=-1, keepdims=True)
    p = jnp.exp(s)
    return p * pl.reciprocal(jnp.sum(p, axis=-1, keepdims=True), approx=True)


def _mha(q, k, v, n_heads, head_dim, bias):
    """All heads in ONE batched matmul pair.

    q: (Nq, H*Dh) bf16, k/v: (Nk, H*Dh) bf16, bias: (Nq, Nk) f32 additive mask.
    Returns (Nq, H*Dh) bf16.
    """
    nq, nk = q.shape[0], k.shape[0]
    qh = q.reshape(nq, n_heads, head_dim).swapaxes(0, 1)      # (H, Nq, Dh)
    kh = k.reshape(nk, n_heads, head_dim).swapaxes(0, 1)      # (H, Nk, Dh)
    vh = v.reshape(nk, n_heads, head_dim).swapaxes(0, 1)      # (H, Nk, Dh)
    s = jnp.einsum('hqd,hkd->hqk', qh, kh,
                   preferred_element_type=jnp.float32)        # (H, Nq, Nk)
    p = _softmax(s * (1.0 / math.sqrt(head_dim)) + bias[None])
    o = jnp.einsum('hqk,hkd->hqd', p.astype(jnp.bfloat16), vh,
                   preferred_element_type=jnp.float32)        # (H, Nq, Dh)
    return (o.swapaxes(0, 1)
             .reshape(nq, n_heads * head_dim)
             .astype(jnp.bfloat16))


def _bdot(a_bf16, w_ref):
    """bf16 MXU matmul with f32 accumulation against a resident weight ref."""
    return jnp.dot(a_bf16, w_ref[...], preferred_element_type=jnp.float32)


# ========================= fused layer kernel =========================

def _decoder_layer_kernel(*refs, use_xattn):
    o_ref = refs[-1]
    it = iter(refs[:-1])
    x_ref, cos_ref, sin_ref, smask_ref = next(it), next(it), next(it), next(it)
    if use_xattn:
        (img_ref, xmask_ref,
         xa_ln_g_ref, xa_ln_b_ref, xa_wq_ref, xa_wkv_ref, xa_wo_ref,
         xa_gate_ref, xa_ff_ln_g_ref, xa_ff_ln_b_ref, xa_ff_w1_ref,
         xa_ff_w2_ref, xa_ff_gate_ref) = [next(it) for _ in range(13)]
    (in_ln_w_ref, wqkv_ref, wo_ref,
     post_ln_w_ref, w_gateup_ref, w_down_ref) = [next(it) for _ in range(6)]

    x = x_ref[...].astype(jnp.float32)                        # (BS, D) f32 stream

    # ------------- GatedCrossAttentionBlock (Flamingo-style) -------------
    if use_xattn:
        xn = _layernorm(x, xa_ln_g_ref[...], xa_ln_b_ref[...]).astype(jnp.bfloat16)
        q = _bdot(xn, xa_wq_ref)                              # (BS, X_INNER)
        kv = _bdot(img_ref[...], xa_wkv_ref)                  # (BM, 2*X_INNER)
        attn = _mha(q.astype(jnp.bfloat16),
                    kv[:, :X_INNER].astype(jnp.bfloat16),
                    kv[:, X_INNER:].astype(jnp.bfloat16),
                    X_HEADS, X_HEAD_DIM, xmask_ref[...])
        x = x + jnp.tanh(xa_gate_ref[...]) * _bdot(attn, xa_wo_ref)

        xn = _layernorm(x, xa_ff_ln_g_ref[...], xa_ff_ln_b_ref[...]).astype(jnp.bfloat16)
        h1 = jax.nn.gelu(_bdot(xn, xa_ff_w1_ref), approximate=True)
        x = x + jnp.tanh(xa_ff_gate_ref[...]) * _bdot(
            h1.astype(jnp.bfloat16), xa_ff_w2_ref)

    # ------------- self attention (causal, RoPE, eager) -------------
    residual = x
    hn = _rmsnorm(x, in_ln_w_ref[...]).astype(jnp.bfloat16)
    qkv = _bdot(hn, wqkv_ref)                                 # (BS, 5D) fused
    cos, sin = cos_ref[...], sin_ref[...]
    # RoPE: rotate-half already folded into the q_rot / k_rot weight columns,
    # so this is pure full-lane (BS, D) elementwise math (no XLU shuffles).
    q = qkv[:, 0 * D:1 * D] * cos + qkv[:, 1 * D:2 * D] * sin
    k = qkv[:, 2 * D:3 * D] * cos + qkv[:, 3 * D:4 * D] * sin
    attn = _mha(q.astype(jnp.bfloat16), k.astype(jnp.bfloat16),
                qkv[:, 4 * D:5 * D].astype(jnp.bfloat16),
                NUM_HEADS, HEAD_DIM, smask_ref[...])
    x = residual + _bdot(attn, wo_ref)

    # ------------- MLP (SwiGLU, fused gate+up) -------------
    residual = x
    hn = _rmsnorm(x, post_ln_w_ref[...]).astype(jnp.bfloat16)
    gu = _bdot(hn, w_gateup_ref)                              # (BS, 2I) fused
    act = (jax.nn.silu(gu[:, :INTERMEDIATE]) * gu[:, INTERMEDIATE:]
           ).astype(jnp.bfloat16)
    x = residual + _bdot(act, w_down_ref)

    o_ref[...] = x.astype(o_ref.dtype)


# ============================ JAX wrapper ============================

def rope_cos_sin(seq_len, dim, theta=ROPE_THETA):
    inv = 1.0 / (theta ** (jnp.arange(0, dim, 2, dtype=jnp.float32) / dim))
    t = jnp.arange(seq_len, dtype=jnp.float32)
    freqs = jnp.outer(t, inv)                       # (S, dim/2)
    emb = jnp.concatenate([freqs, freqs], axis=-1)  # (S, dim)
    return jnp.cos(emb), jnp.sin(emb)


def llama_decoder_layer(params, image_features, hidden_states,
                        layer_idx=LAYER_IDX):
    b, s, d = hidden_states.shape
    m, dv = image_features.shape[1], image_features.shape[2]
    use_xattn = (layer_idx % 4 == 0)
    bs = b * s

    # bf16 activation I/O; batch folded into the row dimension.
    x2d = hidden_states.reshape(bs, d).astype(jnp.bfloat16)

    # cos/sin tiled per head and per batch -> (BS, D) (positions restart per batch)
    cos, sin = rope_cos_sin(s, HEAD_DIM)
    cos_f = jnp.tile(jnp.tile(cos, (1, NUM_HEADS)), (b, 1))
    sin_f = jnp.tile(jnp.tile(sin, (1, NUM_HEADS)), (b, 1))

    # block-diagonal causal mask over the folded (BS, BS) score matrix
    qi = jnp.arange(bs)
    same_batch = (qi[:, None] // s) == (qi[None, :] // s)
    causal = qi[None, :] <= qi[:, None]
    self_mask = jnp.where(same_batch & causal, 0.0, NEG_INF).astype(jnp.float32)

    args = [x2d, cos_f, sin_f, self_mask]
    if use_xattn:
        img2d = image_features.reshape(b * m, dv).astype(jnp.bfloat16)
        kj = jnp.arange(b * m)
        xmask = jnp.where((qi[:, None] // s) == (kj[None, :] // m),
                          0.0, NEG_INF).astype(jnp.float32)
        xp = params["xattn"]
        args += [img2d, xmask,
                 xp["attn_ln_g"], xp["attn_ln_b"], xp["wq"], xp["wkv"],
                 xp["wo"], xp["attn_gate"], xp["ff_ln_g"], xp["ff_ln_b"],
                 xp["ff_w1"], xp["ff_w2"], xp["ff_gate"]]
    args += [params["input_ln_w"], params["wqkv"], params["wo"],
             params["post_ln_w"], params["w_gateup"], params["w_down"]]

    kern = functools.partial(_decoder_layer_kernel, use_xattn=use_xattn)
    out2d = pl.pallas_call(
        kern,
        out_shape=jax.ShapeDtypeStruct((bs, d), jnp.bfloat16),
        # no grid: single invocation, every operand fully VMEM-resident and
        # single-buffered (toy sizes; see TODO above for real Llama dims).
        compiler_params=pltpu.CompilerParams(
            vmem_limit_bytes=32 * 1024 * 1024),
    )(*args)
    return out2d.reshape(b, s, d)


# =========================== parameter init ===========================

def _rotate_half_matrix():
    """Block-diagonal (D, D) matrix P with q @ P == rotate_half(q) per head."""
    half = HEAD_DIM // 2
    p = jnp.zeros((HEAD_DIM, HEAD_DIM), jnp.float32)
    p = p.at[half:, :half].set(-jnp.eye(half, dtype=jnp.float32))
    p = p.at[:half, half:].set(jnp.eye(half, dtype=jnp.float32))
    return jnp.kron(jnp.eye(NUM_HEADS, dtype=jnp.float32), p)


def init_params(key):
    ks = jax.random.split(key, 16)
    n = lambda k, shp, scale=0.02: scale * jax.random.normal(k, shp, jnp.float32)
    bf = lambda w: w.astype(jnp.bfloat16)
    ff_inner = FF_MULT * D

    # NOTE: real GatedCrossAttentionBlock initializes gates to 0 (identity);
    # we use 1.0 so the cross-attention path is actually exercised.
    xattn = {
        "attn_ln_g": jnp.ones((1, D), jnp.float32),
        "attn_ln_b": jnp.zeros((1, D), jnp.float32),
        "wq": bf(n(ks[0], (D, X_INNER))),
        "wkv": bf(n(ks[1], (DV, 2 * X_INNER))),
        "wo": bf(n(ks[2], (X_INNER, D))),
        "attn_gate": jnp.ones((1, 1), jnp.float32),
        "ff_ln_g": jnp.ones((1, D), jnp.float32),
        "ff_ln_b": jnp.zeros((1, D), jnp.float32),
        "ff_w1": bf(n(ks[3], (D, ff_inner))),
        "ff_w2": bf(n(ks[4], (ff_inner, D))),
        "ff_gate": jnp.ones((1, 1), jnp.float32),
    }

    # Fused QKV weight with rotate-half columns folded in (built ONCE here):
    #   columns = [wq | wq@P | wk | wk@P | wv]  -> (D, 5D)
    wq, wk, wv = n(ks[5], (D, D)), n(ks[6], (D, D)), n(ks[7], (D, D))
    rot = _rotate_half_matrix()
    wqkv = bf(jnp.concatenate([wq, wq @ rot, wk, wk @ rot, wv], axis=1))
    w_gateup = bf(jnp.concatenate([n(ks[9], (D, INTERMEDIATE)),
                                   n(ks[10], (D, INTERMEDIATE))], axis=1))
    return {
        "xattn": xattn,
        "input_ln_w": jnp.ones((1, D), jnp.float32),
        "post_ln_w": jnp.ones((1, D), jnp.float32),
        "wqkv": wqkv,
        "wo": bf(n(ks[8], (D, D))),
        "w_gateup": w_gateup,
        "w_down": bf(n(ks[11], (INTERMEDIATE, D))),
    }


# ================================ main ================================

if __name__ == "__main__":
    root = jax.random.PRNGKey(0)
    k_par, k_hid, k_img = jax.random.split(root, 3)

    params = init_params(k_par)
    hidden_states = jax.random.normal(
        k_hid, (B, S, D), jnp.float32).astype(jnp.bfloat16)
    image_features = jax.random.normal(
        k_img, (B, M_IMG, DV), jnp.float32).astype(jnp.bfloat16)

    fwd = jax.jit(functools.partial(llama_decoder_layer, layer_idx=LAYER_IDX))
    out = jax.block_until_ready(fwd(params, image_features, hidden_states))

    assert out.shape == (B, S, D), out.shape
    assert jnp.isfinite(out.astype(jnp.float32)).all()
    print("KERNEL_OK")
</pallas_src>

<mosaic_0001>
module attributes {stable_mosaic.version = 11 : i64} {
  func.func @_decoder_layer_kernel(%arg0: memref<16x128xbf16, #tpu.memory_space<vmem>>, %arg1: memref<16x128xf32, #tpu.memory_space<vmem>>, %arg2: memref<16x128xf32, #tpu.memory_space<vmem>>, %arg3: memref<16x16xf32, #tpu.memory_space<vmem>>, %arg4: memref<32x32xbf16, #tpu.memory_space<vmem>>, %arg5: memref<16x32xf32, #tpu.memory_space<vmem>>, %arg6: memref<1x128xf32, #tpu.memory_space<vmem>>, %arg7: memref<1x128xf32, #tpu.memory_space<vmem>>, %arg8: memref<128x128xbf16, #tpu.memory_space<vmem>>, %arg9: memref<32x256xbf16, #tpu.memory_space<vmem>>, %arg10: memref<128x128xbf16, #tpu.memory_space<vmem>>, %arg11: memref<1x1xf32, #tpu.memory_space<vmem>>, %arg12: memref<1x128xf32, #tpu.memory_space<vmem>>, %arg13: memref<1x128xf32, #tpu.memory_space<vmem>>, %arg14: memref<128x512xbf16, #tpu.memory_space<vmem>>, %arg15: memref<512x128xbf16, #tpu.memory_space<vmem>>, %arg16: memref<1x1xf32, #tpu.memory_space<vmem>>, %arg17: memref<1x128xf32, #tpu.memory_space<vmem>>, %arg18: memref<128x640xbf16, #tpu.memory_space<vmem>>, %arg19: memref<128x128xbf16, #tpu.memory_space<vmem>>, %arg20: memref<1x128xf32, #tpu.memory_space<vmem>>, %arg21: memref<128x512xbf16, #tpu.memory_space<vmem>>, %arg22: memref<256x128xbf16, #tpu.memory_space<vmem>>, %arg23: memref<16x128xbf16, #tpu.memory_space<vmem>>) attributes {dimension_semantics = [], scalar_prefetch = 0 : i64, scratch_operands = 0 : i64, tpu.core_type = #tpu.core_type<tc>} {
    %c0 = arith.constant 0 : index
    %c0_0 = arith.constant 0 : index
    %0 = vector.load %arg0[%c0, %c0_0] : memref<16x128xbf16, #tpu.memory_space<vmem>>, vector<16x128xbf16>
    %1 = arith.extf %0 : vector<16x128xbf16> to vector<16x128xf32>
    %c0_1 = arith.constant 0 : index
    %c0_2 = arith.constant 0 : index
    %2 = vector.load %arg6[%c0_1, %c0_2] : memref<1x128xf32, #tpu.memory_space<vmem>>, vector<1x128xf32>
    %c0_3 = arith.constant 0 : index
    %c0_4 = arith.constant 0 : index
    %3 = vector.load %arg7[%c0_3, %c0_4] : memref<1x128xf32, #tpu.memory_space<vmem>>, vector<1x128xf32>
    %cst = arith.constant dense<0.000000e+00> : vector<16xf32>
    %4 = vector.multi_reduction <add>, %1, %cst [1] : vector<16x128xf32> to vector<16xf32>
    %5 = vector.shape_cast %4 : vector<16xf32> to vector<16x1xf32>
    %cst_5 = arith.constant 1.280000e+02 : f32
    %6 = vector.broadcast %cst_5 : f32 to vector<16x1xf32>
    %7 = arith.divf %5, %6 : vector<16x1xf32>
    %8 = vector.broadcast %7 : vector<16x1xf32> to vector<16x128xf32>
    %9 = arith.subf %1, %8 : vector<16x128xf32>
    %10 = arith.mulf %9, %9 : vector<16x128xf32>
    %cst_6 = arith.constant dense<0.000000e+00> : vector<16xf32>
    %11 = vector.multi_reduction <add>, %10, %cst_6 [1] : vector<16x128xf32> to vector<16xf32>
    %12 = vector.shape_cast %11 : vector<16xf32> to vector<16x1xf32>
    %cst_7 = arith.constant 1.280000e+02 : f32
    %13 = vector.broadcast %cst_7 : f32 to vector<16x1xf32>
    %14 = arith.divf %12, %13 : vector<16x1xf32>
    %cst_8 = arith.constant 9.99999974E-6 : f32
    %15 = vector.broadcast %cst_8 : f32 to vector<16x1xf32>
    %16 = arith.addf %14, %15 : vector<16x1xf32>
    %17 = math.rsqrt %16 : vector<16x1xf32>
    %18 = vector.broadcast %17 : vector<16x1xf32> to vector<16x128xf32>
    %19 = arith.mulf %9, %18 : vector<16x128xf32>
    %20 = vector.broadcast %2 : vector<1x128xf32> to vector<16x128xf32>
    %21 = arith.mulf %19, %20 : vector<16x128xf32>
    %22 = vector.broadcast %3 : vector<1x128xf32> to vector<16x128xf32>
    %23 = arith.addf %21, %22 : vector<16x128xf32>
    %24 = arith.truncf %23 : vector<16x128xf32> to vector<16x128xbf16>
    %c0_9 = arith.constant 0 : index
    %c0_10 = arith.constant 0 : index
    %25 = vector.load %arg8[%c0_9, %c0_10] : memref<128x128xbf16, #tpu.memory_space<vmem>>, vector<128x128xbf16>
    %cst_11 = arith.constant dense<0.000000e+00> : vector<16x128xf32>
    %26 = tpu.matmul %24, %25, %cst_11 {dimension_numbers = #tpu.dot_dimension_numbers<[1], [0], [0], [1], [0, 0, 1, 1], [], []>} : vector<16x128xbf16>, vector<128x128xbf16>, vector<16x128xf32> -> vector<16x128xf32>
    %c0_12 = arith.constant 0 : index
    %c0_13 = arith.constant 0 : index
    %27 = vector.load %arg4[%c0_12, %c0_13] : memref<32x32xbf16, #tpu.memory_space<vmem>>, vector<32x32xbf16>
    %c0_14 = arith.constant 0 : index
    %c0_15 = arith.constant 0 : index
    %28 = vector.load %arg9[%c0_14, %c0_15] : memref<32x256xbf16, #tpu.memory_space<vmem>>, vector<32x256xbf16>
    %cst_16 = arith.constant dense<0.000000e+00> : vector<32x256xf32>
    %29 = tpu.matmul %27, %28, %cst_16 {dimension_numbers = #tpu.dot_dimension_numbers<[1], [0], [0], [1], [0, 0, 1, 1], [], []>} : vector<32x32xbf16>, vector<32x256xbf16>, vector<32x256xf32> -> vector<32x256xf32>
    %30 = arith.truncf %26 : vector<16x128xf32> to vector<16x128xbf16>
    %31 = vector.extract_strided_slice %29 {offsets = [0, 0], sizes = [32, 128], strides = [1, 1]} : vector<32x256xf32> to vector<32x128xf32>
    %32 = arith.truncf %31 : vector<32x128xf32> to vector<32x128xbf16>
    %33 = vector.extract_strided_slice %29 {offsets = [0, 128], sizes = [32, 128], strides = [1, 1]} : vector<32x256xf32> to vector<32x128xf32>
    %34 = arith.truncf %33 : vector<32x128xf32> to vector<32x128xbf16>
    %c0_17 = arith.constant 0 : index
    %c0_18 = arith.constant 0 : index
    %35 = vector.load %arg5[%c0_17, %c0_18] : memref<16x32xf32, #tpu.memory_space<vmem>>, vector<16x32xf32>
    %36 = vector.shape_cast %30 : vector<16x128xbf16> to vector<16x4x32xbf16>
    %37 = tpu.transpose %36, [1, 0, 2] : vector<16x4x32xbf16> -> vector<4x16x32xbf16>
    %38 = vector.shape_cast %32 : vector<32x128xbf16> to vector<32x4x32xbf16>
    %39 = tpu.transpose %38, [1, 0, 2] : vector<32x4x32xbf16> -> vector<4x32x32xbf16>
    %40 = vector.shape_cast %34 : vector<32x128xbf16> to vector<32x4x32xbf16>
    %41 = tpu.transpose %40, [1, 0, 2] : vector<32x4x32xbf16> -> vector<4x32x32xbf16>
    "tpu.trace_start"() <{level = 10 : i32, message = "hqd,hkd->hqk"}> : () -> ()
    %cst_19 = arith.constant dense<0.000000e+00> : vector<4x16x32xf32>
    %42 = tpu.matmul %37, %39, %cst_19 {dimension_numbers = #tpu.dot_dimension_numbers<[2], [2], [1], [1], [0, 0, 0, 1, 1, 1], [0], [0]>} : vector<4x16x32xbf16>, vector<4x32x32xbf16>, vector<4x16x32xf32> -> vector<4x16x32xf32>
    "tpu.trace_stop"() : () -> ()
    %cst_20 = arith.constant 0.176776692 : f32
    %43 = vector.broadcast %cst_20 : f32 to vector<4x16x32xf32>
    %44 = arith.mulf %42, %43 : vector<4x16x32xf32>
    %45 = vector.shape_cast %35 : vector<16x32xf32> to vector<1x16x32xf32>
    %46 = vector.broadcast %45 : vector<1x16x32xf32> to vector<4x16x32xf32>
    %47 = arith.addf %44, %46 : vector<4x16x32xf32>
    %cst_21 = arith.constant dense<0xFF800000> : vector<4x16xf32>
    %48 = vector.multi_reduction <maximumf>, %47, %cst_21 [2] : vector<4x16x32xf32> to vector<4x16xf32>
    %49 = vector.shape_cast %48 : vector<4x16xf32> to vector<4x16x1xf32>
    %50 = vector.broadcast %49 : vector<4x16x1xf32> to vector<4x16x32xf32>
    %51 = arith.subf %47, %50 : vector<4x16x32xf32>
    %52 = math.exp %51 : vector<4x16x32xf32>
    %cst_22 = arith.constant dense<0.000000e+00> : vector<4x16xf32>
    %53 = vector.multi_reduction <add>, %52, %cst_22 [2] : vector<4x16x32xf32> to vector<4x16xf32>
    %54 = vector.shape_cast %53 : vector<4x16xf32> to vector<4x16x1xf32>
    %55 = tpu.reciprocal %54 {approx = true} : vector<4x16x1xf32> -> vector<4x16x1xf32>
    %56 = vector.broadcast %55 : vector<4x16x1xf32> to vector<4x16x32xf32>
    %57 = arith.mulf %52, %56 : vector<4x16x32xf32>
    %58 = arith.truncf %57 : vector<4x16x32xf32> to vector<4x16x32xbf16>
    "tpu.trace_start"() <{level = 10 : i32, message = "hqk,hkd->hqd"}> : () -> ()
    %cst_23 = arith.constant dense<0.000000e+00> : vector<4x16x32xf32>
    %59 = tpu.matmul %58, %41, %cst_23 {dimension_numbers = #tpu.dot_dimension_numbers<[2], [1], [1], [2], [0, 0, 0, 1, 1, 2], [0], [0]>} : vector<4x16x32xbf16>, vector<4x32x32xbf16>, vector<4x16x32xf32> -> vector<4x16x32xf32>
    "tpu.trace_stop"() : () -> ()
    %60 = tpu.transpose %59, [1, 0, 2] : vector<4x16x32xf32> -> vector<16x4x32xf32>
    %61 = vector.shape_cast %60 : vector<16x4x32xf32> to vector<16x128xf32>
    %62 = arith.truncf %61 : vector<16x128xf32> to vector<16x128xbf16>
    %c0_24 = arith.constant 0 : index
    %c0_25 = arith.constant 0 : index
    %63 = vector.load %arg11[%c0_24, %c0_25] : memref<1x1xf32, #tpu.memory_space<vmem>>, vector<1x1xf32>
    %64 = math.tanh %63 : vector<1x1xf32>
    %c0_26 = arith.constant 0 : index
    %c0_27 = arith.constant 0 : index
    %65 = vector.load %arg10[%c0_26, %c0_27] : memref<128x128xbf16, #tpu.memory_space<vmem>>, vector<128x128xbf16>
    %cst_28 = arith.constant dense<0.000000e+00> : vector<16x128xf32>
    %66 = tpu.matmul %62, %65, %cst_28 {dimension_numbers = #tpu.dot_dimension_numbers<[1], [0], [0], [1], [0, 0, 1, 1], [], []>} : vector<16x128xbf16>, vector<128x128xbf16>, vector<16x128xf32> -> vector<16x128xf32>
    %67 = vector.broadcast %64 : vector<1x1xf32> to vector<16x128xf32>
    %68 = arith.mulf %67, %66 : vector<16x128xf32>
    %69 = arith.addf %1, %68 : vector<16x128xf32>
    %c0_29 = arith.constant 0 : index
    %c0_30 = arith.constant 0 : index
    %70 = vector.load %arg12[%c0_29, %c0_30] : memref<1x128xf32, #tpu.memory_space<vmem>>, vector<1x128xf32>
    %c0_31 = arith.constant 0 : index
    %c0_32 = arith.constant 0 : index
    %71 = vector.load %arg13[%c0_31, %c0_32] : memref<1x128xf32, #tpu.memory_space<vmem>>, vector<1x128xf32>
    %cst_33 = arith.constant dense<0.000000e+00> : vector<16xf32>
    %72 = vector.multi_reduction <add>, %69, %cst_33 [1] : vector<16x128xf32> to vector<16xf32>
    %73 = vector.shape_cast %72 : vector<16xf32> to vector<16x1xf32>
    %cst_34 = arith.constant 1.280000e+02 : f32
    %74 = vector.broadcast %cst_34 : f32 to vector<16x1xf32>
    %75 = arith.divf %73, %74 : vector<16x1xf32>
    %76 = vector.broadcast %75 : vector<16x1xf32> to vector<16x128xf32>
    %77 = arith.subf %69, %76 : vector<16x128xf32>
    %78 = arith.mulf %77, %77 : vector<16x128xf32>
    %cst_35 = arith.constant dense<0.000000e+00> : vector<16xf32>
    %79 = vector.multi_reduction <add>, %78, %cst_35 [1] : vector<16x128xf32> to vector<16xf32>
    %80 = vector.shape_cast %79 : vector<16xf32> to vector<16x1xf32>
    %cst_36 = arith.constant 1.280000e+02 : f32
    %81 = vector.broadcast %cst_36 : f32 to vector<16x1xf32>
    %82 = arith.divf %80, %81 : vector<16x1xf32>
    %cst_37 = arith.constant 9.99999974E-6 : f32
    %83 = vector.broadcast %cst_37 : f32 to vector<16x1xf32>
    %84 = arith.addf %82, %83 : vector<16x1xf32>
    %85 = math.rsqrt %84 : vector<16x1xf32>
    %86 = vector.broadcast %85 : vector<16x1xf32> to vector<16x128xf32>
    %87 = arith.mulf %77, %86 : vector<16x128xf32>
    %88 = vector.broadcast %70 : vector<1x128xf32> to vector<16x128xf32>
    %89 = arith.mulf %87, %88 : vector<16x128xf32>
    %90 = vector.broadcast %71 : vector<1x128xf32> to vector<16x128xf32>
    %91 = arith.addf %89, %90 : vector<16x128xf32>
    %92 = arith.truncf %91 : vector<16x128xf32> to vector<16x128xbf16>
    %c0_38 = arith.constant 0 : index
    %c0_39 = arith.constant 0 : index
    %93 = vector.load %arg14[%c0_38, %c0_39] : memref<128x512xbf16, #tpu.memory_space<vmem>>, vector<128x512xbf16>
    %cst_40 = arith.constant dense<0.000000e+00> : vector<16x512xf32>
    %94 = tpu.matmul %92, %93, %cst_40 {dimension_numbers = #tpu.dot_dimension_numbers<[1], [0], [0], [1], [0, 0, 1, 1], [], []>} : vector<16x128xbf16>, vector<128x512xbf16>, vector<16x512xf32> -> vector<16x512xf32>
    %95 = arith.mulf %94, %94 : vector<16x512xf32>
    %96 = arith.mulf %94, %95 : vector<16x512xf32>
    %cst_41 = arith.constant 4.471500e-02 : f32
    %97 = vector.broadcast %cst_41 : f32 to vector<16x512xf32>
    %98 = arith.mulf %97, %96 : vector<16x512xf32>
    %99 = arith.addf %94, %98 : vector<16x512xf32>
    %cst_42 = arith.constant 0.797884583 : f32
    %100 = vector.broadcast %cst_42 : f32 to vector<16x512xf32>
    %101 = arith.mulf %100, %99 : vector<16x512xf32>
    %102 = math.tanh %101 : vector<16x512xf32>
    %cst_43 = arith.constant 1.000000e+00 : f32
    %103 = vector.broadcast %cst_43 : f32 to vector<16x512xf32>
    %104 = arith.addf %103, %102 : vector<16x512xf32>
    %cst_44 = arith.constant 5.000000e-01 : f32
    %105 = vector.broadcast %cst_44 : f32 to vector<16x512xf32>
    %106 = arith.mulf %105, %104 : vector<16x512xf32>
    %107 = arith.mulf %94, %106 : vector<16x512xf32>
    %c0_45 = arith.constant 0 : index
    %c0_46 = arith.constant 0 : index
    %108 = vector.load %arg16[%c0_45, %c0_46] : memref<1x1xf32, #tpu.memory_space<vmem>>, vector<1x1xf32>
    %109 = math.tanh %108 : vector<1x1xf32>
    %110 = arith.truncf %107 : vector<16x512xf32> to vector<16x512xbf16>
    %c0_47 = arith.constant 0 : index
    %c0_48 = arith.constant 0 : index
    %111 = vector.load %arg15[%c0_47, %c0_48] : memref<512x128xbf16, #tpu.memory_space<vmem>>, vector<512x128xbf16>
    %cst_49 = arith.constant dense<0.000000e+00> : vector<16x128xf32>
    %112 = tpu.matmul %110, %111, %cst_49 {dimension_numbers = #tpu.dot_dimension_numbers<[1], [0], [0], [1], [0, 0, 1, 1], [], []>} : vector<16x512xbf16>, vector<512x128xbf16>, vector<16x128xf32> -> vector<16x128xf32>
    %113 = vector.broadcast %109 : vector<1x1xf32> to vector<16x128xf32>
    %114 = arith.mulf %113, %112 : vector<16x128xf32>
    %115 = arith.addf %69, %114 : vector<16x128xf32>
    %c0_50 = arith.constant 0 : index
    %c0_51 = arith.constant 0 : index
    %116 = vector.load %arg17[%c0_50, %c0_51] : memref<1x128xf32, #tpu.memory_space<vmem>>, vector<1x128xf32>
    %117 = arith.mulf %115, %115 : vector<16x128xf32>
    %cst_52 = arith.constant dense<0.000000e+00> : vector<16xf32>
    %118 = vector.multi_reduction <add>, %117, %cst_52 [1] : vector<16x128xf32> to vector<16xf32>
    %119 = vector.shape_cast %118 : vector<16xf32> to vector<16x1xf32>
    %cst_53 = arith.constant 1.280000e+02 : f32
    %120 = vector.broadcast %cst_53 : f32 to vector<16x1xf32>
    %121 = arith.divf %119, %120 : vector<16x1xf32>
    %cst_54 = arith.constant 9.99999997E-7 : f32
    %122 = vector.broadcast %cst_54 : f32 to vector<16x1xf32>
    %123 = arith.addf %121, %122 : vector<16x1xf32>
    %124 = math.rsqrt %123 : vector<16x1xf32>
    %125 = vector.broadcast %124 : vector<16x1xf32> to vector<16x128xf32>
    %126 = arith.mulf %115, %125 : vector<16x128xf32>
    %127 = vector.broadcast %116 : vector<1x128xf32> to vector<16x128xf32>
    %128 = arith.mulf %126, %127 : vector<16x128xf32>
    %129 = arith.truncf %128 : vector<16x128xf32> to vector<16x128xbf16>
    %c0_55 = arith.constant 0 : index
    %c0_56 = arith.constant 0 : index
    %130 = vector.load %arg18[%c0_55, %c0_56] : memref<128x640xbf16, #tpu.memory_space<vmem>>, vector<128x640xbf16>
    %cst_57 = arith.constant dense<0.000000e+00> : vector<16x640xf32>
    %131 = tpu.matmul %129, %130, %cst_57 {dimension_numbers = #tpu.dot_dimension_numbers<[1], [0], [0], [1], [0, 0, 1, 1], [], []>} : vector<16x128xbf16>, vector<128x640xbf16>, vector<16x640xf32> -> vector<16x640xf32>
    %c0_58 = arith.constant 0 : index
    %c0_59 = arith.constant 0 : index
    %132 = vector.load %arg1[%c0_58, %c0_59] : memref<16x128xf32, #tpu.memory_space<vmem>>, vector<16x128xf32>
    %c0_60 = arith.constant 0 : index
    %c0_61 = arith.constant 0 : index
    %133 = vector.load %arg2[%c0_60, %c0_61] : memref<16x128xf32, #tpu.memory_space<vmem>>, vector<16x128xf32>
    %134 = vector.extract_strided_slice %131 {offsets = [0, 0], sizes = [16, 128], strides = [1, 1]} : vector<16x640xf32> to vector<16x128xf32>
    %135 = arith.mulf %134, %132 : vector<16x128xf32>
    %136 = vector.extract_strided_slice %131 {offsets = [0, 128], sizes = [16, 128], strides = [1, 1]} : vector<16x640xf32> to vector<16x128xf32>
    %137 = arith.mulf %136, %133 : vector<16x128xf32>
    %138 = arith.addf %135, %137 : vector<16x128xf32>
    %139 = vector.extract_strided_slice %131 {offsets = [0, 256], sizes = [16, 128], strides = [1, 1]} : vector<16x640xf32> to vector<16x128xf32>
    %140 = arith.mulf %139, %132 : vector<16x128xf32>
    %141 = vector.extract_strided_slice %131 {offsets = [0, 384], sizes = [16, 128], strides = [1, 1]} : vector<16x640xf32> to vector<16x128xf32>
    %142 = arith.mulf %141, %133 : vector<16x128xf32>
    %143 = arith.addf %140, %142 : vector<16x128xf32>
    %144 = arith.truncf %138 : vector<16x128xf32> to vector<16x128xbf16>
    %145 = arith.truncf %143 : vector<16x128xf32> to vector<16x128xbf16>
    %146 = vector.extract_strided_slice %131 {offsets = [0, 512], sizes = [16, 128], strides = [1, 1]} : vector<16x640xf32> to vector<16x128xf32>
    %147 = arith.truncf %146 : vector<16x128xf32> to vector<16x128xbf16>
    %c0_62 = arith.constant 0 : index
    %c0_63 = arith.constant 0 : index
    %148 = vector.load %arg3[%c0_62, %c0_63] : memref<16x16xf32, #tpu.memory_space<vmem>>, vector<16x16xf32>
    %149 = vector.shape_cast %144 : vector<16x128xbf16> to vector<16x4x32xbf16>
    %150 = tpu.transpose %149, [1, 0, 2] : vector<16x4x32xbf16> -> vector<4x16x32xbf16>
    %151 = vector.shape_cast %145 : vector<16x128xbf16> to vector<16x4x32xbf16>
    %152 = tpu.transpose %151, [1, 0, 2] : vector<16x4x32xbf16> -> vector<4x16x32xbf16>
    %153 = vector.shape_cast %147 : vector<16x128xbf16> to vector<16x4x32xbf16>
    %154 = tpu.transpose %153, [1, 0, 2] : vector<16x4x32xbf16> -> vector<4x16x32xbf16>
    "tpu.trace_start"() <{level = 10 : i32, message = "hqd,hkd->hqk"}> : () -> ()
    %cst_64 = arith.constant dense<0.000000e+00> : vector<4x16x16xf32>
    %155 = tpu.matmul %150, %152, %cst_64 {dimension_numbers = #tpu.dot_dimension_numbers<[2], [2], [1], [1], [0, 0, 0, 1, 1, 1], [0], [0]>} : vector<4x16x32xbf16>, vector<4x16x32xbf16>, vector<4x16x16xf32> -> vector<4x16x16xf32>
    "tpu.trace_stop"() : () -> ()
    %cst_65 = arith.constant 0.176776692 : f32
    %156 = vector.broadcast %cst_65 : f32 to vector<4x16x16xf32>
    %157 = arith.mulf %155, %156 : vector<4x16x16xf32>
    %158 = vector.shape_cast %148 : vector<16x16xf32> to vector<1x16x16xf32>
    %159 = vector.broadcast %158 : vector<1x16x16xf32> to vector<4x16x16xf32>
    %160 = arith.addf %157, %159 : vector<4x16x16xf32>
    %cst_66 = arith.constant dense<0xFF800000> : vector<4x16xf32>
    %161 = vector.multi_reduction <maximumf>, %160, %cst_66 [2] : vector<4x16x16xf32> to vector<4x16xf32>
    %162 = vector.shape_cast %161 : vector<4x16xf32> to vector<4x16x1xf32>
    %163 = vector.broadcast %162 : vector<4x16x1xf32> to vector<4x16x16xf32>
    %164 = arith.subf %160, %163 : vector<4x16x16xf32>
    %165 = math.exp %164 : vector<4x16x16xf32>
    %cst_67 = arith.constant dense<0.000000e+00> : vector<4x16xf32>
    %166 = vector.multi_reduction <add>, %165, %cst_67 [2] : vector<4x16x16xf32> to vector<4x16xf32>
    %167 = vector.shape_cast %166 : vector<4x16xf32> to vector<4x16x1xf32>
    %168 = tpu.reciprocal %167 {approx = true} : vector<4x16x1xf32> -> vector<4x16x1xf32>
    %169 = vector.broadcast %168 : vector<4x16x1xf32> to vector<4x16x16xf32>
    %170 = arith.mulf %165, %169 : vector<4x16x16xf32>
    %171 = arith.truncf %170 : vector<4x16x16xf32> to vector<4x16x16xbf16>
    "tpu.trace_start"() <{level = 10 : i32, message = "hqk,hkd->hqd"}> : () -> ()
    %cst_68 = arith.constant dense<0.000000e+00> : vector<4x16x32xf32>
    %172 = tpu.matmul %171, %154, %cst_68 {dimension_numbers = #tpu.dot_dimension_numbers<[2], [1], [1], [2], [0, 0, 0, 1, 1, 2], [0], [0]>} : vector<4x16x16xbf16>, vector<4x16x32xbf16>, vector<4x16x32xf32> -> vector<4x16x32xf32>
    "tpu.trace_stop"() : () -> ()
    %173 = tpu.transpose %172, [1, 0, 2] : vector<4x16x32xf32> -> vector<16x4x32xf32>
    %174 = vector.shape_cast %173 : vector<16x4x32xf32> to vector<16x128xf32>
    %175 = arith.truncf %174 : vector<16x128xf32> to vector<16x128xbf16>
    %c0_69 = arith.constant 0 : index
    %c0_70 = arith.constant 0 : index
    %176 = vector.load %arg19[%c0_69, %c0_70] : memref<128x128xbf16, #tpu.memory_space<vmem>>, vector<128x128xbf16>
    %cst_71 = arith.constant dense<0.000000e+00> : vector<16x128xf32>
    %177 = tpu.matmul %175, %176, %cst_71 {dimension_numbers = #tpu.dot_dimension_numbers<[1], [0], [0], [1], [0, 0, 1, 1], [], []>} : vector<16x128xbf16>, vector<128x128xbf16>, vector<16x128xf32> -> vector<16x128xf32>
    %178 = arith.addf %115, %177 : vector<16x128xf32>
    %c0_72 = arith.constant 0 : index
    %c0_73 = arith.constant 0 : index
    %179 = vector.load %arg20[%c0_72, %c0_73] : memref<1x128xf32, #tpu.memory_space<vmem>>, vector<1x128xf32>
    %180 = arith.mulf %178, %178 : vector<16x128xf32>
    %cst_74 = arith.constant dense<0.000000e+00> : vector<16xf32>
    %181 = vector.multi_reduction <add>, %180, %cst_74 [1] : vector<16x128xf32> to vector<16xf32>
    %182 = vector.shape_cast %181 : vector<16xf32> to vector<16x1xf32>
    %cst_75 = arith.constant 1.280000e+02 : f32
    %183 = vector.broadcast %cst_75 : f32 to vector<16x1xf32>
    %184 = arith.divf %182, %183 : vector<16x1xf32>
    %cst_76 = arith.constant 9.99999997E-7 : f32
    %185 = vector.broadcast %cst_76 : f32 to vector<16x1xf32>
    %186 = arith.addf %184, %185 : vector<16x1xf32>
    %187 = math.rsqrt %186 : vector<16x1xf32>
    %188 = vector.broadcast %187 : vector<16x1xf32> to vector<16x128xf32>
    %189 = arith.mulf %178, %188 : vector<16x128xf32>
    %190 = vector.broadcast %179 : vector<1x128xf32> to vector<16x128xf32>
    %191 = arith.mulf %189, %190 : vector<16x128xf32>
    %192 = arith.truncf %191 : vector<16x128xf32> to vector<16x128xbf16>
    %c0_77 = arith.constant 0 : index
    %c0_78 = arith.constant 0 : index
    %193 = vector.load %arg21[%c0_77, %c0_78] : memref<128x512xbf16, #tpu.memory_space<vmem>>, vector<128x512xbf16>
    %cst_79 = arith.constant dense<0.000000e+00> : vector<16x512xf32>
    %194 = tpu.matmul %192, %193, %cst_79 {dimension_numbers = #tpu.dot_dimension_numbers<[1], [0], [0], [1], [0, 0, 1, 1], [], []>} : vector<16x128xbf16>, vector<128x512xbf16>, vector<16x512xf32> -> vector<16x512xf32>
    %195 = vector.extract_strided_slice %194 {offsets = [0, 0], sizes = [16, 256], strides = [1, 1]} : vector<16x512xf32> to vector<16x256xf32>
    %196 = arith.negf %195 : vector<16x256xf32>
    %197 = math.exp %196 : vector<16x256xf32>
    %cst_80 = arith.constant 1.000000e+00 : f32
    %198 = vector.broadcast %cst_80 : f32 to vector<16x256xf32>
    %199 = arith.addf %198, %197 : vector<16x256xf32>
    %200 = arith.divf %198, %199 : vector<16x256xf32>
    %201 = arith.mulf %195, %200 : vector<16x256xf32>
    %202 = vector.extract_strided_slice %194 {offsets = [0, 256], sizes = [16, 256], strides = [1, 1]} : vector<16x512xf32> to vector<16x256xf32>
    %203 = arith.mulf %201, %202 : vector<16x256xf32>
    %204 = arith.truncf %203 : vector<16x256xf32> to vector<16x256xbf16>
    %c0_81 = arith.constant 0 : index
    %c0_82 = arith.constant 0 : index
    %205 = vector.load %arg22[%c0_81, %c0_82] : memref<256x128xbf16, #tpu.memory_space<vmem>>, vector<256x128xbf16>
    %cst_83 = arith.constant dense<0.000000e+00> : vector<16x128xf32>
    %206 = tpu.matmul %204, %205, %cst_83 {dimension_numbers = #tpu.dot_dimension_numbers<[1], [0], [0], [1], [0, 0, 1, 1], [], []>} : vector<16x256xbf16>, vector<256x128xbf16>, vector<16x128xf32> -> vector<16x128xf32>
    %207 = arith.addf %178, %206 : vector<16x128xf32>
    %208 = arith.truncf %207 : vector<16x128xf32> to vector<16x128xbf16>
    %c0_84 = arith.constant 0 : index
    %c0_85 = arith.constant 0 : index
    %209 = vector.load %arg23[%c0_84, %c0_85] : memref<16x128xbf16, #tpu.memory_space<vmem>>, vector<16x128xbf16>
    tpu.vector_store %arg23[%c0_84, %c0_85], %208 {strides = array<i32>} : memref<16x128xbf16, #tpu.memory_space<vmem>>, vector<16x128xbf16>,
    return
  }
}

</mosaic_0001>

<llo_original>
// kernel: llama_decoder_layer.1
$region0: #{llama_decoder_layer.1}
  #allocation0 [shape = 'u32[]', space=smem, size = 0x4, offset = 0x4, fixed_abs, tag = 'smem constant byte address 0x4 - core index']
  #allocation1 [shape = 'u32[144,128]{1,0:T(1,128)}', space=vmem, size = 0x12000, scoped, tag = 'internal scratch']
  #allocation2 [shape = 'f32[1,1]{1,0:T(1,128)S(1)}', space=vmem, size = 0x200, scoped, tag = 'scoped memory for llama_decoder_layer.1']
  #allocation3 [shape = 'f32[1,1]{1,0:T(1,128)S(1)}', space=vmem, size = 0x200, scoped, tag = 'scoped memory for llama_decoder_layer.1']
  %s0 = inlined_call_operand.hbm [shape: bf16[16,128], index: 0, kind: input, shape index: {}]
  %s1 = inlined_call_operand.vmem [shape: f32[16,128], index: 1, kind: input, shape index: {}]
  %s2 = inlined_call_operand.vmem [shape: f32[16,128], index: 2, kind: input, shape index: {}]
  %s3 = inlined_call_operand.vmem [shape: f32[16,16], index: 3, kind: input, shape index: {}]
  %s4 = inlined_call_operand.vmem [shape: bf16[32,32], index: 4, kind: input, shape index: {}]
  %s5 = inlined_call_operand.vmem [shape: f32[16,32], index: 5, kind: input, shape index: {}]
  %s6 = inlined_call_operand.hbm [shape: f32[1,128], index: 6, kind: input, shape index: {}]
  %s7 = inlined_call_operand.hbm [shape: f32[1,128], index: 7, kind: input, shape index: {}]
  %s8 = inlined_call_operand.hbm [shape: bf16[128,128], index: 8, kind: input, shape index: {}]
  %s9 = inlined_call_operand.vmem [shape: bf16[32,256], index: 9, kind: input, shape index: {}]
  %s10 = inlined_call_operand.hbm [shape: bf16[128,128], index: 10, kind: input, shape index: {}]
  %s11 = inlined_call_operand.<no memory space> [shape: f32[1,1], index: 11, kind: input, shape index: {}]
  %s12 = inlined_call_operand.hbm [shape: f32[1,128], index: 12, kind: input, shape index: {}]
  %s13 = inlined_call_operand.hbm [shape: f32[1,128], index: 13, kind: input, shape index: {}]
  %s14 = inlined_call_operand.hbm [shape: bf16[128,512], index: 14, kind: input, shape index: {}]
  %s15 = inlined_call_operand.hbm [shape: bf16[512,128], index: 15, kind: input, shape index: {}]
  %s16 = inlined_call_operand.<no memory space> [shape: f32[1,1], index: 16, kind: input, shape index: {}]
  %s17 = inlined_call_operand.vmem [shape: f32[1,128], index: 17, kind: input, shape index: {}]
  %s18 = inlined_call_operand.vmem [shape: bf16[128,640], index: 18, kind: input, shape index: {}]
  %s19 = inlined_call_operand.hbm [shape: bf16[128,128], index: 19, kind: input, shape index: {}]
  %s20 = inlined_call_operand.vmem [shape: f32[1,128], index: 20, kind: input, shape index: {}]
  %s21 = inlined_call_operand.hbm [shape: bf16[128,512], index: 21, kind: input, shape index: {}]
  %s22 = inlined_call_operand.hbm [shape: bf16[256,128], index: 22, kind: input, shape index: {}]
  %s23 = inlined_call_operand.hbm [shape: bf16[16,128], index: 23, kind: output, shape index: {}]
  %s24 = sld [smem:[#allocation0]]
  $region150: #{llama_decoder_layer.1} parent=0
    _
  %s26 = ssub.s32 1, %s24
  %s27 = scalar_select 0, %s26, %s24
  %v28 = vstv %s11
  %29 = vst [vmem:[#allocation2] sm:$0x1] %v28
  %v30 = vstv %s16
  %31 = vst [vmem:[#allocation3] sm:$0x1] %v30
  $region1: #{llama_decoder_layer.1} parent=0
    #allocation4 [shape = 'u8[4096]{0}', space=vmem, size = 0x1000, scoped, tag = 'input window, operand 0, single buffered']
    #allocation5 [shape = 's32[1]{0}', space=sflag, size = 0x4, scoped, tag = 'scoped memory for llama_decoder_layer.1']
    #allocation6 [shape = 's32[1]{0}', space=sflag, size = 0x4, scoped, tag = 'scoped memory for llama_decoder_layer.1']
    #allocation7 [shape = 'u8[512]{0}', space=vmem, size = 0x400, scoped, tag = 'input window, operand 6, single buffered']
    #allocation8 [shape = 's32[1]{0}', space=sflag, size = 0x4, scoped, tag = 'scoped memory for llama_decoder_layer.1']
    #allocation9 [shape = 'u8[512]{0}', space=vmem, size = 0x400, scoped, tag = 'input window, operand 7, single buffered']
    #allocation10 [shape = 'u8[32768]{0}', space=vmem, size = 0x8000, scoped, tag = 'input window, operand 8, single buffered']
    #allocation11 [shape = 's32[1]{0}', space=sflag, size = 0x4, scoped, tag = 'scoped memory for llama_decoder_layer.1']
    #allocation12 [shape = 'u8[32768]{0}', space=vmem, size = 0x8000, scoped, tag = 'input window, operand 10, single buffered']
    #allocation13 [shape = 'u8[512]{0}', space=vmem, size = 0x400, scoped, tag = 'input window, operand 12, single buffered']
    #allocation14 [shape = 's32[1]{0}', space=sflag, size = 0x4, scoped, tag = 'scoped memory for llama_decoder_layer.1']
    #allocation15 [shape = 'u8[512]{0}', space=vmem, size = 0x400, scoped, tag = 'input window, operand 13, single buffered']
    #allocation16 [shape = 'u8[131072]{0}', space=vmem, size = 0x20000, scoped, tag = 'input window, operand 14, single buffered']
    #allocation17 [shape = 's32[1]{0}', space=sflag, size = 0x4, scoped, tag = 'scoped memory for llama_decoder_layer.1']
    #allocation18 [shape = 'u8[131072]{0}', space=vmem, size = 0x20000, scoped, tag = 'input window, operand 15, single buffered']
    #allocation19 [shape = 'u8[32768]{0}', space=vmem, size = 0x8000, scoped, tag = 'input window, operand 19, single buffered']
    #allocation20 [shape = 's32[1]{0}', space=sflag, size = 0x4, scoped, tag = 'scoped memory for llama_decoder_layer.1']
    #allocation21 [shape = 'u8[131072]{0}', space=vmem, size = 0x20000, scoped, tag = 'input window, operand 21, single buffered']
    #allocation22 [shape = 'u8[65536]{0}', space=vmem, size = 0x10000, scoped, tag = 'input window, operand 22, single buffered']
    #allocation23 [shape = 's32[1]{0}', space=sflag, size = 0x4, scoped, tag = 'scoped memory for llama_decoder_layer.1']
    #allocation24 [shape = 'u8[4096]{0}', space=vmem, size = 0x1000, scoped, tag = 'output window, operand 0, single buffered']
    %32 = vsyncpa [#allocation5], 0
    %33 = vsyncpa [#allocation8], 0
    %34 = vsyncpa [#allocation11], 0
    %35 = vsyncpa [#allocation14], 0
    %36 = vsyncpa [#allocation17], 0
    %37 = vsyncpa [#allocation20], 0
    %38 = vsyncpa [#allocation23], 0
    %39 = vsyncpa [#allocation6], 0
    // Predicated region
    $region2: #{llama_decoder_layer.1} parent=1 // pred_check
      _
    $region3: #{llama_decoder_layer.1} parent=1 // pred_check_branch
      %41 = sbr.rel (0) target = $region5
    $region4: #{llama_decoder_layer.1} parent=1 // pred_region
      %s43 = ssub.s32 128, 128
      %44 = vsyncadd [#allocation5], %s43
      %s45 = sshll.u32 [#allocation4], 4
      %s46 = int_to_ptr.vmem [resolvable:$true] %s45
      %51 = dma.hbm_to_vmem [thread:$0]  %s0, 128, %s46, [#allocation5], 64, 64, 4
    $region5: #{llama_decoder_layer.1} parent=1 // pred_fallthru
      _
    // Predicated region
    $region6: #{llama_decoder_layer.1} parent=1 // pred_check
      _
    $region7: #{llama_decoder_layer.1} parent=1 // pred_check_branch
      %53 = sbr.rel (0) target = $region9
    $region8: #{llama_decoder_layer.1} parent=1 // pred_region
      _
    $region9: #{llama_decoder_layer.1} parent=1 // pred_fallthru
      _
    // Predicated region
    $region10: #{llama_decoder_layer.1} parent=1 // pred_check
      _
    $region11: #{llama_decoder_layer.1} parent=1 // pred_check_branch
      %55 = sbr.rel (0) target = $region13
    $region12: #{llama_decoder_layer.1} parent=1 // pred_region
      _
    $region13: #{llama_decoder_layer.1} parent=1 // pred_fallthru
      _
    // Predicated region
    $region14: #{llama_decoder_layer.1} parent=1 // pred_check
      _
    $region15: #{llama_decoder_layer.1} parent=1 // pred_check_branch
      %57 = sbr.rel (0) target = $region17
    $region16: #{llama_decoder_layer.1} parent=1 // pred_region
      _
    $region17: #{llama_decoder_layer.1} parent=1 // pred_fallthru
      _
    // Predicated region
    $region18: #{llama_decoder_layer.1} parent=1 // pred_check
      _
    $region19: #{llama_decoder_layer.1} parent=1 // pred_check_branch
      %59 = sbr.rel (0) target = $region21
    $region20: #{llama_decoder_layer.1} parent=1 // pred_region
      _
    $region21: #{llama_decoder_layer.1} parent=1 // pred_fallthru
      _
    // Predicated region
    $region22: #{llama_decoder_layer.1} parent=1 // pred_check
      _
    $region23: #{llama_decoder_layer.1} parent=1 // pred_check_branch
      %61 = sbr.rel (0) target = $region25
    $region24: #{llama_decoder_layer.1} parent=1 // pred_region
      _
    $region25: #{llama_decoder_layer.1} parent=1 // pred_fallthru
      _
    // Predicated region
    $region26: #{llama_decoder_layer.1} parent=1 // pred_check
      _
    $region27: #{llama_decoder_layer.1} parent=1 // pred_check_branch
      %63 = sbr.rel (0) target = $region29
    $region28: #{llama_decoder_layer.1} parent=1 // pred_region
      %s65 = ssub.s32 16, 16
      %66 = vsyncadd [#allocation8], %s65
      %s68 = sshll.u32 [#allocation7], 4
      %s69 = int_to_ptr.vmem [resolvable:$true] %s68
      %71 = dma.hbm_to_vmem [thread:$0]  %s6, 16, %s69, [#allocation8]
    $region29: #{llama_decoder_layer.1} parent=1 // pred_fallthru
      _
    // Predicated region
    $region30: #{llama_decoder_layer.1} parent=1 // pred_check
      _
    $region31: #{llama_decoder_layer.1} parent=1 // pred_check_branch
      %73 = sbr.rel (0) target = $region33
    $region32: #{llama_decoder_layer.1} parent=1 // pred_region
      %s75 = ssub.s32 16, 16
      %76 = vsyncadd [#allocation8], %s75
      %s78 = sshll.u32 [#allocation9], 4
      %s79 = int_to_ptr.vmem [resolvable:$true] %s78
      %81 = dma.hbm_to_vmem [thread:$0]  %s7, 16, %s79, [#allocation8]
    $region33: #{llama_decoder_layer.1} parent=1 // pred_fallthru
      _
    // Predicated region
    $region34: #{llama_decoder_layer.1} parent=1 // pred_check
      _
    $region35: #{llama_decoder_layer.1} parent=1 // pred_check_branch
      %83 = sbr.rel (0) target = $region37
    $region36: #{llama_decoder_layer.1} parent=1 // pred_region
      %s85 = ssub.s32 1024, 1024
      %86 = vsyncadd [#allocation11], %s85
      %s87 = sshll.u32 [#allocation10], 4
      %s88 = int_to_ptr.vmem [resolvable:$true] %s87
      %93 = dma.hbm_to_vmem [thread:$0]  %s8, 1024, %s88, [#allocation11], 64, 64, 4
    $region37: #{llama_decoder_layer.1} parent=1 // pred_fallthru
      _
    // Predicated region
    $region38: #{llama_decoder_layer.1} parent=1 // pred_check
      _
    $region39: #{llama_decoder_layer.1} parent=1 // pred_check_branch
      %95 = sbr.rel (0) target = $region41
    $region40: #{llama_decoder_layer.1} parent=1 // pred_region
      _
    $region41: #{llama_decoder_layer.1} parent=1 // pred_fallthru
      _
    // Predicated region
    $region42: #{llama_decoder_layer.1} parent=1 // pred_check
      _
    $region43: #{llama_decoder_layer.1} parent=1 // pred_check_branch
      %97 = sbr.rel (0) target = $region45
    $region44: #{llama_decoder_layer.1} parent=1 // pred_region
      %s99 = ssub.s32 1024, 1024
      %100 = vsyncadd [#allocation11], %s99
      %s101 = sshll.u32 [#allocation12], 4
      %s102 = int_to_ptr.vmem [resolvable:$true] %s101
      %107 = dma.hbm_to_vmem [thread:$0]  %s10, 1024, %s102, [#allocation11], 64, 64, 4
    $region45: #{llama_decoder_layer.1} parent=1 // pred_fallthru
      _
    // Predicated region
    $region46: #{llama_decoder_layer.1} parent=1 // pred_check
      _
    $region47: #{llama_decoder_layer.1} parent=1 // pred_check_branch
      %109 = sbr.rel (0) target = $region49
    $region48: #{llama_decoder_layer.1} parent=1 // pred_region
      _
    $region49: #{llama_decoder_layer.1} parent=1 // pred_fallthru
      _
    // Predicated region
    $region50: #{llama_decoder_layer.1} parent=1 // pred_check
      _
    $region51: #{llama_decoder_layer.1} parent=1 // pred_check_branch
      %111 = sbr.rel (0) target = $region53
    $region52: #{llama_decoder_layer.1} parent=1 // pred_region
      %s113 = ssub.s32 16, 16
      %114 = vsyncadd [#allocation14], %s113
      %s116 = sshll.u32 [#allocation13], 4
      %s117 = int_to_ptr.vmem [resolvable:$true] %s116
      %119 = dma.hbm_to_vmem [thread:$0]  %s12, 16, %s117, [#allocation14]
    $region53: #{llama_decoder_layer.1} parent=1 // pred_fallthru
      _
    // Predicated region
    $region54: #{llama_decoder_layer.1} parent=1 // pred_check
      _
    $region55: #{llama_decoder_layer.1} parent=1 // pred_check_branch
      %121 = sbr.rel (0) target = $region57
    $region56: #{llama_decoder_layer.1} parent=1 // pred_region
      %s123 = ssub.s32 16, 16
      %124 = vsyncadd [#allocation14], %s123
      %s126 = sshll.u32 [#allocation15], 4
      %s127 = int_to_ptr.vmem [resolvable:$true] %s126
      %129 = dma.hbm_to_vmem [thread:$0]  %s13, 16, %s127, [#allocation14]
    $region57: #{llama_decoder_layer.1} parent=1 // pred_fallthru
      _
    // Predicated region
    $region58: #{llama_decoder_layer.1} parent=1 // pred_check
      _
    $region59: #{llama_decoder_layer.1} parent=1 // pred_check_branch
      %131 = sbr.rel (0) target = $region61
    $region60: #{llama_decoder_layer.1} parent=1 // pred_region
      %s133 = ssub.s32 4096, 4096
      %134 = vsyncadd [#allocation17], %s133
      %s135 = sshll.u32 [#allocation16], 4
      %s136 = int_to_ptr.vmem [resolvable:$true] %s135
      %141 = dma.hbm_to_vmem [thread:$0]  %s14, 4096, %s136, [#allocation17], 256, 256, 16
    $region61: #{llama_decoder_layer.1} parent=1 // pred_fallthru
      _
    // Predicated region
    $region62: #{llama_decoder_layer.1} parent=1 // pred_check
      _
    $region63: #{llama_decoder_layer.1} parent=1 // pred_check_branch
      %143 = sbr.rel (0) target = $region65
    $region64: #{llama_decoder_layer.1} parent=1 // pred_region
      %s145 = ssub.s32 4096, 4096
      %146 = vsyncadd [#allocation17], %s145
      %s147 = sshll.u32 [#allocation18], 4
      %s148 = int_to_ptr.vmem [resolvable:$true] %s147
      %153 = dma.hbm_to_vmem [thread:$0]  %s15, 4096, %s148, [#allocation17], 64, 64, 4
    $region65: #{llama_decoder_layer.1} parent=1 // pred_fallthru
      _
    // Predicated region
    $region66: #{llama_decoder_layer.1} parent=1 // pred_check
      _
    $region67: #{llama_decoder_layer.1} parent=1 // pred_check_branch
      %155 = sbr.rel (0) target = $region69
    $region68: #{llama_decoder_layer.1} parent=1 // pred_region
      _
    $region69: #{llama_decoder_layer.1} parent=1 // pred_fallthru
      _
    // Predicated region
    $region70: #{llama_decoder_layer.1} parent=1 // pred_check
      _
    $region71: #{llama_decoder_layer.1} parent=1 // pred_check_branch
      %157 = sbr.rel (0) target = $region73
    $region72: #{llama_decoder_layer.1} parent=1 // pred_region
      _
    $region73: #{llama_decoder_layer.1} parent=1 // pred_fallthru
      _
    // Predicated region
    $region74: #{llama_decoder_layer.1} parent=1 // pred_check
      _
    $region75: #{llama_decoder_layer.1} parent=1 // pred_check_branch
      %159 = sbr.rel (0) target = $region77
    $region76: #{llama_decoder_layer.1} parent=1 // pred_region
      _
    $region77: #{llama_decoder_layer.1} parent=1 // pred_fallthru
      _
    // Predicated region
    $region78: #{llama_decoder_layer.1} parent=1 // pred_check
      _
    $region79: #{llama_decoder_layer.1} parent=1 // pred_check_branch
      %161 = sbr.rel (0) target = $region81
    $region80: #{llama_decoder_layer.1} parent=1 // pred_region
      %s163 = ssub.s32 1024, 1024
      %164 = vsyncadd [#allocation20], %s163
      %s165 = sshll.u32 [#allocation19], 4
      %s166 = int_to_ptr.vmem [resolvable:$true] %s165
      %171 = dma.hbm_to_vmem [thread:$0]  %s19, 1024, %s166, [#allocation20], 64, 64, 4
    $region81: #{llama_decoder_layer.1} parent=1 // pred_fallthru
      _
    // Predicated region
    $region82: #{llama_decoder_layer.1} parent=1 // pred_check
      _
    $region83: #{llama_decoder_layer.1} parent=1 // pred_check_branch
      %173 = sbr.rel (0) target = $region85
    $region84: #{llama_decoder_layer.1} parent=1 // pred_region
      _
    $region85: #{llama_decoder_layer.1} parent=1 // pred_fallthru
      _
    // Predicated region
    $region86: #{llama_decoder_layer.1} parent=1 // pred_check
      _
    $region87: #{llama_decoder_layer.1} parent=1 // pred_check_branch
      %175 = sbr.rel (0) target = $region89
    $region88: #{llama_decoder_layer.1} parent=1 // pred_region
      %s177 = ssub.s32 4096, 4096
      %178 = vsyncadd [#allocation20], %s177
      %s179 = sshll.u32 [#allocation21], 4
      %s180 = int_to_ptr.vmem [resolvable:$true] %s179
      %185 = dma.hbm_to_vmem [thread:$0]  %s21, 4096, %s180, [#allocation20], 256, 256, 16
    $region89: #{llama_decoder_layer.1} parent=1 // pred_fallthru
      _
    // Predicated region
    $region90: #{llama_decoder_layer.1} parent=1 // pred_check
      _
    $region91: #{llama_decoder_layer.1} parent=1 // pred_check_branch
      %187 = sbr.rel (0) target = $region93
    $region92: #{llama_decoder_layer.1} parent=1 // pred_region
      %s189 = ssub.s32 2048, 2048
      %190 = vsyncadd [#allocation23], %s189
      %s191 = sshll.u32 [#allocation22], 4
      %s192 = int_to_ptr.vmem [resolvable:$true] %s191
      %197 = dma.hbm_to_vmem [thread:$0]  %s22, 2048, %s192, [#allocation23], 64, 64, 4
    $region93: #{llama_decoder_layer.1} parent=1 // pred_fallthru
      _
    // Predicated region
    $region94: #{llama_decoder_layer.1} parent=1 // pred_check
      _
    $region95: #{llama_decoder_layer.1} parent=1 // pred_check_branch
      %199 = sbr.rel (0) target = $region97
    $region96: #{llama_decoder_layer.1} parent=1 // pred_region
      %200 = dma.done [#allocation5], 128
    $region97: #{llama_decoder_layer.1} parent=1 // pred_fallthru
      _
    // Predicated region
    $region98: #{llama_decoder_layer.1} parent=1 // pred_check
      _
    $region99: #{llama_decoder_layer.1} parent=1 // pred_check_branch
      %202 = sbr.rel (0) target = $region101
    $region100: #{llama_decoder_layer.1} parent=1 // pred_region
      %203 = dma.done [#allocation8], 16
    $region101: #{llama_decoder_layer.1} parent=1 // pred_fallthru
      _
    // Predicated region
    $region102: #{llama_decoder_layer.1} parent=1 // pred_check
      _
    $region103: #{llama_decoder_layer.1} parent=1 // pred_check_branch
      %205 = sbr.rel (0) target = $region105
    $region104: #{llama_decoder_layer.1} parent=1 // pred_region
      %206 = dma.done [#allocation8], 16
    $region105: #{llama_decoder_layer.1} parent=1 // pred_fallthru
      _
    // Predicated region
    $region106: #{llama_decoder_layer.1} parent=1 // pred_check
      _
    $region107: #{llama_decoder_layer.1} parent=1 // pred_check_branch
      %208 = sbr.rel (0) target = $region109
    $region108: #{llama_decoder_layer.1} parent=1 // pred_region
      %209 = dma.done [#allocation11], 1024
    $region109: #{llama_decoder_layer.1} parent=1 // pred_fallthru
      _
    // Predicated region
    $region110: #{llama_decoder_layer.1} parent=1 // pred_check
      _
    $region111: #{llama_decoder_layer.1} parent=1 // pred_check_branch
      %211 = sbr.rel (0) target = $region113
    $region112: #{llama_decoder_layer.1} parent=1 // pred_region
      %212 = dma.done [#allocation11], 1024
    $region113: #{llama_decoder_layer.1} parent=1 // pred_fallthru
      _
    // Predicated region
    $region114: #{llama_decoder_layer.1} parent=1 // pred_check
      _
    $region115: #{llama_decoder_layer.1} parent=1 // pred_check_branch
      %214 = sbr.rel (0) target = $region117
    $region116: #{llama_decoder_layer.1} parent=1 // pred_region
      %215 = dma.done [#allocation14], 16
    $region117: #{llama_decoder_layer.1} parent=1 // pred_fallthru
      _
    // Predicated region
    $region118: #{llama_decoder_layer.1} parent=1 // pred_check
      _
    $region119: #{llama_decoder_layer.1} parent=1 // pred_check_branch
      %217 = sbr.rel (0) target = $region121
    $region120: #{llama_decoder_layer.1} parent=1 // pred_region
      %218 = dma.done [#allocation14], 16
    $region121: #{llama_decoder_layer.1} parent=1 // pred_fallthru
      _
    // Predicated region
    $region122: #{llama_decoder_layer.1} parent=1 // pred_check
      _
    $region123: #{llama_decoder_layer.1} parent=1 // pred_check_branch
      %220 = sbr.rel (0) target = $region125
    $region124: #{llama_decoder_layer.1} parent=1 // pred_region
      %221 = dma.done [#allocation17], 4096
    $region125: #{llama_decoder_layer.1} parent=1 // pred_fallthru
      _
    // Predicated region
    $region126: #{llama_decoder_layer.1} parent=1 // pred_check
      _
    $region127: #{llama_decoder_layer.1} parent=1 // pred_check_branch
      %223 = sbr.rel (0) target = $region129
    $region128: #{llama_decoder_layer.1} parent=1 // pred_region
      %224 = dma.done [#allocation17], 4096
    $region129: #{llama_decoder_layer.1} parent=1 // pred_fallthru
      _
    // Predicated region
    $region130: #{llama_decoder_layer.1} parent=1 // pred_check
      _
    $region131: #{llama_decoder_layer.1} parent=1 // pred_check_branch
      %226 = sbr.rel (0) target = $region133
    $region132: #{llama_decoder_layer.1} parent=1 // pred_region
      %227 = dma.done [#allocation20], 1024
    $region133: #{llama_decoder_layer.1} parent=1 // pred_fallthru
      _
    // Predicated region
    $region134: #{llama_decoder_layer.1} parent=1 // pred_check
      _
    $region135: #{llama_decoder_layer.1} parent=1 // pred_check_branch
      %229 = sbr.rel (0) target = $region137
    $region136: #{llama_decoder_layer.1} parent=1 // pred_region
      %230 = dma.done [#allocation20], 4096
    $region137: #{llama_decoder_layer.1} parent=1 // pred_fallthru
      _
    // Predicated region
    $region138: #{llama_decoder_layer.1} parent=1 // pred_check
      _
    $region139: #{llama_decoder_layer.1} parent=1 // pred_check_branch
      %232 = sbr.rel (0) target = $region141
    $region140: #{llama_decoder_layer.1} parent=1 // pred_region
      %233 = dma.done [#allocation23], 2048
    $region141: #{llama_decoder_layer.1} parent=1 // pred_fallthru
      _
    %v235 = vld [vmem:[#allocation4] sm:$0xf]
    %v236 = vld [vmem:[#allocation4 + $0x4] sm:$0xf]
    %v237 = vunpack.c.l.bf16 %v235
    %v238 = vunpack.c.l.bf16 %v236
    %v239 = vld [vmem:[#allocation7] sm:$0x1]
    %v240 = vld [vmem:[#allocation9] sm:$0x1]
    %241 = vadd.xlane.f32.xlu0 %v237
    %v242 = vpop.xlane.xlu0 %241
    %243 = vadd.xlane.f32.xlu0 %v238
    %v244 = vpop.xlane.xlu0 %243
    %v245 = vrcp.pop 128.0
    %v246 = vmul.f32 %v242, %v245
    %v247 = vmul.f32 %v244, %v245
    %v248 = vsub.f32 %v237, %v246
    %v249 = vsub.f32 %v238, %v247
    %v250 = vmul.f32 %v248, %v248
    %v251 = vmul.f32 %v249, %v249
    %252 = vadd.xlane.f32.xlu0 %v250
    %v253 = vpop.xlane.xlu0 %252
    %254 = vadd.xlane.f32.xlu0 %v251
    %v255 = vpop.xlane.xlu0 %254
    %v256 = vmul.f32 %v253, %v245
    %v257 = vmul.f32 %v255, %v245
    %v258 = vadd.f32 %v256, 1e-05
    %v259 = vadd.f32 %v257, 1e-05
    %v260 = vrsqrt.pop %v258
    %v261 = vrsqrt.pop %v259
    %v262 = vmul.f32 %v248, %v260
    %v263 = vmul.f32 %v249, %v261
    %v265 = vlaneseq
    %v266 = vshrl.u32 %v265, 7
    %v267 = vsub.s32 0, %v266
    %v268 = vrot.slane %v239, %v267
    %v270 = vmul.f32 %v262, %v268
    %v271 = vmul.f32 %v263, %v268
    %v273 = vlaneseq
    %v274 = vshrl.u32 %v273, 7
    %v275 = vsub.s32 0, %v274
    %v276 = vrot.slane %v240, %v275
    %v278 = vadd.f32 %v270, %v276
    %v279 = vadd.f32 %v271, %v276
    %v280 = vpack.c.bf16 %v279, %v278
    %v281 = vld [vmem:[#allocation10] sm:$0xf]
    %v282 = vld [vmem:[#allocation10 + $0x4] sm:$0xf]
    %v283 = vld [vmem:[#allocation10 + $0x8] sm:$0xf]
    %v284 = vld [vmem:[#allocation10 + $0xc] sm:$0xf]
    %v285 = vld [vmem:[#allocation10 + $0x10] sm:$0xf]
    %v286 = vld [vmem:[#allocation10 + $0x14] sm:$0xf]
    %v287 = vld [vmem:[#allocation10 + $0x18] sm:$0xf]
    %v288 = vld [vmem:[#allocation10 + $0x1c] sm:$0xf]
    %v289 = vld [vmem:[#allocation10 + $0x20] sm:$0xf]
    %v290 = vld [vmem:[#allocation10 + $0x24] sm:$0xf]
    %v291 = vld [vmem:[#allocation10 + $0x28] sm:$0xf]
    %v292 = vld [vmem:[#allocation10 + $0x2c] sm:$0xf]
    %v293 = vld [vmem:[#allocation10 + $0x30] sm:$0xf]
    %v294 = vld [vmem:[#allocation10 + $0x34] sm:$0xf]
    %v295 = vld [vmem:[#allocation10 + $0x38] sm:$0xf]
    %v296 = vld [vmem:[#allocation10 + $0x3c] sm:$0xf]
    %v313 = vunpack.c.l.b16 %v281
    %v314 = vunpack.c.l.b16 %v282
    %v315 = vunpack.c.l.b16 %v283
    %v316 = vunpack.c.l.b16 %v284
    %v317 = vunpack.c.l.b16 %v285
    %v318 = vunpack.c.l.b16 %v286
    %v319 = vunpack.c.l.b16 %v287
    %v320 = vunpack.c.l.b16 %v288
    %v321 = vunpack.c.l.b16 %v289
    %v322 = vunpack.c.l.b16 %v290
    %v323 = vunpack.c.l.b16 %v291
    %v324 = vunpack.c.l.b16 %v292
    %v325 = vunpack.c.l.b16 %v293
    %v326 = vunpack.c.l.b16 %v294
    %v327 = vunpack.c.l.b16 %v295
    %v328 = vunpack.c.l.b16 %v296
    %v329 = vpack.c.b16 %v314, %v313
    %v330 = vpack.c.b16 %v316, %v315
    %v331 = vpack.c.b16 %v318, %v317
    %v332 = vpack.c.b16 %v320, %v319
    %v333 = vpack.c.b16 %v322, %v321
    %v334 = vpack.c.b16 %v324, %v323
    %v335 = vpack.c.b16 %v326, %v325
    %v336 = vpack.c.b16 %v328, %v327
    %345 = vmatprep.subr.bf16.mxu0 0
    %346 = vmatpush1.bf16.msra.mxu0 %v329
    %347 = vmatprep.subr.bf16.mxu0 0
    %348 = vmatpush1.bf16.msra.mxu0 %v330
    %349 = vmatprep.subr.bf16.mxu0 0
    %350 = vmatpush1.bf16.msra.mxu0 %v331
    %351 = vmatprep.subr.bf16.mxu0 0
    %352 = vmatpush1.bf16.msra.mxu0 %v332
    %353 = vmatprep.subr.bf16.mxu0 0
    %354 = vmatpush1.bf16.msra.mxu0 %v333
    %355 = vmatprep.subr.bf16.mxu0 0
    %356 = vmatpush1.bf16.msra.mxu0 %v334
    %357 = vmatprep.subr.bf16.mxu0 0
    %358 = vmatpush1.bf16.msra.mxu0 %v335
    %359 = vmatprep.subr.bf16.mxu0 0
    %360 = vmatpush1.bf16.msra.mxu0 %v336
    %361 = vmatprep.subr.bf16.mxu0 0
    %362 = vmatpush1.bf16.msra.mxu0 0
    %363 = vmatprep.subr.bf16.mxu0 0
    %364 = vmatpush1.bf16.msra.mxu0 0
    %365 = vmatprep.subr.bf16.mxu0 0
    %366 = vmatpush1.bf16.msra.mxu0 0
    %367 = vmatprep.subr.bf16.mxu0 0
    %368 = vmatpush1.bf16.msra.mxu0 0
    %369 = vmatprep.subr.bf16.mxu0 0
    %370 = vmatpush1.bf16.msra.mxu0 0
    %371 = vmatprep.subr.bf16.mxu0 0
    %372 = vmatpush1.bf16.msra.mxu0 0
    %373 = vmatprep.subr.bf16.mxu0 0
    %374 = vmatpush1.bf16.msra.mxu0 0
    %375 = vmatprep.subr.bf16.mxu0 0
    %376 = vmatpush1.bf16.msra.mxu0 0
    %377 = vmatprep.mubr.bf16.mxu0 0
    %378 = vmatmul.mubr.bf16.gmra.mrb[0].mxu0 %v280
    %v379 = vpop.f32.mrb[0].mxu0
    %v380 = vadd.f32 0.0, %v379
    %v381 = vpop.f32.mrb[0].mxu0
    %v382 = vpop.f32.mrb[0].mxu0
    %v383 = vadd.f32 0.0, %v382
    %v384 = vpop.f32.mrb[0].mxu0
    %385 = vdwg.mxu0
    %v386 = vld [vmem:[%s4] sm:$0xf]
    %v387 = vld [vmem:[%s4 + $0x4] sm:$0xf]
    %v388 = vld [vmem:[%s4 + $0x8] sm:$0xf]
    %v389 = vld [vmem:[%s4 + $0xc] sm:$0xf]
    %v390 = vld [vmem:[%s9] sm:$0xff]
    %v391 = vld [vmem:[%s9 + $0x8] sm:$0xff]
    %v392 = vld [vmem:[%s9 + $0x10] sm:$0xff]
    %v393 = vld [vmem:[%s9 + $0x18] sm:$0xff]
    %v398 = vunpack.c.l.b16 %v386
    %v399 = vunpack.c.l.b16 %v387
    %v400 = vunpack.c.l.b16 %v388
    %v401 = vunpack.c.l.b16 %v389
    %v402 = vpack.c.b16 %v399, %v398
    %v403 = vpack.c.b16 %v401, %v400
    %v408 = vunpack.c.l.b16 %v390
    %v409 = vunpack.c.h.b16 %v390
    %v410 = vunpack.c.l.b16 %v391
    %v411 = vunpack.c.h.b16 %v391
    %v412 = vunpack.c.l.b16 %v392
    %v413 = vunpack.c.h.b16 %v392
    %v414 = vunpack.c.l.b16 %v393
    %v415 = vunpack.c.h.b16 %v393
    %v416 = vpack.c.b16 %v410, %v408
    %v417 = vpack.c.b16 %v411, %v409
    %v418 = vpack.c.b16 %v414, %v412
    %v419 = vpack.c.b16 %v415, %v413
    %vm424 = vcmask 261120
    %v426 = vsel %vm424, %v402, 0
    %v429 = vsel %vm424, %v403, 0
    %431 = vmatprep.subr.bf16.mxu0 %v417
    %432 = vmatpush1.bf16.msra.mxu0 %v416
    %433 = vmatprep.subr.bf16.mxu0 %v419
    %434 = vmatpush1.bf16.msra.mxu0 %v418
    %435 = vmatprep.subr.bf16.mxu0 0
    %436 = vmatpush1.bf16.msra.mxu0 0
    %437 = vmatprep.subr.bf16.mxu0 0
    %438 = vmatpush1.bf16.msra.mxu0 0
    %439 = vmatprep.subr.bf16.mxu0 0
    %440 = vmatpush1.bf16.msra.mxu0 0
    %441 = vmatprep.subr.bf16.mxu0 0
    %442 = vmatpush1.bf16.msra.mxu0 0
    %443 = vmatprep.subr.bf16.mxu0 0
    %444 = vmatpush1.bf16.msra.mxu0 0
    %445 = vmatprep.subr.bf16.mxu0 0
    %446 = vmatpush1.bf16.msra.mxu0 0
    %447 = vmatprep.subr.bf16.mxu0 0
    %448 = vmatpush1.bf16.msra.mxu0 0
    %449 = vmatprep.subr.bf16.mxu0 0
    %450 = vmatpush1.bf16.msra.mxu0 0
    %451 = vmatprep.subr.bf16.mxu0 0
    %452 = vmatpush1.bf16.msra.mxu0 0
    %453 = vmatprep.subr.bf16.mxu0 0
    %454 = vmatpush1.bf16.msra.mxu0 0
    %455 = vmatprep.subr.bf16.mxu0 0
    %456 = vmatpush1.bf16.msra.mxu0 0
    %457 = vmatprep.subr.bf16.mxu0 0
    %458 = vmatpush1.bf16.msra.mxu0 0
    %459 = vmatprep.subr.bf16.mxu0 0
    %460 = vmatpush1.bf16.msra.mxu0 0
    %461 = vmatprep.subr.bf16.mxu0 0
    %462 = vmatpush1.bf16.msra.mxu0 0
    %463 = vmatprep.mubr.bf16.mxu0 0
    %464 = vmatmul.mubr.bf16.gmra.mrb[0].mxu0 %v426
    %v465 = vpop.f32.mrb[0].mxu0
    %v466 = vadd.f32 0.0, %v465
    %v467 = vpop.f32.mrb[0].mxu0
    %v468 = vadd.f32 0.0, %v467
    %v469 = vpop.f32.mrb[0].mxu0
    %v470 = vadd.f32 0.0, %v469
    %v471 = vpop.f32.mrb[0].mxu0
    %v472 = vadd.f32 0.0, %v471
    %473 = vmatprep.mubr.bf16.mxu0 0
    %474 = vmatmul.mubr.bf16.gmra.mrb[0].mxu0 %v429
    %v475 = vpop.f32.mrb[0].mxu0
    %v476 = vadd.f32 0.0, %v475
    %v477 = vpop.f32.mrb[0].mxu0
    %v478 = vadd.f32 0.0, %v477
    %v479 = vpop.f32.mrb[0].mxu0
    %v480 = vadd.f32 0.0, %v479
    %v481 = vpop.f32.mrb[0].mxu0
    %v482 = vadd.f32 0.0, %v481
    %483 = vdwg.mxu0
    %v484 = vpack.c.bf16 %v383, %v380
    %v485 = vpack.c.bf16 %v470, %v466
    %v486 = vpack.c.bf16 %v480, %v476
    %v487 = vpack.c.bf16 %v472, %v468
    %v488 = vpack.c.bf16 %v482, %v478
    %v489 = vld [vmem:[%s5] sm:$0xff]
    %v490 = vld [vmem:[%s5 + $0x8] sm:$0xff]
    %492 = vrot.lane.b32.xlu0 %v484, 96
    %v493 = vpop.permute.xlu0 %492
    %494 = vrot.lane.b32.xlu0 %v484, 64
    %v495 = vpop.permute.xlu0 %494
    %496 = vrot.lane.b32.xlu0 %v484, 32
    %v497 = vpop.permute.xlu0 %496
    %v500 = vpack.i.b16 %v493, %v484
    %v502 = vshrl.u32 %v484, 16
    %v503 = vshrl.u32 %v493, 16
    %v504 = vpack.i.b16 %v503, %v502
    %v508 = vpack.i.b16 %v497, %v495
    %v510 = vshrl.u32 %v495, 16
    %v511 = vshrl.u32 %v497, 16
    %v512 = vpack.i.b16 %v511, %v510
    %v515 = vpack.i.b16 0, 0
    %v517 = vshrl.u32 0, 16
    %v518 = vpack.i.b16 %v517, %v517
    %v520 = vcombine.high %v500, %v515
    %v522 = vunpack.c.l.s4 1983009808
    %v523 = vunpack.c.0.s8 %v522
    %v524 = vlaneseq
    %v525 = vshrl.u32 %v524, 7
    %v526 = vsub.s32 %v523, %v525
    %v527 = vrot.slane %v500, %v526
    %v529 = vunpack.c.l.s4 1983009808
    %v530 = vunpack.c.0.s8 %v529
    %v531 = vlaneseq
    %v532 = vshrl.u32 %v531, 7
    %v533 = vsub.s32 %v530, %v532
    %v534 = vrot.slane %v520, %v533
    %v535 = vcombine.high %v508, %v515
    %v537 = vunpack.c.l.s4 1983009808
    %v538 = vunpack.c.0.s8 %v537
    %v539 = vlaneseq
    %v540 = vshrl.u32 %v539, 7
    %v541 = vsub.s32 %v538, %v540
    %v542 = vrot.slane %v508, %v541
    %v544 = vunpack.c.l.s4 1983009808
    %v545 = vunpack.c.0.s8 %v544
    %v546 = vlaneseq
    %v547 = vshrl.u32 %v546, 7
    %v548 = vsub.s32 %v545, %v547
    %v549 = vrot.slane %v535, %v548
    %v550 = vcombine.low %v527, %v542
    %v551 = vcombine.high %v527, %v542
    %v553 = vunpack.c.l.s4 1934713408
    %v554 = vunpack.c.0.s8 %v553
    %v555 = vlaneseq
    %v556 = vshrl.u32 %v555, 7
    %v557 = vsub.s32 %v554, %v556
    %v558 = vrot.slane %v550, %v557
    %v560 = vunpack.c.l.s4 1934713408
    %v561 = vunpack.c.0.s8 %v560
    %v562 = vlaneseq
    %v563 = vshrl.u32 %v562, 7
    %v564 = vsub.s32 %v561, %v563
    %v565 = vrot.slane %v551, %v564
    %v566 = vcombine.low %v534, %v549
    %v567 = vcombine.high %v534, %v549
    %v569 = vunpack.c.l.s4 1934713408
    %v570 = vunpack.c.0.s8 %v569
    %v571 = vlaneseq
    %v572 = vshrl.u32 %v571, 7
    %v573 = vsub.s32 %v570, %v572
    %v574 = vrot.slane %v566, %v573
    %v576 = vunpack.c.l.s4 1934713408
    %v577 = vunpack.c.0.s8 %v576
    %v578 = vlaneseq
    %v579 = vshrl.u32 %v578, 7
    %v580 = vsub.s32 %v577, %v579
    %v581 = vrot.slane %v567, %v580
    %v582 = vcombine.high %v558, 0
    %v583 = vcombine.high %v565, 0
    %v584 = vcombine.high %v574, 0
    %v585 = vcombine.high %v581, 0
    %v586 = vcombine.high %v504, %v518
    %v588 = vunpack.c.l.s4 1983009808
    %v589 = vunpack.c.0.s8 %v588
    %v590 = vlaneseq
    %v591 = vshrl.u32 %v590, 7
    %v592 = vsub.s32 %v589, %v591
    %v593 = vrot.slane %v504, %v592
    %v595 = vunpack.c.l.s4 1983009808
    %v596 = vunpack.c.0.s8 %v595
    %v597 = vlaneseq
    %v598 = vshrl.u32 %v597, 7
    %v599 = vsub.s32 %v596, %v598
    %v600 = vrot.slane %v586, %v599
    %v601 = vcombine.high %v512, %v518
    %v603 = vunpack.c.l.s4 1983009808
    %v604 = vunpack.c.0.s8 %v603
    %v605 = vlaneseq
    %v606 = vshrl.u32 %v605, 7
    %v607 = vsub.s32 %v604, %v606
    %v608 = vrot.slane %v512, %v607
    %v610 = vunpack.c.l.s4 1983009808
    %v611 = vunpack.c.0.s8 %v610
    %v612 = vlaneseq
    %v613 = vshrl.u32 %v612, 7
    %v614 = vsub.s32 %v611, %v613
    %v615 = vrot.slane %v601, %v614
    %v616 = vcombine.low %v593, %v608
    %v617 = vcombine.high %v593, %v608
    %v619 = vunpack.c.l.s4 1934713408
    %v620 = vunpack.c.0.s8 %v619
    %v621 = vlaneseq
    %v622 = vshrl.u32 %v621, 7
    %v623 = vsub.s32 %v620, %v622
    %v624 = vrot.slane %v616, %v623
    %v626 = vunpack.c.l.s4 1934713408
    %v627 = vunpack.c.0.s8 %v626
    %v628 = vlaneseq
    %v629 = vshrl.u32 %v628, 7
    %v630 = vsub.s32 %v627, %v629
    %v631 = vrot.slane %v617, %v630
    %v632 = vcombine.low %v600, %v615
    %v633 = vcombine.high %v600, %v615
    %v635 = vunpack.c.l.s4 1934713408
    %v636 = vunpack.c.0.s8 %v635
    %v637 = vlaneseq
    %v638 = vshrl.u32 %v637, 7
    %v639 = vsub.s32 %v636, %v638
    %v640 = vrot.slane %v632, %v639
    %v642 = vunpack.c.l.s4 1934713408
    %v643 = vunpack.c.0.s8 %v642
    %v644 = vlaneseq
    %v645 = vshrl.u32 %v644, 7
    %v646 = vsub.s32 %v643, %v645
    %v647 = vrot.slane %v633, %v646
    %v648 = vcombine.high %v624, 0
    %v649 = vcombine.high %v631, 0
    %v650 = vcombine.high %v640, 0
    %v651 = vcombine.high %v647, 0
    %v652 = vcombine.low %v558, %v565
    %v654 = vunpack.c.l.s4 1983009808
    %v655 = vunpack.c.0.s8 %v654
    %v656 = vlaneseq
    %v657 = vshrl.u32 %v656, 7
    %v658 = vsub.s32 %v655, %v657
    %v659 = vrot.slane %v652, %v658
    %v660 = vcombine.low %v582, %v583
    %v662 = vunpack.c.l.s4 1983009808
    %v663 = vunpack.c.0.s8 %v662
    %v664 = vlaneseq
    %v665 = vshrl.u32 %v664, 7
    %v666 = vsub.s32 %v663, %v665
    %v667 = vrot.slane %v660, %v666
    %v668 = vcombine.low %v574, %v581
    %v670 = vunpack.c.l.s4 1983009808
    %v671 = vunpack.c.0.s8 %v670
    %v672 = vlaneseq
    %v673 = vshrl.u32 %v672, 7
    %v674 = vsub.s32 %v671, %v673
    %v675 = vrot.slane %v668, %v674
    %v676 = vcombine.low %v584, %v585
    %v678 = vunpack.c.l.s4 1983009808
    %v679 = vunpack.c.0.s8 %v678
    %v680 = vlaneseq
    %v681 = vshrl.u32 %v680, 7
    %v682 = vsub.s32 %v679, %v681
    %v683 = vrot.slane %v676, %v682
    %v684 = vcombine.low %v659, %v667
    %v686 = vunpack.c.l.s4 1934713408
    %v687 = vunpack.c.0.s8 %v686
    %v688 = vlaneseq
    %v689 = vshrl.u32 %v688, 7
    %v690 = vsub.s32 %v687, %v689
    %v691 = vrot.slane %v684, %v690
    %v692 = vcombine.low %v675, %v683
    %v694 = vunpack.c.l.s4 1934713408
    %v695 = vunpack.c.0.s8 %v694
    %v696 = vlaneseq
    %v697 = vshrl.u32 %v696, 7
    %v698 = vsub.s32 %v695, %v697
    %v699 = vrot.slane %v692, %v698
    %v700 = vcombine.low %v691, %v699
    %v701 = vcombine.high %v691, %v699
    %v702 = vcombine.low %v624, %v631
    %v704 = vunpack.c.l.s4 1983009808
    %v705 = vunpack.c.0.s8 %v704
    %v706 = vlaneseq
    %v707 = vshrl.u32 %v706, 7
    %v708 = vsub.s32 %v705, %v707
    %v709 = vrot.slane %v702, %v708
    %v710 = vcombine.low %v648, %v649
    %v712 = vunpack.c.l.s4 1983009808
    %v713 = vunpack.c.0.s8 %v712
    %v714 = vlaneseq
    %v715 = vshrl.u32 %v714, 7
    %v716 = vsub.s32 %v713, %v715
    %v717 = vrot.slane %v710, %v716
    %v718 = vcombine.low %v640, %v647
    %v720 = vunpack.c.l.s4 1983009808
    %v721 = vunpack.c.0.s8 %v720
    %v722 = vlaneseq
    %v723 = vshrl.u32 %v722, 7
    %v724 = vsub.s32 %v721, %v723
    %v725 = vrot.slane %v718, %v724
    %v726 = vcombine.low %v650, %v651
    %v728 = vunpack.c.l.s4 1983009808
    %v729 = vunpack.c.0.s8 %v728
    %v730 = vlaneseq
    %v731 = vshrl.u32 %v730, 7
    %v732 = vsub.s32 %v729, %v731
    %v733 = vrot.slane %v726, %v732
    %v734 = vcombine.low %v709, %v717
    %v736 = vunpack.c.l.s4 1934713408
    %v737 = vunpack.c.0.s8 %v736
    %v738 = vlaneseq
    %v739 = vshrl.u32 %v738, 7
    %v740 = vsub.s32 %v737, %v739
    %v741 = vrot.slane %v734, %v740
    %v742 = vcombine.low %v725, %v733
    %v744 = vunpack.c.l.s4 1934713408
    %v745 = vunpack.c.0.s8 %v744
    %v746 = vlaneseq
    %v747 = vshrl.u32 %v746, 7
    %v748 = vsub.s32 %v745, %v747
    %v749 = vrot.slane %v742, %v748
    %v750 = vcombine.low %v741, %v749
    %v751 = vcombine.high %v741, %v749
    %v754 = vpack.i.b16 %v750, %v700
    %v755 = vshrl.u32 %v700, 16
    %v756 = vshrl.u32 %v750, 16
    %v757 = vpack.i.b16 %v756, %v755
    %v760 = vpack.i.b16 %v751, %v701
    %v761 = vshrl.u32 %v701, 16
    %v762 = vshrl.u32 %v751, 16
    %v763 = vpack.i.b16 %v762, %v761
    %766 = vrot.lane.b32.xlu0 %v485, 96
    %v767 = vpop.permute.xlu0 %766
    %768 = vrot.lane.b32.xlu0 %v486, 96
    %v769 = vpop.permute.xlu0 %768
    %770 = vrot.lane.b32.xlu0 %v485, 64
    %v771 = vpop.permute.xlu0 %770
    %772 = vrot.lane.b32.xlu0 %v486, 64
    %v773 = vpop.permute.xlu0 %772
    %774 = vrot.lane.b32.xlu0 %v485, 32
    %v775 = vpop.permute.xlu0 %774
    %776 = vrot.lane.b32.xlu0 %v486, 32
    %v777 = vpop.permute.xlu0 %776
    %v780 = vpack.i.b16 %v767, %v485
    %v782 = vshrl.u32 %v485, 16
    %v783 = vshrl.u32 %v767, 16
    %v784 = vpack.i.b16 %v783, %v782
    %v788 = vpack.i.b16 %v775, %v771
    %v790 = vshrl.u32 %v771, 16
    %v791 = vshrl.u32 %v775, 16
    %v792 = vpack.i.b16 %v791, %v790
    %v796 = vpack.i.b16 %v769, %v486
    %v798 = vshrl.u32 %v486, 16
    %v799 = vshrl.u32 %v769, 16
    %v800 = vpack.i.b16 %v799, %v798
    %v804 = vpack.i.b16 %v777, %v773
    %v806 = vshrl.u32 %v773, 16
    %v807 = vshrl.u32 %v777, 16
    %v808 = vpack.i.b16 %v807, %v806
    %v810 = vcombine.high %v780, %v515
    %v812 = vunpack.c.l.s4 1983009808
    %v813 = vunpack.c.0.s8 %v812
    %v814 = vlaneseq
    %v815 = vshrl.u32 %v814, 7
    %v816 = vsub.s32 %v813, %v815
    %v817 = vrot.slane %v780, %v816
    %v819 = vunpack.c.l.s4 1983009808
    %v820 = vunpack.c.0.s8 %v819
    %v821 = vlaneseq
    %v822 = vshrl.u32 %v821, 7
    %v823 = vsub.s32 %v820, %v822
    %v824 = vrot.slane %v810, %v823
    %v825 = vcombine.high %v788, %v515
    %v827 = vunpack.c.l.s4 1983009808
    %v828 = vunpack.c.0.s8 %v827
    %v829 = vlaneseq
    %v830 = vshrl.u32 %v829, 7
    %v831 = vsub.s32 %v828, %v830
    %v832 = vrot.slane %v788, %v831
    %v834 = vunpack.c.l.s4 1983009808
    %v835 = vunpack.c.0.s8 %v834
    %v836 = vlaneseq
    %v837 = vshrl.u32 %v836, 7
    %v838 = vsub.s32 %v835, %v837
    %v839 = vrot.slane %v825, %v838
    %v840 = vcombine.low %v817, %v832
    %v841 = vcombine.high %v817, %v832
    %v843 = vunpack.c.l.s4 1934713408
    %v844 = vunpack.c.0.s8 %v843
    %v845 = vlaneseq
    %v846 = vshrl.u32 %v845, 7
    %v847 = vsub.s32 %v844, %v846
    %v848 = vrot.slane %v840, %v847
    %v850 = vunpack.c.l.s4 1934713408
    %v851 = vunpack.c.0.s8 %v850
    %v852 = vlaneseq
    %v853 = vshrl.u32 %v852, 7
    %v854 = vsub.s32 %v851, %v853
    %v855 = vrot.slane %v841, %v854
    %v856 = vcombine.low %v824, %v839
    %v857 = vcombine.high %v824, %v839
    %v859 = vunpack.c.l.s4 1934713408
    %v860 = vunpack.c.0.s8 %v859
    %v861 = vlaneseq
    %v862 = vshrl.u32 %v861, 7
    %v863 = vsub.s32 %v860, %v862
    %v864 = vrot.slane %v856, %v863
    %v866 = vunpack.c.l.s4 1934713408
    %v867 = vunpack.c.0.s8 %v866
    %v868 = vlaneseq
    %v869 = vshrl.u32 %v868, 7
    %v870 = vsub.s32 %v867, %v869
    %v871 = vrot.slane %v857, %v870
    %v872 = vcombine.high %v848, 0
    %v873 = vcombine.high %v855, 0
    %v874 = vcombine.high %v864, 0
    %v875 = vcombine.high %v871, 0
    %v876 = vcombine.high %v784, %v518
    %v878 = vunpack.c.l.s4 1983009808
    %v879 = vunpack.c.0.s8 %v878
    %v880 = vlaneseq
    %v881 = vshrl.u32 %v880, 7
    %v882 = vsub.s32 %v879, %v881
    %v883 = vrot.slane %v784, %v882
    %v885 = vunpack.c.l.s4 1983009808
    %v886 = vunpack.c.0.s8 %v885
    %v887 = vlaneseq
    %v888 = vshrl.u32 %v887, 7
    %v889 = vsub.s32 %v886, %v888
    %v890 = vrot.slane %v876, %v889
    %v891 = vcombine.high %v792, %v518
    %v893 = vunpack.c.l.s4 1983009808
    %v894 = vunpack.c.0.s8 %v893
    %v895 = vlaneseq
    %v896 = vshrl.u32 %v895, 7
    %v897 = vsub.s32 %v894, %v896
    %v898 = vrot.slane %v792, %v897
    %v900 = vunpack.c.l.s4 1983009808
    %v901 = vunpack.c.0.s8 %v900
    %v902 = vlaneseq
    %v903 = vshrl.u32 %v902, 7
    %v904 = vsub.s32 %v901, %v903
    %v905 = vrot.slane %v891, %v904
    %v906 = vcombine.low %v883, %v898
    %v907 = vcombine.high %v883, %v898
    %v909 = vunpack.c.l.s4 1934713408
    %v910 = vunpack.c.0.s8 %v909
    %v911 = vlaneseq
    %v912 = vshrl.u32 %v911, 7
    %v913 = vsub.s32 %v910, %v912
    %v914 = vrot.slane %v906, %v913
    %v916 = vunpack.c.l.s4 1934713408
    %v917 = vunpack.c.0.s8 %v916
    %v918 = vlaneseq
    %v919 = vshrl.u32 %v918, 7
    %v920 = vsub.s32 %v917, %v919
    %v921 = vrot.slane %v907, %v920
    %v922 = vcombine.low %v890, %v905
    %v923 = vcombine.high %v890, %v905
    %v925 = vunpack.c.l.s4 1934713408
    %v926 = vunpack.c.0.s8 %v925
    %v927 = vlaneseq
    %v928 = vshrl.u32 %v927, 7
    %v929 = vsub.s32 %v926, %v928
    %v930 = vrot.slane %v922, %v929
    %v932 = vunpack.c.l.s4 1934713408
    %v933 = vunpack.c.0.s8 %v932
    %v934 = vlaneseq
    %v935 = vshrl.u32 %v934, 7
    %v936 = vsub.s32 %v933, %v935
    %v937 = vrot.slane %v923, %v936
    %v938 = vcombine.high %v914, 0
    %v939 = vcombine.high %v921, 0
    %v940 = vcombine.high %v930, 0
    %v941 = vcombine.high %v937, 0
    %v942 = vcombine.high %v796, %v515
    %v944 = vunpack.c.l.s4 1983009808
    %v945 = vunpack.c.0.s8 %v944
    %v946 = vlaneseq
    %v947 = vshrl.u32 %v946, 7
    %v948 = vsub.s32 %v945, %v947
    %v949 = vrot.slane %v796, %v948
    %v951 = vunpack.c.l.s4 1983009808
    %v952 = vunpack.c.0.s8 %v951
    %v953 = vlaneseq
    %v954 = vshrl.u32 %v953, 7
    %v955 = vsub.s32 %v952, %v954
    %v956 = vrot.slane %v942, %v955
    %v957 = vcombine.high %v804, %v515
    %v959 = vunpack.c.l.s4 1983009808
    %v960 = vunpack.c.0.s8 %v959
    %v961 = vlaneseq
    %v962 = vshrl.u32 %v961, 7
    %v963 = vsub.s32 %v960, %v962
    %v964 = vrot.slane %v804, %v963
    %v966 = vunpack.c.l.s4 1983009808
    %v967 = vunpack.c.0.s8 %v966
    %v968 = vlaneseq
    %v969 = vshrl.u32 %v968, 7
    %v970 = vsub.s32 %v967, %v969
    %v971 = vrot.slane %v957, %v970
    %v972 = vcombine.low %v949, %v964
    %v973 = vcombine.high %v949, %v964
    %v975 = vunpack.c.l.s4 1934713408
    %v976 = vunpack.c.0.s8 %v975
    %v977 = vlaneseq
    %v978 = vshrl.u32 %v977, 7
    %v979 = vsub.s32 %v976, %v978
    %v980 = vrot.slane %v972, %v979
    %v982 = vunpack.c.l.s4 1934713408
    %v983 = vunpack.c.0.s8 %v982
    %v984 = vlaneseq
    %v985 = vshrl.u32 %v984, 7
    %v986 = vsub.s32 %v983, %v985
    %v987 = vrot.slane %v973, %v986
    %v988 = vcombine.low %v956, %v971
    %v989 = vcombine.high %v956, %v971
    %v991 = vunpack.c.l.s4 1934713408
    %v992 = vunpack.c.0.s8 %v991
    %v993 = vlaneseq
    %v994 = vshrl.u32 %v993, 7
    %v995 = vsub.s32 %v992, %v994
    %v996 = vrot.slane %v988, %v995
    %v998 = vunpack.c.l.s4 1934713408
    %v999 = vunpack.c.0.s8 %v998
    %v1000 = vlaneseq
    %v1001 = vshrl.u32 %v1000, 7
    %v1002 = vsub.s32 %v999, %v1001
    %v1003 = vrot.slane %v989, %v1002
    %v1004 = vcombine.high %v980, 0
    %v1005 = vcombine.high %v987, 0
    %v1006 = vcombine.high %v996, 0
    %v1007 = vcombine.high %v1003, 0
    %v1008 = vcombine.high %v800, %v518
    %v1010 = vunpack.c.l.s4 1983009808
    %v1011 = vunpack.c.0.s8 %v1010
    %v1012 = vlaneseq
    %v1013 = vshrl.u32 %v1012, 7
    %v1014 = vsub.s32 %v1011, %v1013
    %v1015 = vrot.slane %v800, %v1014
    %v1017 = vunpack.c.l.s4 1983009808
    %v1018 = vunpack.c.0.s8 %v1017
    %v1019 = vlaneseq
    %v1020 = vshrl.u32 %v1019, 7
    %v1021 = vsub.s32 %v1018, %v1020
    %v1022 = vrot.slane %v1008, %v1021
    %v1023 = vcombine.high %v808, %v518
    %v1025 = vunpack.c.l.s4 1983009808
    %v1026 = vunpack.c.0.s8 %v1025
    %v1027 = vlaneseq
    %v1028 = vshrl.u32 %v1027, 7
    %v1029 = vsub.s32 %v1026, %v1028
    %v1030 = vrot.slane %v808, %v1029
    %v1032 = vunpack.c.l.s4 1983009808
    %v1033 = vunpack.c.0.s8 %v1032
    %v1034 = vlaneseq
    %v1035 = vshrl.u32 %v1034, 7
    %v1036 = vsub.s32 %v1033, %v1035
    %v1037 = vrot.slane %v1023, %v1036
    %v1038 = vcombine.low %v1015, %v1030
    %v1039 = vcombine.high %v1015, %v1030
    %v1041 = vunpack.c.l.s4 1934713408
    %v1042 = vunpack.c.0.s8 %v1041
    %v1043 = vlaneseq
    %v1044 = vshrl.u32 %v1043, 7
    %v1045 = vsub.s32 %v1042, %v1044
    %v1046 = vrot.slane %v1038, %v1045
    %v1048 = vunpack.c.l.s4 1934713408
    %v1049 = vunpack.c.0.s8 %v1048
    %v1050 = vlaneseq
    %v1051 = vshrl.u32 %v1050, 7
    %v1052 = vsub.s32 %v1049, %v1051
    %v1053 = vrot.slane %v1039, %v1052
    %v1054 = vcombine.low %v1022, %v1037
    %v1055 = vcombine.high %v1022, %v1037
    %v1057 = vunpack.c.l.s4 1934713408
    %v1058 = vunpack.c.0.s8 %v1057
    %v1059 = vlaneseq
    %v1060 = vshrl.u32 %v1059, 7
    %v1061 = vsub.s32 %v1058, %v1060
    %v1062 = vrot.slane %v1054, %v1061
    %v1064 = vunpack.c.l.s4 1934713408
    %v1065 = vunpack.c.0.s8 %v1064
    %v1066 = vlaneseq
    %v1067 = vshrl.u32 %v1066, 7
    %v1068 = vsub.s32 %v1065, %v1067
    %v1069 = vrot.slane %v1055, %v1068
    %v1070 = vcombine.high %v1046, 0
    %v1071 = vcombine.high %v1053, 0
    %v1072 = vcombine.high %v1062, 0
    %v1073 = vcombine.high %v1069, 0
    %v1074 = vcombine.low %v848, %v855
    %v1076 = vunpack.c.l.s4 1983009808
    %v1077 = vunpack.c.0.s8 %v1076
    %v1078 = vlaneseq
    %v1079 = vshrl.u32 %v1078, 7
    %v1080 = vsub.s32 %v1077, %v1079
    %v1081 = vrot.slane %v1074, %v1080
    %v1082 = vcombine.low %v872, %v873
    %v1084 = vunpack.c.l.s4 1983009808
    %v1085 = vunpack.c.0.s8 %v1084
    %v1086 = vlaneseq
    %v1087 = vshrl.u32 %v1086, 7
    %v1088 = vsub.s32 %v1085, %v1087
    %v1089 = vrot.slane %v1082, %v1088
    %v1090 = vcombine.low %v864, %v871
    %v1092 = vunpack.c.l.s4 1983009808
    %v1093 = vunpack.c.0.s8 %v1092
    %v1094 = vlaneseq
    %v1095 = vshrl.u32 %v1094, 7
    %v1096 = vsub.s32 %v1093, %v1095
    %v1097 = vrot.slane %v1090, %v1096
    %v1098 = vcombine.low %v874, %v875
    %v1100 = vunpack.c.l.s4 1983009808
    %v1101 = vunpack.c.0.s8 %v1100
    %v1102 = vlaneseq
    %v1103 = vshrl.u32 %v1102, 7
    %v1104 = vsub.s32 %v1101, %v1103
    %v1105 = vrot.slane %v1098, %v1104
    %v1106 = vcombine.low %v1081, %v1089
    %v1108 = vunpack.c.l.s4 1934713408
    %v1109 = vunpack.c.0.s8 %v1108
    %v1110 = vlaneseq
    %v1111 = vshrl.u32 %v1110, 7
    %v1112 = vsub.s32 %v1109, %v1111
    %v1113 = vrot.slane %v1106, %v1112
    %v1114 = vcombine.low %v1097, %v1105
    %v1116 = vunpack.c.l.s4 1934713408
    %v1117 = vunpack.c.0.s8 %v1116
    %v1118 = vlaneseq
    %v1119 = vshrl.u32 %v1118, 7
    %v1120 = vsub.s32 %v1117, %v1119
    %v1121 = vrot.slane %v1114, %v1120
    %v1122 = vcombine.low %v1113, %v1121
    %v1123 = vcombine.high %v1113, %v1121
    %v1124 = vcombine.low %v914, %v921
    %v1126 = vunpack.c.l.s4 1983009808
    %v1127 = vunpack.c.0.s8 %v1126
    %v1128 = vlaneseq
    %v1129 = vshrl.u32 %v1128, 7
    %v1130 = vsub.s32 %v1127, %v1129
    %v1131 = vrot.slane %v1124, %v1130
    %v1132 = vcombine.low %v938, %v939
    %v1134 = vunpack.c.l.s4 1983009808
    %v1135 = vunpack.c.0.s8 %v1134
    %v1136 = vlaneseq
    %v1137 = vshrl.u32 %v1136, 7
    %v1138 = vsub.s32 %v1135, %v1137
    %v1139 = vrot.slane %v1132, %v1138
    %v1140 = vcombine.low %v930, %v937
    %v1142 = vunpack.c.l.s4 1983009808
    %v1143 = vunpack.c.0.s8 %v1142
    %v1144 = vlaneseq
    %v1145 = vshrl.u32 %v1144, 7
    %v1146 = vsub.s32 %v1143, %v1145
    %v1147 = vrot.slane %v1140, %v1146
    %v1148 = vcombine.low %v940, %v941
    %v1150 = vunpack.c.l.s4 1983009808
    %v1151 = vunpack.c.0.s8 %v1150
    %v1152 = vlaneseq
    %v1153 = vshrl.u32 %v1152, 7
    %v1154 = vsub.s32 %v1151, %v1153
    %v1155 = vrot.slane %v1148, %v1154
    %v1156 = vcombine.low %v1131, %v1139
    %v1158 = vunpack.c.l.s4 1934713408
    %v1159 = vunpack.c.0.s8 %v1158
    %v1160 = vlaneseq
    %v1161 = vshrl.u32 %v1160, 7
    %v1162 = vsub.s32 %v1159, %v1161
    %v1163 = vrot.slane %v1156, %v1162
    %v1164 = vcombine.low %v1147, %v1155
    %v1166 = vunpack.c.l.s4 1934713408
    %v1167 = vunpack.c.0.s8 %v1166
    %v1168 = vlaneseq
    %v1169 = vshrl.u32 %v1168, 7
    %v1170 = vsub.s32 %v1167, %v1169
    %v1171 = vrot.slane %v1164, %v1170
    %v1172 = vcombine.low %v1163, %v1171
    %v1173 = vcombine.high %v1163, %v1171
    %v1174 = vcombine.low %v980, %v987
    %v1176 = vunpack.c.l.s4 1983009808
    %v1177 = vunpack.c.0.s8 %v1176
    %v1178 = vlaneseq
    %v1179 = vshrl.u32 %v1178, 7
    %v1180 = vsub.s32 %v1177, %v1179
    %v1181 = vrot.slane %v1174, %v1180
    %v1182 = vcombine.low %v1004, %v1005
    %v1184 = vunpack.c.l.s4 1983009808
    %v1185 = vunpack.c.0.s8 %v1184
    %v1186 = vlaneseq
    %v1187 = vshrl.u32 %v1186, 7
    %v1188 = vsub.s32 %v1185, %v1187
    %v1189 = vrot.slane %v1182, %v1188
    %v1190 = vcombine.low %v996, %v1003
    %v1192 = vunpack.c.l.s4 1983009808
    %v1193 = vunpack.c.0.s8 %v1192
    %v1194 = vlaneseq
    %v1195 = vshrl.u32 %v1194, 7
    %v1196 = vsub.s32 %v1193, %v1195
    %v1197 = vrot.slane %v1190, %v1196
    %v1198 = vcombine.low %v1006, %v1007
    %v1200 = vunpack.c.l.s4 1983009808
    %v1201 = vunpack.c.0.s8 %v1200
    %v1202 = vlaneseq
    %v1203 = vshrl.u32 %v1202, 7
    %v1204 = vsub.s32 %v1201, %v1203
    %v1205 = vrot.slane %v1198, %v1204
    %v1206 = vcombine.low %v1181, %v1189
    %v1208 = vunpack.c.l.s4 1934713408
    %v1209 = vunpack.c.0.s8 %v1208
    %v1210 = vlaneseq
    %v1211 = vshrl.u32 %v1210, 7
    %v1212 = vsub.s32 %v1209, %v1211
    %v1213 = vrot.slane %v1206, %v1212
    %v1214 = vcombine.low %v1197, %v1205
    %v1216 = vunpack.c.l.s4 1934713408
    %v1217 = vunpack.c.0.s8 %v1216
    %v1218 = vlaneseq
    %v1219 = vshrl.u32 %v1218, 7
    %v1220 = vsub.s32 %v1217, %v1219
    %v1221 = vrot.slane %v1214, %v1220
    %v1222 = vcombine.low %v1213, %v1221
    %v1223 = vcombine.high %v1213, %v1221
    %v1224 = vcombine.low %v1046, %v1053
    %v1226 = vunpack.c.l.s4 1983009808
    %v1227 = vunpack.c.0.s8 %v1226
    %v1228 = vlaneseq
    %v1229 = vshrl.u32 %v1228, 7
    %v1230 = vsub.s32 %v1227, %v1229
    %v1231 = vrot.slane %v1224, %v1230
    %v1232 = vcombine.low %v1070, %v1071
    %v1234 = vunpack.c.l.s4 1983009808
    %v1235 = vunpack.c.0.s8 %v1234
    %v1236 = vlaneseq
    %v1237 = vshrl.u32 %v1236, 7
    %v1238 = vsub.s32 %v1235, %v1237
    %v1239 = vrot.slane %v1232, %v1238
    %v1240 = vcombine.low %v1062, %v1069
    %v1242 = vunpack.c.l.s4 1983009808
    %v1243 = vunpack.c.0.s8 %v1242
    %v1244 = vlaneseq
    %v1245 = vshrl.u32 %v1244, 7
    %v1246 = vsub.s32 %v1243, %v1245
    %v1247 = vrot.slane %v1240, %v1246
    %v1248 = vcombine.low %v1072, %v1073
    %v1250 = vunpack.c.l.s4 1983009808
    %v1251 = vunpack.c.0.s8 %v1250
    %v1252 = vlaneseq
    %v1253 = vshrl.u32 %v1252, 7
    %v1254 = vsub.s32 %v1251, %v1253
    %v1255 = vrot.slane %v1248, %v1254
    %v1256 = vcombine.low %v1231, %v1239
    %v1258 = vunpack.c.l.s4 1934713408
    %v1259 = vunpack.c.0.s8 %v1258
    %v1260 = vlaneseq
    %v1261 = vshrl.u32 %v1260, 7
    %v1262 = vsub.s32 %v1259, %v1261
    %v1263 = vrot.slane %v1256, %v1262
    %v1264 = vcombine.low %v1247, %v1255
    %v1266 = vunpack.c.l.s4 1934713408
    %v1267 = vunpack.c.0.s8 %v1266
    %v1268 = vlaneseq
    %v1269 = vshrl.u32 %v1268, 7
    %v1270 = vsub.s32 %v1267, %v1269
    %v1271 = vrot.slane %v1264, %v1270
    %v1272 = vcombine.low %v1263, %v1271
    %v1273 = vcombine.high %v1263, %v1271
    %v1276 = vpack.i.b16 %v1172, %v1122
    %v1277 = vshrl.u32 %v1122, 16
    %v1278 = vshrl.u32 %v1172, 16
    %v1279 = vpack.i.b16 %v1278, %v1277
    %v1282 = vpack.i.b16 %v1173, %v1123
    %v1283 = vshrl.u32 %v1123, 16
    %v1284 = vshrl.u32 %v1173, 16
    %v1285 = vpack.i.b16 %v1284, %v1283
    %v1288 = vpack.i.b16 %v1272, %v1222
    %v1289 = vshrl.u32 %v1222, 16
    %v1290 = vshrl.u32 %v1272, 16
    %v1291 = vpack.i.b16 %v1290, %v1289
    %v1294 = vpack.i.b16 %v1273, %v1223
    %v1295 = vshrl.u32 %v1223, 16
    %v1296 = vshrl.u32 %v1273, 16
    %v1297 = vpack.i.b16 %v1296, %v1295
    %1300 = vrot.lane.b32.xlu0 %v487, 96
    %v1301 = vpop.permute.xlu0 %1300
    %1302 = vrot.lane.b32.xlu0 %v488, 96
    %v1303 = vpop.permute.xlu0 %1302
    %1304 = vrot.lane.b32.xlu0 %v487, 64
    %v1305 = vpop.permute.xlu0 %1304
    %1306 = vrot.lane.b32.xlu0 %v488, 64
    %v1307 = vpop.permute.xlu0 %1306
    %1308 = vrot.lane.b32.xlu0 %v487, 32
    %v1309 = vpop.permute.xlu0 %1308
    %1310 = vrot.lane.b32.xlu0 %v488, 32
    %v1311 = vpop.permute.xlu0 %1310
    %v1314 = vpack.i.b16 %v1301, %v487
    %v1316 = vshrl.u32 %v487, 16
    %v1317 = vshrl.u32 %v1301, 16
    %v1318 = vpack.i.b16 %v1317, %v1316
    %v1322 = vpack.i.b16 %v1309, %v1305
    %v1324 = vshrl.u32 %v1305, 16
    %v1325 = vshrl.u32 %v1309, 16
    %v1326 = vpack.i.b16 %v1325, %v1324
    %v1330 = vpack.i.b16 %v1303, %v488
    %v1332 = vshrl.u32 %v488, 16
    %v1333 = vshrl.u32 %v1303, 16
    %v1334 = vpack.i.b16 %v1333, %v1332
    %v1338 = vpack.i.b16 %v1311, %v1307
    %v1340 = vshrl.u32 %v1307, 16
    %v1341 = vshrl.u32 %v1311, 16
    %v1342 = vpack.i.b16 %v1341, %v1340
    %v1344 = vcombine.high %v1314, %v515
    %v1346 = vunpack.c.l.s4 1983009808
    %v1347 = vunpack.c.0.s8 %v1346
    %v1348 = vlaneseq
    %v1349 = vshrl.u32 %v1348, 7
    %v1350 = vsub.s32 %v1347, %v1349
    %v1351 = vrot.slane %v1314, %v1350
    %v1353 = vunpack.c.l.s4 1983009808
    %v1354 = vunpack.c.0.s8 %v1353
    %v1355 = vlaneseq
    %v1356 = vshrl.u32 %v1355, 7
    %v1357 = vsub.s32 %v1354, %v1356
    %v1358 = vrot.slane %v1344, %v1357
    %v1359 = vcombine.high %v1322, %v515
    %v1361 = vunpack.c.l.s4 1983009808
    %v1362 = vunpack.c.0.s8 %v1361
    %v1363 = vlaneseq
    %v1364 = vshrl.u32 %v1363, 7
    %v1365 = vsub.s32 %v1362, %v1364
    %v1366 = vrot.slane %v1322, %v1365
    %v1368 = vunpack.c.l.s4 1983009808
    %v1369 = vunpack.c.0.s8 %v1368
    %v1370 = vlaneseq
    %v1371 = vshrl.u32 %v1370, 7
    %v1372 = vsub.s32 %v1369, %v1371
    %v1373 = vrot.slane %v1359, %v1372
    %v1374 = vcombine.low %v1351, %v1366
    %v1375 = vcombine.high %v1351, %v1366
    %v1377 = vunpack.c.l.s4 1934713408
    %v1378 = vunpack.c.0.s8 %v1377
    %v1379 = vlaneseq
    %v1380 = vshrl.u32 %v1379, 7
    %v1381 = vsub.s32 %v1378, %v1380
    %v1382 = vrot.slane %v1374, %v1381
    %v1384 = vunpack.c.l.s4 1934713408
    %v1385 = vunpack.c.0.s8 %v1384
    %v1386 = vlaneseq
    %v1387 = vshrl.u32 %v1386, 7
    %v1388 = vsub.s32 %v1385, %v1387
    %v1389 = vrot.slane %v1375, %v1388
    %v1390 = vcombine.low %v1358, %v1373
    %v1391 = vcombine.high %v1358, %v1373
    %v1393 = vunpack.c.l.s4 1934713408
    %v1394 = vunpack.c.0.s8 %v1393
    %v1395 = vlaneseq
    %v1396 = vshrl.u32 %v1395, 7
    %v1397 = vsub.s32 %v1394, %v1396
    %v1398 = vrot.slane %v1390, %v1397
    %v1400 = vunpack.c.l.s4 1934713408
    %v1401 = vunpack.c.0.s8 %v1400
    %v1402 = vlaneseq
    %v1403 = vshrl.u32 %v1402, 7
    %v1404 = vsub.s32 %v1401, %v1403
    %v1405 = vrot.slane %v1391, %v1404
    %v1406 = vcombine.high %v1382, 0
    %v1407 = vcombine.high %v1389, 0
    %v1408 = vcombine.high %v1398, 0
    %v1409 = vcombine.high %v1405, 0
    %v1410 = vcombine.high %v1318, %v518
    %v1412 = vunpack.c.l.s4 1983009808
    %v1413 = vunpack.c.0.s8 %v1412
    %v1414 = vlaneseq
    %v1415 = vshrl.u32 %v1414, 7
    %v1416 = vsub.s32 %v1413, %v1415
    %v1417 = vrot.slane %v1318, %v1416
    %v1419 = vunpack.c.l.s4 1983009808
    %v1420 = vunpack.c.0.s8 %v1419
    %v1421 = vlaneseq
    %v1422 = vshrl.u32 %v1421, 7
    %v1423 = vsub.s32 %v1420, %v1422
    %v1424 = vrot.slane %v1410, %v1423
    %v1425 = vcombine.high %v1326, %v518
    %v1427 = vunpack.c.l.s4 1983009808
    %v1428 = vunpack.c.0.s8 %v1427
    %v1429 = vlaneseq
    %v1430 = vshrl.u32 %v1429, 7
    %v1431 = vsub.s32 %v1428, %v1430
    %v1432 = vrot.slane %v1326, %v1431
    %v1434 = vunpack.c.l.s4 1983009808
    %v1435 = vunpack.c.0.s8 %v1434
    %v1436 = vlaneseq
    %v1437 = vshrl.u32 %v1436, 7
    %v1438 = vsub.s32 %v1435, %v1437
    %v1439 = vrot.slane %v1425, %v1438
    %v1440 = vcombine.low %v1417, %v1432
    %v1441 = vcombine.high %v1417, %v1432
    %v1443 = vunpack.c.l.s4 1934713408
    %v1444 = vunpack.c.0.s8 %v1443
    %v1445 = vlaneseq
    %v1446 = vshrl.u32 %v1445, 7
    %v1447 = vsub.s32 %v1444, %v1446
    %v1448 = vrot.slane %v1440, %v1447
    %v1450 = vunpack.c.l.s4 1934713408
    %v1451 = vunpack.c.0.s8 %v1450
    %v1452 = vlaneseq
    %v1453 = vshrl.u32 %v1452, 7
    %v1454 = vsub.s32 %v1451, %v1453
    %v1455 = vrot.slane %v1441, %v1454
    %v1456 = vcombine.low %v1424, %v1439
    %v1457 = vcombine.high %v1424, %v1439
    %v1459 = vunpack.c.l.s4 1934713408
    %v1460 = vunpack.c.0.s8 %v1459
    %v1461 = vlaneseq
    %v1462 = vshrl.u32 %v1461, 7
    %v1463 = vsub.s32 %v1460, %v1462
    %v1464 = vrot.slane %v1456, %v1463
    %v1466 = vunpack.c.l.s4 1934713408
    %v1467 = vunpack.c.0.s8 %v1466
    %v1468 = vlaneseq
    %v1469 = vshrl.u32 %v1468, 7
    %v1470 = vsub.s32 %v1467, %v1469
    %v1471 = vrot.slane %v1457, %v1470
    %v1472 = vcombine.high %v1448, 0
    %v1473 = vcombine.high %v1455, 0
    %v1474 = vcombine.high %v1464, 0
    %v1475 = vcombine.high %v1471, 0
    %v1476 = vcombine.high %v1330, %v515
    %v1478 = vunpack.c.l.s4 1983009808
    %v1479 = vunpack.c.0.s8 %v1478
    %v1480 = vlaneseq
    %v1481 = vshrl.u32 %v1480, 7
    %v1482 = vsub.s32 %v1479, %v1481
    %v1483 = vrot.slane %v1330, %v1482
    %v1485 = vunpack.c.l.s4 1983009808
    %v1486 = vunpack.c.0.s8 %v1485
    %v1487 = vlaneseq
    %v1488 = vshrl.u32 %v1487, 7
    %v1489 = vsub.s32 %v1486, %v1488
    %v1490 = vrot.slane %v1476, %v1489
    %v1491 = vcombine.high %v1338, %v515
    %v1493 = vunpack.c.l.s4 1983009808
    %v1494 = vunpack.c.0.s8 %v1493
    %v1495 = vlaneseq
    %v1496 = vshrl.u32 %v1495, 7
    %v1497 = vsub.s32 %v1494, %v1496
    %v1498 = vrot.slane %v1338, %v1497
    %v1500 = vunpack.c.l.s4 1983009808
    %v1501 = vunpack.c.0.s8 %v1500
    %v1502 = vlaneseq
    %v1503 = vshrl.u32 %v1502, 7
    %v1504 = vsub.s32 %v1501, %v1503
    %v1505 = vrot.slane %v1491, %v1504
    %v1506 = vcombine.low %v1483, %v1498
    %v1507 = vcombine.high %v1483, %v1498
    %v1509 = vunpack.c.l.s4 1934713408
    %v1510 = vunpack.c.0.s8 %v1509
    %v1511 = vlaneseq
    %v1512 = vshrl.u32 %v1511, 7
    %v1513 = vsub.s32 %v1510, %v1512
    %v1514 = vrot.slane %v1506, %v1513
    %v1516 = vunpack.c.l.s4 1934713408
    %v1517 = vunpack.c.0.s8 %v1516
    %v1518 = vlaneseq
    %v1519 = vshrl.u32 %v1518, 7
    %v1520 = vsub.s32 %v1517, %v1519
    %v1521 = vrot.slane %v1507, %v1520
    %v1522 = vcombine.low %v1490, %v1505
    %v1523 = vcombine.high %v1490, %v1505
    %v1525 = vunpack.c.l.s4 1934713408
    %v1526 = vunpack.c.0.s8 %v1525
    %v1527 = vlaneseq
    %v1528 = vshrl.u32 %v1527, 7
    %v1529 = vsub.s32 %v1526, %v1528
    %v1530 = vrot.slane %v1522, %v1529
    %v1532 = vunpack.c.l.s4 1934713408
    %v1533 = vunpack.c.0.s8 %v1532
    %v1534 = vlaneseq
    %v1535 = vshrl.u32 %v1534, 7
    %v1536 = vsub.s32 %v1533, %v1535
    %v1537 = vrot.slane %v1523, %v1536
    %v1538 = vcombine.high %v1514, 0
    %v1539 = vcombine.high %v1521, 0
    %v1540 = vcombine.high %v1530, 0
    %v1541 = vcombine.high %v1537, 0
    %v1542 = vcombine.high %v1334, %v518
    %v1544 = vunpack.c.l.s4 1983009808
    %v1545 = vunpack.c.0.s8 %v1544
    %v1546 = vlaneseq
    %v1547 = vshrl.u32 %v1546, 7
    %v1548 = vsub.s32 %v1545, %v1547
    %v1549 = vrot.slane %v1334, %v1548
    %v1551 = vunpack.c.l.s4 1983009808
    %v1552 = vunpack.c.0.s8 %v1551
    %v1553 = vlaneseq
    %v1554 = vshrl.u32 %v1553, 7
    %v1555 = vsub.s32 %v1552, %v1554
    %v1556 = vrot.slane %v1542, %v1555
    %v1557 = vcombine.high %v1342, %v518
    %v1559 = vunpack.c.l.s4 1983009808
    %v1560 = vunpack.c.0.s8 %v1559
    %v1561 = vlaneseq
    %v1562 = vshrl.u32 %v1561, 7
    %v1563 = vsub.s32 %v1560, %v1562
    %v1564 = vrot.slane %v1342, %v1563
    %v1566 = vunpack.c.l.s4 1983009808
    %v1567 = vunpack.c.0.s8 %v1566
    %v1568 = vlaneseq
    %v1569 = vshrl.u32 %v1568, 7
    %v1570 = vsub.s32 %v1567, %v1569
    %v1571 = vrot.slane %v1557, %v1570
    %v1572 = vcombine.low %v1549, %v1564
    %v1573 = vcombine.high %v1549, %v1564
    %v1575 = vunpack.c.l.s4 1934713408
    %v1576 = vunpack.c.0.s8 %v1575
    %v1577 = vlaneseq
    %v1578 = vshrl.u32 %v1577, 7
    %v1579 = vsub.s32 %v1576, %v1578
    %v1580 = vrot.slane %v1572, %v1579
    %v1582 = vunpack.c.l.s4 1934713408
    %v1583 = vunpack.c.0.s8 %v1582
    %v1584 = vlaneseq
    %v1585 = vshrl.u32 %v1584, 7
    %v1586 = vsub.s32 %v1583, %v1585
    %v1587 = vrot.slane %v1573, %v1586
    %v1588 = vcombine.low %v1556, %v1571
    %v1589 = vcombine.high %v1556, %v1571
    %v1591 = vunpack.c.l.s4 1934713408
    %v1592 = vunpack.c.0.s8 %v1591
    %v1593 = vlaneseq
    %v1594 = vshrl.u32 %v1593, 7
    %v1595 = vsub.s32 %v1592, %v1594
    %v1596 = vrot.slane %v1588, %v1595
    %v1598 = vunpack.c.l.s4 1934713408
    %v1599 = vunpack.c.0.s8 %v1598
    %v1600 = vlaneseq
    %v1601 = vshrl.u32 %v1600, 7
    %v1602 = vsub.s32 %v1599, %v1601
    %v1603 = vrot.slane %v1589, %v1602
    %v1604 = vcombine.high %v1580, 0
    %v1605 = vcombine.high %v1587, 0
    %v1606 = vcombine.high %v1596, 0
    %v1607 = vcombine.high %v1603, 0
    %v1608 = vcombine.low %v1382, %v1389
    %v1610 = vunpack.c.l.s4 1983009808
    %v1611 = vunpack.c.0.s8 %v1610
    %v1612 = vlaneseq
    %v1613 = vshrl.u32 %v1612, 7
    %v1614 = vsub.s32 %v1611, %v1613
    %v1615 = vrot.slane %v1608, %v1614
    %v1616 = vcombine.low %v1406, %v1407
    %v1618 = vunpack.c.l.s4 1983009808
    %v1619 = vunpack.c.0.s8 %v1618
    %v1620 = vlaneseq
    %v1621 = vshrl.u32 %v1620, 7
    %v1622 = vsub.s32 %v1619, %v1621
    %v1623 = vrot.slane %v1616, %v1622
    %v1624 = vcombine.low %v1398, %v1405
    %v1626 = vunpack.c.l.s4 1983009808
    %v1627 = vunpack.c.0.s8 %v1626
    %v1628 = vlaneseq
    %v1629 = vshrl.u32 %v1628, 7
    %v1630 = vsub.s32 %v1627, %v1629
    %v1631 = vrot.slane %v1624, %v1630
    %v1632 = vcombine.low %v1408, %v1409
    %v1634 = vunpack.c.l.s4 1983009808
    %v1635 = vunpack.c.0.s8 %v1634
    %v1636 = vlaneseq
    %v1637 = vshrl.u32 %v1636, 7
    %v1638 = vsub.s32 %v1635, %v1637
    %v1639 = vrot.slane %v1632, %v1638
    %v1640 = vcombine.low %v1615, %v1623
    %v1642 = vunpack.c.l.s4 1934713408
    %v1643 = vunpack.c.0.s8 %v1642
    %v1644 = vlaneseq
    %v1645 = vshrl.u32 %v1644, 7
    %v1646 = vsub.s32 %v1643, %v1645
    %v1647 = vrot.slane %v1640, %v1646
    %v1648 = vcombine.low %v1631, %v1639
    %v1650 = vunpack.c.l.s4 1934713408
    %v1651 = vunpack.c.0.s8 %v1650
    %v1652 = vlaneseq
    %v1653 = vshrl.u32 %v1652, 7
    %v1654 = vsub.s32 %v1651, %v1653
    %v1655 = vrot.slane %v1648, %v1654
    %v1656 = vcombine.low %v1647, %v1655
    %v1657 = vcombine.high %v1647, %v1655
    %v1658 = vcombine.low %v1448, %v1455
    %v1660 = vunpack.c.l.s4 1983009808
    %v1661 = vunpack.c.0.s8 %v1660
    %v1662 = vlaneseq
    %v1663 = vshrl.u32 %v1662, 7
    %v1664 = vsub.s32 %v1661, %v1663
    %v1665 = vrot.slane %v1658, %v1664
    %v1666 = vcombine.low %v1472, %v1473
    %v1668 = vunpack.c.l.s4 1983009808
    %v1669 = vunpack.c.0.s8 %v1668
    %v1670 = vlaneseq
    %v1671 = vshrl.u32 %v1670, 7
    %v1672 = vsub.s32 %v1669, %v1671
    %v1673 = vrot.slane %v1666, %v1672
    %v1674 = vcombine.low %v1464, %v1471
    %v1676 = vunpack.c.l.s4 1983009808
    %v1677 = vunpack.c.0.s8 %v1676
    %v1678 = vlaneseq
    %v1679 = vshrl.u32 %v1678, 7
    %v1680 = vsub.s32 %v1677, %v1679
    %v1681 = vrot.slane %v1674, %v1680
    %v1682 = vcombine.low %v1474, %v1475
    %v1684 = vunpack.c.l.s4 1983009808
    %v1685 = vunpack.c.0.s8 %v1684
    %v1686 = vlaneseq
    %v1687 = vshrl.u32 %v1686, 7
    %v1688 = vsub.s32 %v1685, %v1687
    %v1689 = vrot.slane %v1682, %v1688
    %v1690 = vcombine.low %v1665, %v1673
    %v1692 = vunpack.c.l.s4 1934713408
    %v1693 = vunpack.c.0.s8 %v1692
    %v1694 = vlaneseq
    %v1695 = vshrl.u32 %v1694, 7
    %v1696 = vsub.s32 %v1693, %v1695
    %v1697 = vrot.slane %v1690, %v1696
    %v1698 = vcombine.low %v1681, %v1689
    %v1700 = vunpack.c.l.s4 1934713408
    %v1701 = vunpack.c.0.s8 %v1700
    %v1702 = vlaneseq
    %v1703 = vshrl.u32 %v1702, 7
    %v1704 = vsub.s32 %v1701, %v1703
    %v1705 = vrot.slane %v1698, %v1704
    %v1706 = vcombine.low %v1697, %v1705
    %v1707 = vcombine.high %v1697, %v1705
    %v1708 = vcombine.low %v1514, %v1521
    %v1710 = vunpack.c.l.s4 1983009808
    %v1711 = vunpack.c.0.s8 %v1710
    %v1712 = vlaneseq
    %v1713 = vshrl.u32 %v1712, 7
    %v1714 = vsub.s32 %v1711, %v1713
    %v1715 = vrot.slane %v1708, %v1714
    %v1716 = vcombine.low %v1538, %v1539
    %v1718 = vunpack.c.l.s4 1983009808
    %v1719 = vunpack.c.0.s8 %v1718
    %v1720 = vlaneseq
    %v1721 = vshrl.u32 %v1720, 7
    %v1722 = vsub.s32 %v1719, %v1721
    %v1723 = vrot.slane %v1716, %v1722
    %v1724 = vcombine.low %v1530, %v1537
    %v1726 = vunpack.c.l.s4 1983009808
    %v1727 = vunpack.c.0.s8 %v1726
    %v1728 = vlaneseq
    %v1729 = vshrl.u32 %v1728, 7
    %v1730 = vsub.s32 %v1727, %v1729
    %v1731 = vrot.slane %v1724, %v1730
    %v1732 = vcombine.low %v1540, %v1541
    %v1734 = vunpack.c.l.s4 1983009808
    %v1735 = vunpack.c.0.s8 %v1734
    %v1736 = vlaneseq
    %v1737 = vshrl.u32 %v1736, 7
    %v1738 = vsub.s32 %v1735, %v1737
    %v1739 = vrot.slane %v1732, %v1738
    %v1740 = vcombine.low %v1715, %v1723
    %v1742 = vunpack.c.l.s4 1934713408
    %v1743 = vunpack.c.0.s8 %v1742
    %v1744 = vlaneseq
    %v1745 = vshrl.u32 %v1744, 7
    %v1746 = vsub.s32 %v1743, %v1745
    %v1747 = vrot.slane %v1740, %v1746
    %v1748 = vcombine.low %v1731, %v1739
    %v1750 = vunpack.c.l.s4 1934713408
    %v1751 = vunpack.c.0.s8 %v1750
    %v1752 = vlaneseq
    %v1753 = vshrl.u32 %v1752, 7
    %v1754 = vsub.s32 %v1751, %v1753
    %v1755 = vrot.slane %v1748, %v1754
    %v1756 = vcombine.low %v1747, %v1755
    %v1757 = vcombine.high %v1747, %v1755
    %v1758 = vcombine.low %v1580, %v1587
    %v1760 = vunpack.c.l.s4 1983009808
    %v1761 = vunpack.c.0.s8 %v1760
    %v1762 = vlaneseq
    %v1763 = vshrl.u32 %v1762, 7
    %v1764 = vsub.s32 %v1761, %v1763
    %v1765 = vrot.slane %v1758, %v1764
    %v1766 = vcombine.low %v1604, %v1605
    %v1768 = vunpack.c.l.s4 1983009808
    %v1769 = vunpack.c.0.s8 %v1768
    %v1770 = vlaneseq
    %v1771 = vshrl.u32 %v1770, 7
    %v1772 = vsub.s32 %v1769, %v1771
    %v1773 = vrot.slane %v1766, %v1772
    %v1774 = vcombine.low %v1596, %v1603
    %v1776 = vunpack.c.l.s4 1983009808
    %v1777 = vunpack.c.0.s8 %v1776
    %v1778 = vlaneseq
    %v1779 = vshrl.u32 %v1778, 7
    %v1780 = vsub.s32 %v1777, %v1779
    %v1781 = vrot.slane %v1774, %v1780
    %v1782 = vcombine.low %v1606, %v1607
    %v1784 = vunpack.c.l.s4 1983009808
    %v1785 = vunpack.c.0.s8 %v1784
    %v1786 = vlaneseq
    %v1787 = vshrl.u32 %v1786, 7
    %v1788 = vsub.s32 %v1785, %v1787
    %v1789 = vrot.slane %v1782, %v1788
    %v1790 = vcombine.low %v1765, %v1773
    %v1792 = vunpack.c.l.s4 1934713408
    %v1793 = vunpack.c.0.s8 %v1792
    %v1794 = vlaneseq
    %v1795 = vshrl.u32 %v1794, 7
    %v1796 = vsub.s32 %v1793, %v1795
    %v1797 = vrot.slane %v1790, %v1796
    %v1798 = vcombine.low %v1781, %v1789
    %v1800 = vunpack.c.l.s4 1934713408
    %v1801 = vunpack.c.0.s8 %v1800
    %v1802 = vlaneseq
    %v1803 = vshrl.u32 %v1802, 7
    %v1804 = vsub.s32 %v1801, %v1803
    %v1805 = vrot.slane %v1798, %v1804
    %v1806 = vcombine.low %v1797, %v1805
    %v1807 = vcombine.high %v1797, %v1805
    %v1810 = vpack.i.b16 %v1706, %v1656
    %v1812 = vshrl.u32 %v1656, 16
    %v1813 = vshrl.u32 %v1706, 16
    %v1814 = vpack.i.b16 %v1813, %v1812
    %v1818 = vpack.i.b16 %v1707, %v1657
    %v1820 = vshrl.u32 %v1657, 16
    %v1821 = vshrl.u32 %v1707, 16
    %v1822 = vpack.i.b16 %v1821, %v1820
    %v1826 = vpack.i.b16 %v1806, %v1756
    %v1828 = vshrl.u32 %v1756, 16
    %v1829 = vshrl.u32 %v1806, 16
    %v1830 = vpack.i.b16 %v1829, %v1828
    %v1834 = vpack.i.b16 %v1807, %v1757
    %v1836 = vshrl.u32 %v1757, 16
    %v1837 = vshrl.u32 %v1807, 16
    %v1838 = vpack.i.b16 %v1837, %v1836
    %v1841 = vsel %vm424, %v754, 0
    %v1844 = vsel %vm424, %v1276, 0
    %v1847 = vsel %vm424, %v1288, 0
    %1849 = vmatprep.subr.bf16.mxu0 0
    %1850 = vmatpush1.bf16.xpose.msra.mxu0 %v1844
    %1851 = vmatprep.subr.bf16.mxu0 0
    %1852 = vmatpush1.bf16.xpose.msra.mxu0 %v1847
    %1853 = vmatprep.subr.bf16.mxu0 0
    %1854 = vmatpush1.bf16.xpose.msra.mxu0 0
    %1855 = vmatprep.subr.bf16.mxu0 0
    %1856 = vmatpush1.bf16.xpose.msra.mxu0 0
    %1857 = vmatprep.subr.bf16.mxu0 0
    %1858 = vmatpush1.bf16.xpose.msra.mxu0 0
    %1859 = vmatprep.subr.bf16.mxu0 0
    %1860 = vmatpush1.bf16.xpose.msra.mxu0 0
    %1861 = vmatprep.subr.bf16.mxu0 0
    %1862 = vmatpush1.bf16.xpose.msra.mxu0 0
    %1863 = vmatprep.subr.bf16.mxu0 0
    %1864 = vmatpush1.bf16.xpose.msra.mxu0 0
    %1865 = vmatprep.subr.bf16.mxu0 0
    %1866 = vmatpush1.bf16.xpose.msra.mxu0 0
    %1867 = vmatprep.subr.bf16.mxu0 0
    %1868 = vmatpush1.bf16.xpose.msra.mxu0 0
    %1869 = vmatprep.subr.bf16.mxu0 0
    %1870 = vmatpush1.bf16.xpose.msra.mxu0 0
    %1871 = vmatprep.subr.bf16.mxu0 0
    %1872 = vmatpush1.bf16.xpose.msra.mxu0 0
    %1873 = vmatprep.subr.bf16.mxu0 0
    %1874 = vmatpush1.bf16.xpose.msra.mxu0 0
    %1875 = vmatprep.subr.bf16.mxu0 0
    %1876 = vmatpush1.bf16.xpose.msra.mxu0 0
    %1877 = vmatprep.subr.bf16.mxu0 0
    %1878 = vmatpush1.bf16.xpose.msra.mxu0 0
    %1879 = vmatprep.subr.bf16.mxu0 0
    %1880 = vmatpush1.bf16.xpose.msra.mxu0 0
    %1881 = vmatprep.mubr.bf16.mxu0 0
    %1882 = vmatmul.mubr.bf16.gmra.mrb[0].mxu0 %v1841
    %v1883 = vpop.f32.mrb[0].mxu0
    %v1884 = vadd.f32 0.0, %v1883
    %v1885 = vpop.f32.mrb[0].mxu0
    %v1886 = vpop.f32.mrb[0].mxu0
    %v1887 = vadd.f32 0.0, %v1886
    %v1888 = vpop.f32.mrb[0].mxu0
    %1889 = vdwg.mxu0
    %v1891 = vsel %vm424, %v757, 0
    %v1894 = vsel %vm424, %v1279, 0
    %v1897 = vsel %vm424, %v1291, 0
    %1899 = vmatprep.subr.bf16.mxu0 0
    %1900 = vmatpush1.bf16.xpose.msra.mxu0 %v1894
    %1901 = vmatprep.subr.bf16.mxu0 0
    %1902 = vmatpush1.bf16.xpose.msra.mxu0 %v1897
    %1903 = vmatprep.subr.bf16.mxu0 0
    %1904 = vmatpush1.bf16.xpose.msra.mxu0 0
    %1905 = vmatprep.subr.bf16.mxu0 0
    %1906 = vmatpush1.bf16.xpose.msra.mxu0 0
    %1907 = vmatprep.subr.bf16.mxu0 0
    %1908 = vmatpush1.bf16.xpose.msra.mxu0 0
    %1909 = vmatprep.subr.bf16.mxu0 0
    %1910 = vmatpush1.bf16.xpose.msra.mxu0 0
    %1911 = vmatprep.subr.bf16.mxu0 0
    %1912 = vmatpush1.bf16.xpose.msra.mxu0 0
    %1913 = vmatprep.subr.bf16.mxu0 0
    %1914 = vmatpush1.bf16.xpose.msra.mxu0 0
    %1915 = vmatprep.subr.bf16.mxu0 0
    %1916 = vmatpush1.bf16.xpose.msra.mxu0 0
    %1917 = vmatprep.subr.bf16.mxu0 0
    %1918 = vmatpush1.bf16.xpose.msra.mxu0 0
    %1919 = vmatprep.subr.bf16.mxu0 0
    %1920 = vmatpush1.bf16.xpose.msra.mxu0 0
    %1921 = vmatprep.subr.bf16.mxu0 0
    %1922 = vmatpush1.bf16.xpose.msra.mxu0 0
    %1923 = vmatprep.subr.bf16.mxu0 0
    %1924 = vmatpush1.bf16.xpose.msra.mxu0 0
    %1925 = vmatprep.subr.bf16.mxu0 0
    %1926 = vmatpush1.bf16.xpose.msra.mxu0 0
    %1927 = vmatprep.subr.bf16.mxu0 0
    %1928 = vmatpush1.bf16.xpose.msra.mxu0 0
    %1929 = vmatprep.subr.bf16.mxu0 0
    %1930 = vmatpush1.bf16.xpose.msra.mxu0 0
    %1931 = vmatprep.mubr.bf16.mxu0 0
    %1932 = vmatmul.mubr.bf16.gmra.mrb[0].mxu0 %v1891
    %v1933 = vpop.f32.mrb[0].mxu0
    %v1934 = vadd.f32 0.0, %v1933
    %v1935 = vpop.f32.mrb[0].mxu0
    %v1936 = vpop.f32.mrb[0].mxu0
    %v1937 = vadd.f32 0.0, %v1936
    %v1938 = vpop.f32.mrb[0].mxu0
    %1939 = vdwg.mxu0
    %v1941 = vsel %vm424, %v760, 0
    %v1944 = vsel %vm424, %v1282, 0
    %v1947 = vsel %vm424, %v1294, 0
    %1949 = vmatprep.subr.bf16.mxu0 0
    %1950 = vmatpush1.bf16.xpose.msra.mxu0 %v1944
    %1951 = vmatprep.subr.bf16.mxu0 0
    %1952 = vmatpush1.bf16.xpose.msra.mxu0 %v1947
    %1953 = vmatprep.subr.bf16.mxu0 0
    %1954 = vmatpush1.bf16.xpose.msra.mxu0 0
    %1955 = vmatprep.subr.bf16.mxu0 0
    %1956 = vmatpush1.bf16.xpose.msra.mxu0 0
    %1957 = vmatprep.subr.bf16.mxu0 0
    %1958 = vmatpush1.bf16.xpose.msra.mxu0 0
    %1959 = vmatprep.subr.bf16.mxu0 0
    %1960 = vmatpush1.bf16.xpose.msra.mxu0 0
    %1961 = vmatprep.subr.bf16.mxu0 0
    %1962 = vmatpush1.bf16.xpose.msra.mxu0 0
    %1963 = vmatprep.subr.bf16.mxu0 0
    %1964 = vmatpush1.bf16.xpose.msra.mxu0 0
    %1965 = vmatprep.subr.bf16.mxu0 0
    %1966 = vmatpush1.bf16.xpose.msra.mxu0 0
    %1967 = vmatprep.subr.bf16.mxu0 0
    %1968 = vmatpush1.bf16.xpose.msra.mxu0 0
    %1969 = vmatprep.subr.bf16.mxu0 0
    %1970 = vmatpush1.bf16.xpose.msra.mxu0 0
    %1971 = vmatprep.subr.bf16.mxu0 0
    %1972 = vmatpush1.bf16.xpose.msra.mxu0 0
    %1973 = vmatprep.subr.bf16.mxu0 0
    %1974 = vmatpush1.bf16.xpose.msra.mxu0 0
    %1975 = vmatprep.subr.bf16.mxu0 0
    %1976 = vmatpush1.bf16.xpose.msra.mxu0 0
    %1977 = vmatprep.subr.bf16.mxu0 0
    %1978 = vmatpush1.bf16.xpose.msra.mxu0 0
    %1979 = vmatprep.subr.bf16.mxu0 0
    %1980 = vmatpush1.bf16.xpose.msra.mxu0 0
    %1981 = vmatprep.mubr.bf16.mxu0 0
    %1982 = vmatmul.mubr.bf16.gmra.mrb[0].mxu0 %v1941
    %v1983 = vpop.f32.mrb[0].mxu0
    %v1984 = vadd.f32 0.0, %v1983
    %v1985 = vpop.f32.mrb[0].mxu0
    %v1986 = vpop.f32.mrb[0].mxu0
    %v1987 = vadd.f32 0.0, %v1986
    %v1988 = vpop.f32.mrb[0].mxu0
    %1989 = vdwg.mxu0
    %v1991 = vsel %vm424, %v763, 0
    %v1994 = vsel %vm424, %v1285, 0
    %v1997 = vsel %vm424, %v1297, 0
    %1999 = vmatprep.subr.bf16.mxu0 0
    %2000 = vmatpush1.bf16.xpose.msra.mxu0 %v1994
    %2001 = vmatprep.subr.bf16.mxu0 0
    %2002 = vmatpush1.bf16.xpose.msra.mxu0 %v1997
    %2003 = vmatprep.subr.bf16.mxu0 0
    %2004 = vmatpush1.bf16.xpose.msra.mxu0 0
    %2005 = vmatprep.subr.bf16.mxu0 0
    %2006 = vmatpush1.bf16.xpose.msra.mxu0 0
    %2007 = vmatprep.subr.bf16.mxu0 0
    %2008 = vmatpush1.bf16.xpose.msra.mxu0 0
    %2009 = vmatprep.subr.bf16.mxu0 0
    %2010 = vmatpush1.bf16.xpose.msra.mxu0 0
    %2011 = vmatprep.subr.bf16.mxu0 0
    %2012 = vmatpush1.bf16.xpose.msra.mxu0 0
    %2013 = vmatprep.subr.bf16.mxu0 0
    %2014 = vmatpush1.bf16.xpose.msra.mxu0 0
    %2015 = vmatprep.subr.bf16.mxu0 0
    %2016 = vmatpush1.bf16.xpose.msra.mxu0 0
    %2017 = vmatprep.subr.bf16.mxu0 0
    %2018 = vmatpush1.bf16.xpose.msra.mxu0 0
    %2019 = vmatprep.subr.bf16.mxu0 0
    %2020 = vmatpush1.bf16.xpose.msra.mxu0 0
    %2021 = vmatprep.subr.bf16.mxu0 0
    %2022 = vmatpush1.bf16.xpose.msra.mxu0 0
    %2023 = vmatprep.subr.bf16.mxu0 0
    %2024 = vmatpush1.bf16.xpose.msra.mxu0 0
    %2025 = vmatprep.subr.bf16.mxu0 0
    %2026 = vmatpush1.bf16.xpose.msra.mxu0 0
    %2027 = vmatprep.subr.bf16.mxu0 0
    %2028 = vmatpush1.bf16.xpose.msra.mxu0 0
    %2029 = vmatprep.subr.bf16.mxu0 0
    %2030 = vmatpush1.bf16.xpose.msra.mxu0 0
    %2031 = vmatprep.mubr.bf16.mxu0 0
    %2032 = vmatmul.mubr.bf16.gmra.mrb[0].mxu0 %v1991
    %v2033 = vpop.f32.mrb[0].mxu0
    %v2034 = vadd.f32 0.0, %v2033
    %v2035 = vpop.f32.mrb[0].mxu0
    %v2036 = vpop.f32.mrb[0].mxu0
    %v2037 = vadd.f32 0.0, %v2036
    %v2038 = vpop.f32.mrb[0].mxu0
    %2039 = vdwg.mxu0
    %v2040 = vmul.f32 %v1884, 0.17677669
    %v2041 = vmul.f32 %v1887, 0.17677669
    %v2042 = vmul.f32 %v1934, 0.17677669
    %v2043 = vmul.f32 %v1937, 0.17677669
    %v2044 = vmul.f32 %v1984, 0.17677669
    %v2045 = vmul.f32 %v1987, 0.17677669
    %v2046 = vmul.f32 %v2034, 0.17677669
    %v2047 = vmul.f32 %v2037, 0.17677669
    %v2048 = vadd.f32 %v2040, %v489
    %v2049 = vadd.f32 %v2041, %v490
    %v2050 = vadd.f32 %v2042, %v489
    %v2051 = vadd.f32 %v2043, %v490
    %v2052 = vadd.f32 %v2044, %v489
    %v2053 = vadd.f32 %v2045, %v490
    %v2054 = vadd.f32 %v2046, %v489
    %v2055 = vadd.f32 %v2047, %v490
    %v2056 = vsel %vm424, %v2048, -inf
    %2057 = vmax.xlane.f32.xlu0 %v2056
    %v2058 = vpop.xlane.xlu0 %2057
    %v2059 = vsel %vm424, %v2049, -inf
    %2060 = vmax.xlane.f32.xlu0 %v2059
    %v2061 = vpop.xlane.xlu0 %2060
    %v2062 = vsel %vm424, %v2050, -inf
    %2063 = vmax.xlane.f32.xlu0 %v2062
    %v2064 = vpop.xlane.xlu0 %2063
    %v2065 = vsel %vm424, %v2051, -inf
    %2066 = vmax.xlane.f32.xlu0 %v2065
    %v2067 = vpop.xlane.xlu0 %2066
    %v2068 = vsel %vm424, %v2052, -inf
    %2069 = vmax.xlane.f32.xlu0 %v2068
    %v2070 = vpop.xlane.xlu0 %2069
    %v2071 = vsel %vm424, %v2053, -inf
    %2072 = vmax.xlane.f32.xlu0 %v2071
    %v2073 = vpop.xlane.xlu0 %2072
    %v2074 = vsel %vm424, %v2054, -inf
    %2075 = vmax.xlane.f32.xlu0 %v2074
    %v2076 = vpop.xlane.xlu0 %2075
    %v2077 = vsel %vm424, %v2055, -inf
    %2078 = vmax.xlane.f32.xlu0 %v2077
    %v2079 = vpop.xlane.xlu0 %2078
    %v2080 = vsub.f32 %v2048, %v2058
    %v2081 = vsub.f32 %v2049, %v2061
    %v2082 = vsub.f32 %v2050, %v2064
    %v2083 = vsub.f32 %v2051, %v2067
    %v2084 = vsub.f32 %v2052, %v2070
    %v2085 = vsub.f32 %v2053, %v2073
    %v2086 = vsub.f32 %v2054, %v2076
    %v2087 = vsub.f32 %v2055, %v2079
    %v2088 = vmul.f32 %v2080, 1.442695
    %v2089 = vpow.pop %v2088
    %v2090 = vmul.f32 %v2081, 1.442695
    %v2091 = vpow.pop %v2090
    %v2092 = vmul.f32 %v2082, 1.442695
    %v2093 = vpow.pop %v2092
    %v2094 = vmul.f32 %v2083, 1.442695
    %v2095 = vpow.pop %v2094
    %v2096 = vmul.f32 %v2084, 1.442695
    %v2097 = vpow.pop %v2096
    %v2098 = vmul.f32 %v2085, 1.442695
    %v2099 = vpow.pop %v2098
    %v2100 = vmul.f32 %v2086, 1.442695
    %v2101 = vpow.pop %v2100
    %v2102 = vmul.f32 %v2087, 1.442695
    %v2103 = vpow.pop %v2102
    %v2104 = vsel %vm424, %v2089, 0.0
    %2105 = vadd.xlane.f32.xlu0 %v2104
    %v2106 = vpop.xlane.xlu0 %2105
    %v2107 = vsel %vm424, %v2091, 0.0
    %2108 = vadd.xlane.f32.xlu0 %v2107
    %v2109 = vpop.xlane.xlu0 %2108
    %v2110 = vsel %vm424, %v2093, 0.0
    %2111 = vadd.xlane.f32.xlu0 %v2110
    %v2112 = vpop.xlane.xlu0 %2111
    %v2113 = vsel %vm424, %v2095, 0.0
    %2114 = vadd.xlane.f32.xlu0 %v2113
    %v2115 = vpop.xlane.xlu0 %2114
    %v2116 = vsel %vm424, %v2097, 0.0
    %2117 = vadd.xlane.f32.xlu0 %v2116
    %v2118 = vpop.xlane.xlu0 %2117
    %v2119 = vsel %vm424, %v2099, 0.0
    %2120 = vadd.xlane.f32.xlu0 %v2119
    %v2121 = vpop.xlane.xlu0 %2120
    %v2122 = vsel %vm424, %v2101, 0.0
    %2123 = vadd.xlane.f32.xlu0 %v2122
    %v2124 = vpop.xlane.xlu0 %2123
    %v2125 = vsel %vm424, %v2103, 0.0
    %2126 = vadd.xlane.f32.xlu0 %v2125
    %v2127 = vpop.xlane.xlu0 %2126
    %v2128 = vrcp.pop %v2106
    %v2129 = vrcp.pop %v2109
    %v2130 = vrcp.pop %v2112
    %v2131 = vrcp.pop %v2115
    %v2132 = vrcp.pop %v2118
    %v2133 = vrcp.pop %v2121
    %v2134 = vrcp.pop %v2124
    %v2135 = vrcp.pop %v2127
    %v2136 = vmul.f32 %v2089, %v2128
    %v2137 = vmul.f32 %v2091, %v2129
    %v2138 = vmul.f32 %v2093, %v2130
    %v2139 = vmul.f32 %v2095, %v2131
    %v2140 = vmul.f32 %v2097, %v2132
    %v2141 = vmul.f32 %v2099, %v2133
    %v2142 = vmul.f32 %v2101, %v2134
    %v2143 = vmul.f32 %v2103, %v2135
    %v2144 = vpack.c.bf16 %v2137, %v2136
    %v2145 = vpack.c.bf16 %v2139, %v2138
    %v2146 = vpack.c.bf16 %v2141, %v2140
    %v2147 = vpack.c.bf16 %v2143, %v2142
    %v2149 = vsel %vm424, %v2144, 0
    %2151 = vmatprep.subr.bf16.mxu0 0
    %2152 = vmatpush1.bf16.msra.mxu0 %v1810
    %2153 = vmatprep.subr.bf16.mxu0 0
    %2154 = vmatpush1.bf16.msra.mxu0 %v1826
    %2155 = vmatprep.subr.bf16.mxu0 0
    %2156 = vmatpush1.bf16.msra.mxu0 0
    %2157 = vmatprep.subr.bf16.mxu0 0
    %2158 = vmatpush1.bf16.msra.mxu0 0
    %2159 = vmatprep.subr.bf16.mxu0 0
    %2160 = vmatpush1.bf16.msra.mxu0 0
    %2161 = vmatprep.subr.bf16.mxu0 0
    %2162 = vmatpush1.bf16.msra.mxu0 0
    %2163 = vmatprep.subr.bf16.mxu0 0
    %2164 = vmatpush1.bf16.msra.mxu0 0
    %2165 = vmatprep.subr.bf16.mxu0 0
    %2166 = vmatpush1.bf16.msra.mxu0 0
    %2167 = vmatprep.subr.bf16.mxu0 0
    %2168 = vmatpush1.bf16.msra.mxu0 0
    %2169 = vmatprep.subr.bf16.mxu0 0
    %2170 = vmatpush1.bf16.msra.mxu0 0
    %2171 = vmatprep.subr.bf16.mxu0 0
    %2172 = vmatpush1.bf16.msra.mxu0 0
    %2173 = vmatprep.subr.bf16.mxu0 0
    %2174 = vmatpush1.bf16.msra.mxu0 0
    %2175 = vmatprep.subr.bf16.mxu0 0
    %2176 = vmatpush1.bf16.msra.mxu0 0
    %2177 = vmatprep.subr.bf16.mxu0 0
    %2178 = vmatpush1.bf16.msra.mxu0 0
    %2179 = vmatprep.subr.bf16.mxu0 0
    %2180 = vmatpush1.bf16.msra.mxu0 0
    %2181 = vmatprep.subr.bf16.mxu0 0
    %2182 = vmatpush1.bf16.msra.mxu0 0
    %2183 = vmatprep.mubr.bf16.mxu0 0
    %2184 = vmatmul.mubr.bf16.gmra.mrb[0].mxu0 %v2149
    %v2185 = vpop.f32.mrb[0].mxu0
    %v2186 = vadd.f32 0.0, %v2185
    %v2187 = vpop.f32.mrb[0].mxu0
    %v2188 = vpop.f32.mrb[0].mxu0
    %v2189 = vadd.f32 0.0, %v2188
    %v2190 = vpop.f32.mrb[0].mxu0
    %2191 = vdwg.mxu0
    %v2193 = vsel %vm424, %v2145, 0
    %2195 = vmatprep.subr.bf16.mxu0 0
    %2196 = vmatpush1.bf16.msra.mxu0 %v1814
    %2197 = vmatprep.subr.bf16.mxu0 0
    %2198 = vmatpush1.bf16.msra.mxu0 %v1830
    %2199 = vmatprep.subr.bf16.mxu0 0
    %2200 = vmatpush1.bf16.msra.mxu0 0
    %2201 = vmatprep.subr.bf16.mxu0 0
    %2202 = vmatpush1.bf16.msra.mxu0 0
    %2203 = vmatprep.subr.bf16.mxu0 0
    %2204 = vmatpush1.bf16.msra.mxu0 0
    %2205 = vmatprep.subr.bf16.mxu0 0
    %2206 = vmatpush1.bf16.msra.mxu0 0
    %2207 = vmatprep.subr.bf16.mxu0 0
    %2208 = vmatpush1.bf16.msra.mxu0 0
    %2209 = vmatprep.subr.bf16.mxu0 0
    %2210 = vmatpush1.bf16.msra.mxu0 0
    %2211 = vmatprep.subr.bf16.mxu0 0
    %2212 = vmatpush1.bf16.msra.mxu0 0
    %2213 = vmatprep.subr.bf16.mxu0 0
    %2214 = vmatpush1.bf16.msra.mxu0 0
    %2215 = vmatprep.subr.bf16.mxu0 0
    %2216 = vmatpush1.bf16.msra.mxu0 0
    %2217 = vmatprep.subr.bf16.mxu0 0
    %2218 = vmatpush1.bf16.msra.mxu0 0
    %2219 = vmatprep.subr.bf16.mxu0 0
    %2220 = vmatpush1.bf16.msra.mxu0 0
    %2221 = vmatprep.subr.bf16.mxu0 0
    %2222 = vmatpush1.bf16.msra.mxu0 0
    %2223 = vmatprep.subr.bf16.mxu0 0
    %2224 = vmatpush1.bf16.msra.mxu0 0
    %2225 = vmatprep.subr.bf16.mxu0 0
    %2226 = vmatpush1.bf16.msra.mxu0 0
    %2227 = vmatprep.mubr.bf16.mxu0 0
    %2228 = vmatmul.mubr.bf16.gmra.mrb[0].mxu0 %v2193
    %v2229 = vpop.f32.mrb[0].mxu0
    %v2230 = vadd.f32 0.0, %v2229
    %v2231 = vpop.f32.mrb[0].mxu0
    %v2232 = vpop.f32.mrb[0].mxu0
    %v2233 = vadd.f32 0.0, %v2232
    %v2234 = vpop.f32.mrb[0].mxu0
    %2235 = vdwg.mxu0
    %v2237 = vsel %vm424, %v2146, 0
    %2239 = vmatprep.subr.bf16.mxu0 0
    %2240 = vmatpush1.bf16.msra.mxu0 %v1818
    %2241 = vmatprep.subr.bf16.mxu0 0
    %2242 = vmatpush1.bf16.msra.mxu0 %v1834
    %2243 = vmatprep.subr.bf16.mxu0 0
    %2244 = vmatpush1.bf16.msra.mxu0 0
    %2245 = vmatprep.subr.bf16.mxu0 0
    %2246 = vmatpush1.bf16.msra.mxu0 0
    %2247 = vmatprep.subr.bf16.mxu0 0
    %2248 = vmatpush1.bf16.msra.mxu0 0
    %2249 = vmatprep.subr.bf16.mxu0 0
    %2250 = vmatpush1.bf16.msra.mxu0 0
    %2251 = vmatprep.subr.bf16.mxu0 0
    %2252 = vmatpush1.bf16.msra.mxu0 0
    %2253 = vmatprep.subr.bf16.mxu0 0
    %2254 = vmatpush1.bf16.msra.mxu0 0
    %2255 = vmatprep.subr.bf16.mxu0 0
    %2256 = vmatpush1.bf16.msra.mxu0 0
    %2257 = vmatprep.subr.bf16.mxu0 0
    %2258 = vmatpush1.bf16.msra.mxu0 0
    %2259 = vmatprep.subr.bf16.mxu0 0
    %2260 = vmatpush1.bf16.msra.mxu0 0
    %2261 = vmatprep.subr.bf16.mxu0 0
    %2262 = vmatpush1.bf16.msra.mxu0 0
    %2263 = vmatprep.subr.bf16.mxu0 0
    %2264 = vmatpush1.bf16.msra.mxu0 0
    %2265 = vmatprep.subr.bf16.mxu0 0
    %2266 = vmatpush1.bf16.msra.mxu0 0
    %2267 = vmatprep.subr.bf16.mxu0 0
    %2268 = vmatpush1.bf16.msra.mxu0 0
    %2269 = vmatprep.subr.bf16.mxu0 0
    %2270 = vmatpush1.bf16.msra.mxu0 0
    %2271 = vmatprep.mubr.bf16.mxu0 0
    %2272 = vmatmul.mubr.bf16.gmra.mrb[0].mxu0 %v2237
    %v2273 = vpop.f32.mrb[0].mxu0
    %v2274 = vadd.f32 0.0, %v2273
    %v2275 = vpop.f32.mrb[0].mxu0
    %v2276 = vpop.f32.mrb[0].mxu0
    %v2277 = vadd.f32 0.0, %v2276
    %v2278 = vpop.f32.mrb[0].mxu0
    %2279 = vdwg.mxu0
    %v2281 = vsel %vm424, %v2147, 0
    %2283 = vmatprep.subr.bf16.mxu0 0
    %2284 = vmatpush1.bf16.msra.mxu0 %v1822
    %2285 = vmatprep.subr.bf16.mxu0 0
    %2286 = vmatpush1.bf16.msra.mxu0 %v1838
    %2287 = vmatprep.subr.bf16.mxu0 0
    %2288 = vmatpush1.bf16.msra.mxu0 0
    %2289 = vmatprep.subr.bf16.mxu0 0
    %2290 = vmatpush1.bf16.msra.mxu0 0
    %2291 = vmatprep.subr.bf16.mxu0 0
    %2292 = vmatpush1.bf16.msra.mxu0 0
    %2293 = vmatprep.subr.bf16.mxu0 0
    %2294 = vmatpush1.bf16.msra.mxu0 0
    %2295 = vmatprep.subr.bf16.mxu0 0
    %2296 = vmatpush1.bf16.msra.mxu0 0
    %2297 = vmatprep.subr.bf16.mxu0 0
    %2298 = vmatpush1.bf16.msra.mxu0 0
    %2299 = vmatprep.subr.bf16.mxu0 0
    %2300 = vmatpush1.bf16.msra.mxu0 0
    %2301 = vmatprep.subr.bf16.mxu0 0
    %2302 = vmatpush1.bf16.msra.mxu0 0
    %2303 = vmatprep.subr.bf16.mxu0 0
    %2304 = vmatpush1.bf16.msra.mxu0 0
    %2305 = vmatprep.subr.bf16.mxu0 0
    %2306 = vmatpush1.bf16.msra.mxu0 0
    %2307 = vmatprep.subr.bf16.mxu0 0
    %2308 = vmatpush1.bf16.msra.mxu0 0
    %2309 = vmatprep.subr.bf16.mxu0 0
    %2310 = vmatpush1.bf16.msra.mxu0 0
    %2311 = vmatprep.subr.bf16.mxu0 0
    %2312 = vmatpush1.bf16.msra.mxu0 0
    %2313 = vmatprep.subr.bf16.mxu0 0
    %2314 = vmatpush1.bf16.msra.mxu0 0
    %2315 = vmatprep.mubr.bf16.mxu0 0
    %2316 = vmatmul.mubr.bf16.gmra.mrb[0].mxu0 %v2281
    %v2317 = vpop.f32.mrb[0].mxu0
    %v2318 = vadd.f32 0.0, %v2317
    %v2319 = vpop.f32.mrb[0].mxu0
    %v2320 = vpop.f32.mrb[0].mxu0
    %v2321 = vadd.f32 0.0, %v2320
    %v2322 = vpop.f32.mrb[0].mxu0
    %2323 = vdwg.mxu0
    %v2324 = vcombine.low %v2186, %v2274
    %v2325 = vcombine.high %v2186, %v2274
    %v2327 = vunpack.c.l.s4 1983009808
    %v2328 = vunpack.c.0.s8 %v2327
    %v2329 = vlaneseq
    %v2330 = vshrl.u32 %v2329, 7
    %v2331 = vsub.s32 %v2328, %v2330
    %v2332 = vrot.slane %v2324, %v2331
    %v2334 = vunpack.c.l.s4 1983009808
    %v2335 = vunpack.c.0.s8 %v2334
    %v2336 = vlaneseq
    %v2337 = vshrl.u32 %v2336, 7
    %v2338 = vsub.s32 %v2335, %v2337
    %v2339 = vrot.slane %v2325, %v2338
    %v2340 = vcombine.low %v2230, %v2318
    %v2341 = vcombine.high %v2230, %v2318
    %v2343 = vunpack.c.l.s4 1983009808
    %v2344 = vunpack.c.0.s8 %v2343
    %v2345 = vlaneseq
    %v2346 = vshrl.u32 %v2345, 7
    %v2347 = vsub.s32 %v2344, %v2346
    %v2348 = vrot.slane %v2340, %v2347
    %v2350 = vunpack.c.l.s4 1983009808
    %v2351 = vunpack.c.0.s8 %v2350
    %v2352 = vlaneseq
    %v2353 = vshrl.u32 %v2352, 7
    %v2354 = vsub.s32 %v2351, %v2353
    %v2355 = vrot.slane %v2341, %v2354
    %v2356 = vcombine.low %v2332, %v2348
    %v2357 = vcombine.high %v2332, %v2348
    %v2359 = vunpack.c.l.s4 1934713408
    %v2360 = vunpack.c.0.s8 %v2359
    %v2361 = vlaneseq
    %v2362 = vshrl.u32 %v2361, 7
    %v2363 = vsub.s32 %v2360, %v2362
    %v2364 = vrot.slane %v2356, %v2363
    %v2366 = vunpack.c.l.s4 1934713408
    %v2367 = vunpack.c.0.s8 %v2366
    %v2368 = vlaneseq
    %v2369 = vshrl.u32 %v2368, 7
    %v2370 = vsub.s32 %v2367, %v2369
    %v2371 = vrot.slane %v2357, %v2370
    %v2372 = vcombine.low %v2339, %v2355
    %v2373 = vcombine.high %v2339, %v2355
    %v2375 = vunpack.c.l.s4 1934713408
    %v2376 = vunpack.c.0.s8 %v2375
    %v2377 = vlaneseq
    %v2378 = vshrl.u32 %v2377, 7
    %v2379 = vsub.s32 %v2376, %v2378
    %v2380 = vrot.slane %v2372, %v2379
    %v2382 = vunpack.c.l.s4 1934713408
    %v2383 = vunpack.c.0.s8 %v2382
    %v2384 = vlaneseq
    %v2385 = vshrl.u32 %v2384, 7
    %v2386 = vsub.s32 %v2383, %v2385
    %v2387 = vrot.slane %v2373, %v2386
    %v2388 = vcombine.high %v2364, 0.0
    %v2389 = vcombine.high %v2371, 0.0
    %v2390 = vcombine.high %v2380, 0.0
    %v2391 = vcombine.high %v2387, 0.0
    %v2392 = vcombine.low %v2189, %v2277
    %v2393 = vcombine.high %v2189, %v2277
    %v2395 = vunpack.c.l.s4 1983009808
    %v2396 = vunpack.c.0.s8 %v2395
    %v2397 = vlaneseq
    %v2398 = vshrl.u32 %v2397, 7
    %v2399 = vsub.s32 %v2396, %v2398
    %v2400 = vrot.slane %v2392, %v2399
    %v2402 = vunpack.c.l.s4 1983009808
    %v2403 = vunpack.c.0.s8 %v2402
    %v2404 = vlaneseq
    %v2405 = vshrl.u32 %v2404, 7
    %v2406 = vsub.s32 %v2403, %v2405
    %v2407 = vrot.slane %v2393, %v2406
    %v2408 = vcombine.low %v2233, %v2321
    %v2409 = vcombine.high %v2233, %v2321
    %v2411 = vunpack.c.l.s4 1983009808
    %v2412 = vunpack.c.0.s8 %v2411
    %v2413 = vlaneseq
    %v2414 = vshrl.u32 %v2413, 7
    %v2415 = vsub.s32 %v2412, %v2414
    %v2416 = vrot.slane %v2408, %v2415
    %v2418 = vunpack.c.l.s4 1983009808
    %v2419 = vunpack.c.0.s8 %v2418
    %v2420 = vlaneseq
    %v2421 = vshrl.u32 %v2420, 7
    %v2422 = vsub.s32 %v2419, %v2421
    %v2423 = vrot.slane %v2409, %v2422
    %v2424 = vcombine.low %v2400, %v2416
    %v2425 = vcombine.high %v2400, %v2416
    %v2427 = vunpack.c.l.s4 1934713408
    %v2428 = vunpack.c.0.s8 %v2427
    %v2429 = vlaneseq
    %v2430 = vshrl.u32 %v2429, 7
    %v2431 = vsub.s32 %v2428, %v2430
    %v2432 = vrot.slane %v2424, %v2431
    %v2434 = vunpack.c.l.s4 1934713408
    %v2435 = vunpack.c.0.s8 %v2434
    %v2436 = vlaneseq
    %v2437 = vshrl.u32 %v2436, 7
    %v2438 = vsub.s32 %v2435, %v2437
    %v2439 = vrot.slane %v2425, %v2438
    %v2440 = vcombine.low %v2407, %v2423
    %v2441 = vcombine.high %v2407, %v2423
    %v2443 = vunpack.c.l.s4 1934713408
    %v2444 = vunpack.c.0.s8 %v2443
    %v2445 = vlaneseq
    %v2446 = vshrl.u32 %v2445, 7
    %v2447 = vsub.s32 %v2444, %v2446
    %v2448 = vrot.slane %v2440, %v2447
    %v2450 = vunpack.c.l.s4 1934713408
    %v2451 = vunpack.c.0.s8 %v2450
    %v2452 = vlaneseq
    %v2453 = vshrl.u32 %v2452, 7
    %v2454 = vsub.s32 %v2451, %v2453
    %v2455 = vrot.slane %v2441, %v2454
    %v2456 = vcombine.high %v2432, 0.0
    %v2457 = vcombine.high %v2439, 0.0
    %v2458 = vcombine.high %v2448, 0.0
    %v2459 = vcombine.high %v2455, 0.0
    %v2460 = vcombine.low %v2364, %v2371
    %v2462 = vunpack.c.l.s4 1983009808
    %v2463 = vunpack.c.0.s8 %v2462
    %v2464 = vlaneseq
    %v2465 = vshrl.u32 %v2464, 7
    %v2466 = vsub.s32 %v2463, %v2465
    %v2467 = vrot.slane %v2460, %v2466
    %v2468 = vcombine.low %v2388, %v2389
    %v2470 = vunpack.c.l.s4 1983009808
    %v2471 = vunpack.c.0.s8 %v2470
    %v2472 = vlaneseq
    %v2473 = vshrl.u32 %v2472, 7
    %v2474 = vsub.s32 %v2471, %v2473
    %v2475 = vrot.slane %v2468, %v2474
    %v2476 = vcombine.low %v2380, %v2387
    %v2478 = vunpack.c.l.s4 1983009808
    %v2479 = vunpack.c.0.s8 %v2478
    %v2480 = vlaneseq
    %v2481 = vshrl.u32 %v2480, 7
    %v2482 = vsub.s32 %v2479, %v2481
    %v2483 = vrot.slane %v2476, %v2482
    %v2484 = vcombine.low %v2390, %v2391
    %v2486 = vunpack.c.l.s4 1983009808
    %v2487 = vunpack.c.0.s8 %v2486
    %v2488 = vlaneseq
    %v2489 = vshrl.u32 %v2488, 7
    %v2490 = vsub.s32 %v2487, %v2489
    %v2491 = vrot.slane %v2484, %v2490
    %v2492 = vcombine.low %v2467, %v2475
    %v2493 = vcombine.high %v2467, %v2475
    %v2495 = vunpack.c.l.s4 1934713408
    %v2496 = vunpack.c.0.s8 %v2495
    %v2497 = vlaneseq
    %v2498 = vshrl.u32 %v2497, 7
    %v2499 = vsub.s32 %v2496, %v2498
    %v2500 = vrot.slane %v2492, %v2499
    %v2502 = vunpack.c.l.s4 1934713408
    %v2503 = vunpack.c.0.s8 %v2502
    %v2504 = vlaneseq
    %v2505 = vshrl.u32 %v2504, 7
    %v2506 = vsub.s32 %v2503, %v2505
    %v2507 = vrot.slane %v2493, %v2506
    %v2508 = vcombine.low %v2483, %v2491
    %v2509 = vcombine.high %v2483, %v2491
    %v2511 = vunpack.c.l.s4 1934713408
    %v2512 = vunpack.c.0.s8 %v2511
    %v2513 = vlaneseq
    %v2514 = vshrl.u32 %v2513, 7
    %v2515 = vsub.s32 %v2512, %v2514
    %v2516 = vrot.slane %v2508, %v2515
    %v2518 = vunpack.c.l.s4 1934713408
    %v2519 = vunpack.c.0.s8 %v2518
    %v2520 = vlaneseq
    %v2521 = vshrl.u32 %v2520, 7
    %v2522 = vsub.s32 %v2519, %v2521
    %v2523 = vrot.slane %v2509, %v2522
    %v2524 = vcombine.low %v2500, %v2516
    %v2525 = vcombine.high %v2500, %v2516
    %v2526 = vcombine.low %v2507, %v2523
    %v2527 = vcombine.high %v2507, %v2523
    %v2528 = vcombine.low %v2432, %v2439
    %v2530 = vunpack.c.l.s4 1983009808
    %v2531 = vunpack.c.0.s8 %v2530
    %v2532 = vlaneseq
    %v2533 = vshrl.u32 %v2532, 7
    %v2534 = vsub.s32 %v2531, %v2533
    %v2535 = vrot.slane %v2528, %v2534
    %v2536 = vcombine.low %v2456, %v2457
    %v2538 = vunpack.c.l.s4 1983009808
    %v2539 = vunpack.c.0.s8 %v2538
    %v2540 = vlaneseq
    %v2541 = vshrl.u32 %v2540, 7
    %v2542 = vsub.s32 %v2539, %v2541
    %v2543 = vrot.slane %v2536, %v2542
    %v2544 = vcombine.low %v2448, %v2455
    %v2546 = vunpack.c.l.s4 1983009808
    %v2547 = vunpack.c.0.s8 %v2546
    %v2548 = vlaneseq
    %v2549 = vshrl.u32 %v2548, 7
    %v2550 = vsub.s32 %v2547, %v2549
    %v2551 = vrot.slane %v2544, %v2550
    %v2552 = vcombine.low %v2458, %v2459
    %v2554 = vunpack.c.l.s4 1983009808
    %v2555 = vunpack.c.0.s8 %v2554
    %v2556 = vlaneseq
    %v2557 = vshrl.u32 %v2556, 7
    %v2558 = vsub.s32 %v2555, %v2557
    %v2559 = vrot.slane %v2552, %v2558
    %v2560 = vcombine.low %v2535, %v2543
    %v2561 = vcombine.high %v2535, %v2543
    %v2563 = vunpack.c.l.s4 1934713408
    %v2564 = vunpack.c.0.s8 %v2563
    %v2565 = vlaneseq
    %v2566 = vshrl.u32 %v2565, 7
    %v2567 = vsub.s32 %v2564, %v2566
    %v2568 = vrot.slane %v2560, %v2567
    %v2570 = vunpack.c.l.s4 1934713408
    %v2571 = vunpack.c.0.s8 %v2570
    %v2572 = vlaneseq
    %v2573 = vshrl.u32 %v2572, 7
    %v2574 = vsub.s32 %v2571, %v2573
    %v2575 = vrot.slane %v2561, %v2574
    %v2576 = vcombine.low %v2551, %v2559
    %v2577 = vcombine.high %v2551, %v2559
    %v2579 = vunpack.c.l.s4 1934713408
    %v2580 = vunpack.c.0.s8 %v2579
    %v2581 = vlaneseq
    %v2582 = vshrl.u32 %v2581, 7
    %v2583 = vsub.s32 %v2580, %v2582
    %v2584 = vrot.slane %v2576, %v2583
    %v2586 = vunpack.c.l.s4 1934713408
    %v2587 = vunpack.c.0.s8 %v2586
    %v2588 = vlaneseq
    %v2589 = vshrl.u32 %v2588, 7
    %v2590 = vsub.s32 %v2587, %v2589
    %v2591 = vrot.slane %v2577, %v2590
    %v2592 = vcombine.low %v2568, %v2584
    %v2593 = vcombine.high %v2568, %v2584
    %v2594 = vcombine.low %v2575, %v2591
    %v2595 = vcombine.high %v2575, %v2591
    %2598 = vrot.lane.b32.xlu0 %v2525, 32
    %v2599 = vpop.permute.xlu0 %2598
    %2600 = vrot.lane.b32.xlu0 %v2593, 32
    %v2601 = vpop.permute.xlu0 %2600
    %2606 = vrot.lane.b32.xlu0 %v2526, 64
    %v2607 = vpop.permute.xlu0 %2606
    %2608 = vrot.lane.b32.xlu0 %v2594, 64
    %v2609 = vpop.permute.xlu0 %2608
    %2614 = vrot.lane.b32.xlu0 %v2527, 96
    %v2615 = vpop.permute.xlu0 %2614
    %2616 = vrot.lane.b32.xlu0 %v2595, 96
    %v2617 = vpop.permute.xlu0 %2616
    %v2620 = vsel %vm424, %v2524, %v2599
    %v2621 = vsel %vm424, %v2592, %v2601
    %vm2622 = vcmask 523264
    %v2623 = vsel %vm2622, %v2620, %v2607
    %v2624 = vsel %vm2622, %v2621, %v2609
    %vm2625 = vcmask 785408
    %v2626 = vsel %vm2625, %v2623, %v2615
    %v2627 = vsel %vm2625, %v2624, %v2617
    %v2628 = vpack.c.bf16 %v2627, %v2626
    %v2629 = vld [vmem:[#allocation2] sm:$0x1]
    %v2630 = vtanh.pop %v2629
    %v2631 = vld [vmem:[#allocation12] sm:$0xf]
    %v2632 = vld [vmem:[#allocation12 + $0x4] sm:$0xf]
    %v2633 = vld [vmem:[#allocation12 + $0x8] sm:$0xf]
    %v2634 = vld [vmem:[#allocation12 + $0xc] sm:$0xf]
    %v2635 = vld [vmem:[#allocation12 + $0x10] sm:$0xf]
    %v2636 = vld [vmem:[#allocation12 + $0x14] sm:$0xf]
    %v2637 = vld [vmem:[#allocation12 + $0x18] sm:$0xf]
    %v2638 = vld [vmem:[#allocation12 + $0x1c] sm:$0xf]
    %v2639 = vld [vmem:[#allocation12 + $0x20] sm:$0xf]
    %v2640 = vld [vmem:[#allocation12 + $0x24] sm:$0xf]
    %v2641 = vld [vmem:[#allocation12 + $0x28] sm:$0xf]
    %v2642 = vld [vmem:[#allocation12 + $0x2c] sm:$0xf]
    %v2643 = vld [vmem:[#allocation12 + $0x30] sm:$0xf]
    %v2644 = vld [vmem:[#allocation12 + $0x34] sm:$0xf]
    %v2645 = vld [vmem:[#allocation12 + $0x38] sm:$0xf]
    %v2646 = vld [vmem:[#allocation12 + $0x3c] sm:$0xf]
    %v2663 = vunpack.c.l.b16 %v2631
    %v2664 = vunpack.c.l.b16 %v2632
    %v2665 = vunpack.c.l.b16 %v2633
    %v2666 = vunpack.c.l.b16 %v2634
    %v2667 = vunpack.c.l.b16 %v2635
    %v2668 = vunpack.c.l.b16 %v2636
    %v2669 = vunpack.c.l.b16 %v2637
    %v2670 = vunpack.c.l.b16 %v2638
    %v2671 = vunpack.c.l.b16 %v2639
    %v2672 = vunpack.c.l.b16 %v2640
    %v2673 = vunpack.c.l.b16 %v2641
    %v2674 = vunpack.c.l.b16 %v2642
    %v2675 = vunpack.c.l.b16 %v2643
    %v2676 = vunpack.c.l.b16 %v2644
    %v2677 = vunpack.c.l.b16 %v2645
    %v2678 = vunpack.c.l.b16 %v2646
    %v2679 = vpack.c.b16 %v2664, %v2663
    %v2680 = vpack.c.b16 %v2666, %v2665
    %v2681 = vpack.c.b16 %v2668, %v2667
    %v2682 = vpack.c.b16 %v2670, %v2669
    %v2683 = vpack.c.b16 %v2672, %v2671
    %v2684 = vpack.c.b16 %v2674, %v2673
    %v2685 = vpack.c.b16 %v2676, %v2675
    %v2686 = vpack.c.b16 %v2678, %v2677
    %2695 = vmatprep.subr.bf16.mxu0 0
    %2696 = vmatpush1.bf16.msra.mxu0 %v2679
    %2697 = vmatprep.subr.bf16.mxu0 0
    %2698 = vmatpush1.bf16.msra.mxu0 %v2680
    %2699 = vmatprep.subr.bf16.mxu0 0
    %2700 = vmatpush1.bf16.msra.mxu0 %v2681
    %2701 = vmatprep.subr.bf16.mxu0 0
    %2702 = vmatpush1.bf16.msra.mxu0 %v2682
    %2703 = vmatprep.subr.bf16.mxu0 0
    %2704 = vmatpush1.bf16.msra.mxu0 %v2683
    %2705 = vmatprep.subr.bf16.mxu0 0
    %2706 = vmatpush1.bf16.msra.mxu0 %v2684
    %2707 = vmatprep.subr.bf16.mxu0 0
    %2708 = vmatpush1.bf16.msra.mxu0 %v2685
    %2709 = vmatprep.subr.bf16.mxu0 0
    %2710 = vmatpush1.bf16.msra.mxu0 %v2686
    %2711 = vmatprep.subr.bf16.mxu0 0
    %2712 = vmatpush1.bf16.msra.mxu0 0
    %2713 = vmatprep.subr.bf16.mxu0 0
    %2714 = vmatpush1.bf16.msra.mxu0 0
    %2715 = vmatprep.subr.bf16.mxu0 0
    %2716 = vmatpush1.bf16.msra.mxu0 0
    %2717 = vmatprep.subr.bf16.mxu0 0
    %2718 = vmatpush1.bf16.msra.mxu0 0
    %2719 = vmatprep.subr.bf16.mxu0 0
    %2720 = vmatpush1.bf16.msra.mxu0 0
    %2721 = vmatprep.subr.bf16.mxu0 0
    %2722 = vmatpush1.bf16.msra.mxu0 0
    %2723 = vmatprep.subr.bf16.mxu0 0
    %2724 = vmatpush1.bf16.msra.mxu0 0
    %2725 = vmatprep.subr.bf16.mxu0 0
    %2726 = vmatpush1.bf16.msra.mxu0 0
    %2727 = vmatprep.mubr.bf16.mxu0 0
    %2728 = vmatmul.mubr.bf16.gmra.mrb[0].mxu0 %v2628
    %v2729 = vpop.f32.mrb[0].mxu0
    %v2730 = vadd.f32 0.0, %v2729
    %v2731 = vpop.f32.mrb[0].mxu0
    %v2732 = vpop.f32.mrb[0].mxu0
    %v2733 = vadd.f32 0.0, %v2732
    %v2734 = vpop.f32.mrb[0].mxu0
    %2735 = vdwg.mxu0
    %v2737 = vlaneseq
    %v2738 = vshrl.u32 %v2737, 7
    %v2739 = vsub.s32 0, %v2738
    %v2740 = vrot.slane %v2630, %v2739
    %2741 = vset.pattern.permute.xlu0 0
    %2742 = vperm.xlu0 %2741, %v2740
    %v2743 = vpop.permute.xlu0 %2742
    %v2745 = vmul.f32 %v2743, %v2730
    %v2746 = vmul.f32 %v2743, %v2733
    %v2747 = vadd.f32 %v237, %v2745
    %v2748 = vadd.f32 %v238, %v2746
    %v2749 = vld [vmem:[#allocation13] sm:$0x1]
    %v2750 = vld [vmem:[#allocation15] sm:$0x1]
    %2751 = vadd.xlane.f32.xlu0 %v2747
    %v2752 = vpop.xlane.xlu0 %2751
    %2753 = vadd.xlane.f32.xlu0 %v2748
    %v2754 = vpop.xlane.xlu0 %2753
    %v2755 = vmul.f32 %v2752, %v245
    %v2756 = vmul.f32 %v2754, %v245
    %v2757 = vsub.f32 %v2747, %v2755
    %v2758 = vsub.f32 %v2748, %v2756
    %v2759 = vmul.f32 %v2757, %v2757
    %v2760 = vmul.f32 %v2758, %v2758
    %2761 = vadd.xlane.f32.xlu0 %v2759
    %v2762 = vpop.xlane.xlu0 %2761
    %2763 = vadd.xlane.f32.xlu0 %v2760
    %v2764 = vpop.xlane.xlu0 %2763
    %v2765 = vmul.f32 %v2762, %v245
    %v2766 = vmul.f32 %v2764, %v245
    %v2767 = vadd.f32 %v2765, 1e-05
    %v2768 = vadd.f32 %v2766, 1e-05
    %v2769 = vrsqrt.pop %v2767
    %v2770 = vrsqrt.pop %v2768
    %v2771 = vmul.f32 %v2757, %v2769
    %v2772 = vmul.f32 %v2758, %v2770
    %v2774 = vlaneseq
    %v2775 = vshrl.u32 %v2774, 7
    %v2776 = vsub.s32 0, %v2775
    %v2777 = vrot.slane %v2749, %v2776
    %v2779 = vmul.f32 %v2771, %v2777
    %v2780 = vmul.f32 %v2772, %v2777
    %v2782 = vlaneseq
    %v2783 = vshrl.u32 %v2782, 7
    %v2784 = vsub.s32 0, %v2783
    %v2785 = vrot.slane %v2750, %v2784
    %v2787 = vadd.f32 %v2779, %v2785
    %v2788 = vadd.f32 %v2780, %v2785
    %v2789 = vpack.c.bf16 %v2788, %v2787
    %v2790 = vld [vmem:[#allocation16] sm:$0xff]
    %v2791 = vld [vmem:[#allocation16 + $0x8] sm:$0xff]
    %v2792 = vld [vmem:[#allocation16 + $0x10] sm:$0xff]
    %v2793 = vld [vmem:[#allocation16 + $0x18] sm:$0xff]
    %v2794 = vld [vmem:[#allocation16 + $0x20] sm:$0xff]
    %v2795 = vld [vmem:[#allocation16 + $0x28] sm:$0xff]
    %v2796 = vld [vmem:[#allocation16 + $0x30] sm:$0xff]
    %v2797 = vld [vmem:[#allocation16 + $0x38] sm:$0xff]
    %v2798 = vld [vmem:[#allocation16 + $0x40] sm:$0xff]
    %v2799 = vld [vmem:[#allocation16 + $0x48] sm:$0xff]
    %v2800 = vld [vmem:[#allocation16 + $0x50] sm:$0xff]
    %v2801 = vld [vmem:[#allocation16 + $0x58] sm:$0xff]
    %v2802 = vld [vmem:[#allocation16 + $0x60] sm:$0xff]
    %v2803 = vld [vmem:[#allocation16 + $0x68] sm:$0xff]
    %v2804 = vld [vmem:[#allocation16 + $0x70] sm:$0xff]
    %v2805 = vld [vmem:[#allocation16 + $0x78] sm:$0xff]
    %v2806 = vld [vmem:[#allocation16 + $0x80] sm:$0xff]
    %v2807 = vld [vmem:[#allocation16 + $0x88] sm:$0xff]
    %v2808 = vld [vmem:[#allocation16 + $0x90] sm:$0xff]
    %v2809 = vld [vmem:[#allocation16 + $0x98] sm:$0xff]
    %v2810 = vld [vmem:[#allocation16 + $0xa0] sm:$0xff]
    %v2811 = vld [vmem:[#allocation16 + $0xa8] sm:$0xff]
    %v2812 = vld [vmem:[#allocation16 + $0xb0] sm:$0xff]
    %v2813 = vld [vmem:[#allocation16 + $0xb8] sm:$0xff]
    %v2814 = vld [vmem:[#allocation16 + $0xc0] sm:$0xff]
    %v2815 = vld [vmem:[#allocation16 + $0xc8] sm:$0xff]
    %v2816 = vld [vmem:[#allocation16 + $0xd0] sm:$0xff]
    %v2817 = vld [vmem:[#allocation16 + $0xd8] sm:$0xff]
    %v2818 = vld [vmem:[#allocation16 + $0xe0] sm:$0xff]
    %v2819 = vld [vmem:[#allocation16 + $0xe8] sm:$0xff]
    %v2820 = vld [vmem:[#allocation16 + $0xf0] sm:$0xff]
    %v2821 = vld [vmem:[#allocation16 + $0xf8] sm:$0xff]
    %v2854 = vunpack.c.l.b16 %v2790
    %v2855 = vunpack.c.h.b16 %v2790
    %v2856 = vunpack.c.l.b16 %v2791
    %v2857 = vunpack.c.h.b16 %v2791
    %v2858 = vunpack.c.l.b16 %v2792
    %v2859 = vunpack.c.h.b16 %v2792
    %v2860 = vunpack.c.l.b16 %v2793
    %v2861 = vunpack.c.h.b16 %v2793
    %v2862 = vunpack.c.l.b16 %v2794
    %v2863 = vunpack.c.h.b16 %v2794
    %v2864 = vunpack.c.l.b16 %v2795
    %v2865 = vunpack.c.h.b16 %v2795
    %v2866 = vunpack.c.l.b16 %v2796
    %v2867 = vunpack.c.h.b16 %v2796
    %v2868 = vunpack.c.l.b16 %v2797
    %v2869 = vunpack.c.h.b16 %v2797
    %v2870 = vunpack.c.l.b16 %v2798
    %v2871 = vunpack.c.h.b16 %v2798
    %v2872 = vunpack.c.l.b16 %v2799
    %v2873 = vunpack.c.h.b16 %v2799
    %v2874 = vunpack.c.l.b16 %v2800
    %v2875 = vunpack.c.h.b16 %v2800
    %v2876 = vunpack.c.l.b16 %v2801
    %v2877 = vunpack.c.h.b16 %v2801
    %v2878 = vunpack.c.l.b16 %v2802
    %v2879 = vunpack.c.h.b16 %v2802
    %v2880 = vunpack.c.l.b16 %v2803
    %v2881 = vunpack.c.h.b16 %v2803
    %v2882 = vunpack.c.l.b16 %v2804
    %v2883 = vunpack.c.h.b16 %v2804
    %v2884 = vunpack.c.l.b16 %v2805
    %v2885 = vunpack.c.h.b16 %v2805
    %v2886 = vunpack.c.l.b16 %v2806
    %v2887 = vunpack.c.h.b16 %v2806
    %v2888 = vunpack.c.l.b16 %v2807
    %v2889 = vunpack.c.h.b16 %v2807
    %v2890 = vunpack.c.l.b16 %v2808
    %v2891 = vunpack.c.h.b16 %v2808
    %v2892 = vunpack.c.l.b16 %v2809
    %v2893 = vunpack.c.h.b16 %v2809
    %v2894 = vunpack.c.l.b16 %v2810
    %v2895 = vunpack.c.h.b16 %v2810
    %v2896 = vunpack.c.l.b16 %v2811
    %v2897 = vunpack.c.h.b16 %v2811
    %v2898 = vunpack.c.l.b16 %v2812
    %v2899 = vunpack.c.h.b16 %v2812
    %v2900 = vunpack.c.l.b16 %v2813
    %v2901 = vunpack.c.h.b16 %v2813
    %v2902 = vunpack.c.l.b16 %v2814
    %v2903 = vunpack.c.h.b16 %v2814
    %v2904 = vunpack.c.l.b16 %v2815
    %v2905 = vunpack.c.h.b16 %v2815
    %v2906 = vunpack.c.l.b16 %v2816
    %v2907 = vunpack.c.h.b16 %v2816
    %v2908 = vunpack.c.l.b16 %v2817
    %v2909 = vunpack.c.h.b16 %v2817
    %v2910 = vunpack.c.l.b16 %v2818
    %v2911 = vunpack.c.h.b16 %v2818
    %v2912 = vunpack.c.l.b16 %v2819
    %v2913 = vunpack.c.h.b16 %v2819
    %v2914 = vunpack.c.l.b16 %v2820
    %v2915 = vunpack.c.h.b16 %v2820
    %v2916 = vunpack.c.l.b16 %v2821
    %v2917 = vunpack.c.h.b16 %v2821
    %v2918 = vpack.c.b16 %v2858, %v2854
    %v2919 = vpack.c.b16 %v2859, %v2855
    %v2920 = vpack.c.b16 %v2860, %v2856
    %v2921 = vpack.c.b16 %v2861, %v2857
    %v2922 = vpack.c.b16 %v2866, %v2862
    %v2923 = vpack.c.b16 %v2867, %v2863
    %v2924 = vpack.c.b16 %v2868, %v2864
    %v2925 = vpack.c.b16 %v2869, %v2865
    %v2926 = vpack.c.b16 %v2874, %v2870
    %v2927 = vpack.c.b16 %v2875, %v2871
    %v2928 = vpack.c.b16 %v2876, %v2872
    %v2929 = vpack.c.b16 %v2877, %v2873
    %v2930 = vpack.c.b16 %v2882, %v2878
    %v2931 = vpack.c.b16 %v2883, %v2879
    %v2932 = vpack.c.b16 %v2884, %v2880
    %v2933 = vpack.c.b16 %v2885, %v2881
    %v2934 = vpack.c.b16 %v2890, %v2886
    %v2935 = vpack.c.b16 %v2891, %v2887
    %v2936 = vpack.c.b16 %v2892, %v2888
    %v2937 = vpack.c.b16 %v2893, %v2889
    %v2938 = vpack.c.b16 %v2898, %v2894
    %v2939 = vpack.c.b16 %v2899, %v2895
    %v2940 = vpack.c.b16 %v2900, %v2896
    %v2941 = vpack.c.b16 %v2901, %v2897
    %v2942 = vpack.c.b16 %v2906, %v2902
    %v2943 = vpack.c.b16 %v2907, %v2903
    %v2944 = vpack.c.b16 %v2908, %v2904
    %v2945 = vpack.c.b16 %v2909, %v2905
    %v2946 = vpack.c.b16 %v2914, %v2910
    %v2947 = vpack.c.b16 %v2915, %v2911
    %v2948 = vpack.c.b16 %v2916, %v2912
    %v2949 = vpack.c.b16 %v2917, %v2913
    %2982 = vmatprep.subr.bf16.mxu0 %v2919
    %2983 = vmatpush1.bf16.msra.mxu0 %v2918
    %2984 = vmatprep.subr.bf16.mxu0 %v2923
    %2985 = vmatpush1.bf16.msra.mxu0 %v2922
    %2986 = vmatprep.subr.bf16.mxu0 %v2927
    %2987 = vmatpush1.bf16.msra.mxu0 %v2926
    %2988 = vmatprep.subr.bf16.mxu0 %v2931
    %2989 = vmatpush1.bf16.msra.mxu0 %v2930
    %2990 = vmatprep.subr.bf16.mxu0 %v2935
    %2991 = vmatpush1.bf16.msra.mxu0 %v2934
    %2992 = vmatprep.subr.bf16.mxu0 %v2939
    %2993 = vmatpush1.bf16.msra.mxu0 %v2938
    %2994 = vmatprep.subr.bf16.mxu0 %v2943
    %2995 = vmatpush1.bf16.msra.mxu0 %v2942
    %2996 = vmatprep.subr.bf16.mxu0 %v2947
    %2997 = vmatpush1.bf16.msra.mxu0 %v2946
    %2998 = vmatprep.subr.bf16.mxu0 0
    %2999 = vmatpush1.bf16.msra.mxu0 0
    %3000 = vmatprep.subr.bf16.mxu0 0
    %3001 = vmatpush1.bf16.msra.mxu0 0
    %3002 = vmatprep.subr.bf16.mxu0 0
    %3003 = vmatpush1.bf16.msra.mxu0 0
    %3004 = vmatprep.subr.bf16.mxu0 0
    %3005 = vmatpush1.bf16.msra.mxu0 0
    %3006 = vmatprep.subr.bf16.mxu0 0
    %3007 = vmatpush1.bf16.msra.mxu0 0
    %3008 = vmatprep.subr.bf16.mxu0 0
    %3009 = vmatpush1.bf16.msra.mxu0 0
    %3010 = vmatprep.subr.bf16.mxu0 0
    %3011 = vmatpush1.bf16.msra.mxu0 0
    %3012 = vmatprep.subr.bf16.mxu0 0
    %3013 = vmatpush1.bf16.msra.mxu0 0
    %3014 = vmatprep.mubr.bf16.mxu0 0
    %3015 = vmatmul.mubr.bf16.gmra.mrb[0].mxu0 %v2789
    %v3016 = vpop.f32.mrb[0].mxu0
    %v3017 = vadd.f32 0.0, %v3016
    %v3018 = vpop.f32.mrb[0].mxu0
    %v3019 = vadd.f32 0.0, %v3018
    %v3020 = vpop.f32.mrb[0].mxu0
    %v3021 = vadd.f32 0.0, %v3020
    %v3022 = vpop.f32.mrb[0].mxu0
    %v3023 = vadd.f32 0.0, %v3022
    %3024 = vdwg.mxu0
    %3025 = vmatprep.subr.bf16.mxu0 %v2921
    %3026 = vmatpush1.bf16.msra.mxu0 %v2920
    %3027 = vmatprep.subr.bf16.mxu0 %v2925
    %3028 = vmatpush1.bf16.msra.mxu0 %v2924
    %3029 = vmatprep.subr.bf16.mxu0 %v2929
    %3030 = vmatpush1.bf16.msra.mxu0 %v2928
    %3031 = vmatprep.subr.bf16.mxu0 %v2933
    %3032 = vmatpush1.bf16.msra.mxu0 %v2932
    %3033 = vmatprep.subr.bf16.mxu0 %v2937
    %3034 = vmatpush1.bf16.msra.mxu0 %v2936
    %3035 = vmatprep.subr.bf16.mxu0 %v2941
    %3036 = vmatpush1.bf16.msra.mxu0 %v2940
    %3037 = vmatprep.subr.bf16.mxu0 %v2945
    %3038 = vmatpush1.bf16.msra.mxu0 %v2944
    %3039 = vmatprep.subr.bf16.mxu0 %v2949
    %3040 = vmatpush1.bf16.msra.mxu0 %v2948
    %3041 = vmatprep.subr.bf16.mxu0 0
    %3042 = vmatpush1.bf16.msra.mxu0 0
    %3043 = vmatprep.subr.bf16.mxu0 0
    %3044 = vmatpush1.bf16.msra.mxu0 0
    %3045 = vmatprep.subr.bf16.mxu0 0
    %3046 = vmatpush1.bf16.msra.mxu0 0
    %3047 = vmatprep.subr.bf16.mxu0 0
    %3048 = vmatpush1.bf16.msra.mxu0 0
    %3049 = vmatprep.subr.bf16.mxu0 0
    %3050 = vmatpush1.bf16.msra.mxu0 0
    %3051 = vmatprep.subr.bf16.mxu0 0
    %3052 = vmatpush1.bf16.msra.mxu0 0
    %3053 = vmatprep.subr.bf16.mxu0 0
    %3054 = vmatpush1.bf16.msra.mxu0 0
    %3055 = vmatprep.subr.bf16.mxu0 0
    %3056 = vmatpush1.bf16.msra.mxu0 0
    %3057 = vmatprep.mubr.bf16.mxu0 0
    %3058 = vmatmul.mubr.bf16.gmra.mrb[0].mxu0 %v2789
    %v3059 = vpop.f32.mrb[0].mxu0
    %v3060 = vadd.f32 0.0, %v3059
    %v3061 = vpop.f32.mrb[0].mxu0
    %v3062 = vadd.f32 0.0, %v3061
    %v3063 = vpop.f32.mrb[0].mxu0
    %v3064 = vadd.f32 0.0, %v3063
    %v3065 = vpop.f32.mrb[0].mxu0
    %v3066 = vadd.f32 0.0, %v3065
    %3067 = vdwg.mxu0
    %v3068 = vmul.f32 %v3017, %v3017
    %v3069 = vmul.f32 %v3019, %v3019
    %v3070 = vmul.f32 %v3060, %v3060
    %v3071 = vmul.f32 %v3062, %v3062
    %v3072 = vmul.f32 %v3021, %v3021
    %v3073 = vmul.f32 %v3023, %v3023
    %v3074 = vmul.f32 %v3064, %v3064
    %v3075 = vmul.f32 %v3066, %v3066
    %v3076 = vmul.f32 %v3017, %v3068
    %v3077 = vmul.f32 %v3019, %v3069
    %v3078 = vmul.f32 %v3060, %v3070
    %v3079 = vmul.f32 %v3062, %v3071
    %v3080 = vmul.f32 %v3021, %v3072
    %v3081 = vmul.f32 %v3023, %v3073
    %v3082 = vmul.f32 %v3064, %v3074
    %v3083 = vmul.f32 %v3066, %v3075
    %v3084 = vmul.f32 %v3076, 0.044715
    %v3085 = vmul.f32 %v3077, 0.044715
    %v3086 = vmul.f32 %v3078, 0.044715
    %v3087 = vmul.f32 %v3079, 0.044715
    %v3088 = vmul.f32 %v3080, 0.044715
    %v3089 = vmul.f32 %v3081, 0.044715
    %v3090 = vmul.f32 %v3082, 0.044715
    %v3091 = vmul.f32 %v3083, 0.044715
    %v3092 = vadd.f32 %v3017, %v3084
    %v3093 = vadd.f32 %v3019, %v3085
    %v3094 = vadd.f32 %v3060, %v3086
    %v3095 = vadd.f32 %v3062, %v3087
    %v3096 = vadd.f32 %v3021, %v3088
    %v3097 = vadd.f32 %v3023, %v3089
    %v3098 = vadd.f32 %v3064, %v3090
    %v3099 = vadd.f32 %v3066, %v3091
    %v3100 = vmul.f32 %v3092, 0.7978846
    %v3101 = vmul.f32 %v3093, 0.7978846
    %v3102 = vmul.f32 %v3094, 0.7978846
    %v3103 = vmul.f32 %v3095, 0.7978846
    %v3104 = vmul.f32 %v3096, 0.7978846
    %v3105 = vmul.f32 %v3097, 0.7978846
    %v3106 = vmul.f32 %v3098, 0.7978846
    %v3107 = vmul.f32 %v3099, 0.7978846
    %v3108 = vtanh.pop %v3100
    %v3109 = vtanh.pop %v3101
    %v3110 = vtanh.pop %v3102
    %v3111 = vtanh.pop %v3103
    %v3112 = vtanh.pop %v3104
    %v3113 = vtanh.pop %v3105
    %v3114 = vtanh.pop %v3106
    %v3115 = vtanh.pop %v3107
    %v3116 = vadd.f32 %v3108, 1.0
    %v3117 = vadd.f32 %v3109, 1.0
    %v3118 = vadd.f32 %v3110, 1.0
    %v3119 = vadd.f32 %v3111, 1.0
    %v3120 = vadd.f32 %v3112, 1.0
    %v3121 = vadd.f32 %v3113, 1.0
    %v3122 = vadd.f32 %v3114, 1.0
    %v3123 = vadd.f32 %v3115, 1.0
    %v3124 = vmul.f32 %v3116, 0.5
    %v3125 = vmul.f32 %v3117, 0.5
    %v3126 = vmul.f32 %v3118, 0.5
    %v3127 = vmul.f32 %v3119, 0.5
    %v3128 = vmul.f32 %v3120, 0.5
    %v3129 = vmul.f32 %v3121, 0.5
    %v3130 = vmul.f32 %v3122, 0.5
    %v3131 = vmul.f32 %v3123, 0.5
    %v3132 = vmul.f32 %v3017, %v3124
    %v3133 = vmul.f32 %v3019, %v3125
    %v3134 = vmul.f32 %v3060, %v3126
    %v3135 = vmul.f32 %v3062, %v3127
    %v3136 = vmul.f32 %v3021, %v3128
    %v3137 = vmul.f32 %v3023, %v3129
    %v3138 = vmul.f32 %v3064, %v3130
    %v3139 = vmul.f32 %v3066, %v3131
    %v3140 = vld [vmem:[#allocation3] sm:$0x1]
    %v3141 = vtanh.pop %v3140
    %v3142 = vpack.c.bf16 %v3136, %v3132
    %v3143 = vpack.c.bf16 %v3137, %v3133
    %v3144 = vpack.c.bf16 %v3138, %v3134
    %v3145 = vpack.c.bf16 %v3139, %v3135
    %v3146 = vld [vmem:[#allocation18] sm:$0xf]
    %v3147 = vld [vmem:[#allocation18 + $0x4] sm:$0xf]
    %v3148 = vld [vmem:[#allocation18 + $0x8] sm:$0xf]
    %v3149 = vld [vmem:[#allocation18 + $0xc] sm:$0xf]
    %v3150 = vld [vmem:[#allocation18 + $0x10] sm:$0xf]
    %v3151 = vld [vmem:[#allocation18 + $0x14] sm:$0xf]
    %v3152 = vld [vmem:[#allocation18 + $0x18] sm:$0xf]
    %v3153 = vld [vmem:[#allocation18 + $0x1c] sm:$0xf]
    %v3154 = vld [vmem:[#allocation18 + $0x20] sm:$0xf]
    %v3155 = vld [vmem:[#allocation18 + $0x24] sm:$0xf]
    %v3156 = vld [vmem:[#allocation18 + $0x28] sm:$0xf]
    %v3157 = vld [vmem:[#allocation18 + $0x2c] sm:$0xf]
    %v3158 = vld [vmem:[#allocation18 + $0x30] sm:$0xf]
    %v3159 = vld [vmem:[#allocation18 + $0x34] sm:$0xf]
    %v3160 = vld [vmem:[#allocation18 + $0x38] sm:$0xf]
    %v3161 = vld [vmem:[#allocation18 + $0x3c] sm:$0xf]
    %v3162 = vld [vmem:[#allocation18 + $0x40] sm:$0xf]
    %v3163 = vld [vmem:[#allocation18 + $0x44] sm:$0xf]
    %v3164 = vld [vmem:[#allocation18 + $0x48] sm:$0xf]
    %v3165 = vld [vmem:[#allocation18 + $0x4c] sm:$0xf]
    %v3166 = vld [vmem:[#allocation18 + $0x50] sm:$0xf]
    %v3167 = vld [vmem:[#allocation18 + $0x54] sm:$0xf]
    %v3168 = vld [vmem:[#allocation18 + $0x58] sm:$0xf]
    %v3169 = vld [vmem:[#allocation18 + $0x5c] sm:$0xf]
    %v3170 = vld [vmem:[#allocation18 + $0x60] sm:$0xf]
    %v3171 = vld [vmem:[#allocation18 + $0x64] sm:$0xf]
    %v3172 = vld [vmem:[#allocation18 + $0x68] sm:$0xf]
    %v3173 = vld [vmem:[#allocation18 + $0x6c] sm:$0xf]
    %v3174 = vld [vmem:[#allocation18 + $0x70] sm:$0xf]
    %v3175 = vld [vmem:[#allocation18 + $0x74] sm:$0xf]
    %v3176 = vld [vmem:[#allocation18 + $0x78] sm:$0xf]
    %v3177 = vld [vmem:[#allocation18 + $0x7c] sm:$0xf]
    %v3178 = vld [vmem:[#allocation18 + $0x80] sm:$0xf]
    %v3179 = vld [vmem:[#allocation18 + $0x84] sm:$0xf]
    %v3180 = vld [vmem:[#allocation18 + $0x88] sm:$0xf]
    %v3181 = vld [vmem:[#allocation18 + $0x8c] sm:$0xf]
    %v3182 = vld [vmem:[#allocation18 + $0x90] sm:$0xf]
    %v3183 = vld [vmem:[#allocation18 + $0x94] sm:$0xf]
    %v3184 = vld [vmem:[#allocation18 + $0x98] sm:$0xf]
    %v3185 = vld [vmem:[#allocation18 + $0x9c] sm:$0xf]
    %v3186 = vld [vmem:[#allocation18 + $0xa0] sm:$0xf]
    %v3187 = vld [vmem:[#allocation18 + $0xa4] sm:$0xf]
    %v3188 = vld [vmem:[#allocation18 + $0xa8] sm:$0xf]
    %v3189 = vld [vmem:[#allocation18 + $0xac] sm:$0xf]
    %v3190 = vld [vmem:[#allocation18 + $0xb0] sm:$0xf]
    %v3191 = vld [vmem:[#allocation18 + $0xb4] sm:$0xf]
    %v3192 = vld [vmem:[#allocation18 + $0xb8] sm:$0xf]
    %v3193 = vld [vmem:[#allocation18 + $0xbc] sm:$0xf]
    %v3194 = vld [vmem:[#allocation18 + $0xc0] sm:$0xf]
    %v3195 = vld [vmem:[#allocation18 + $0xc4] sm:$0xf]
    %v3196 = vld [vmem:[#allocation18 + $0xc8] sm:$0xf]
    %v3197 = vld [vmem:[#allocation18 + $0xcc] sm:$0xf]
    %v3198 = vld [vmem:[#allocation18 + $0xd0] sm:$0xf]
    %v3199 = vld [vmem:[#allocation18 + $0xd4] sm:$0xf]
    %v3200 = vld [vmem:[#allocation18 + $0xd8] sm:$0xf]
    %v3201 = vld [vmem:[#allocation18 + $0xdc] sm:$0xf]
    %v3202 = vld [vmem:[#allocation18 + $0xe0] sm:$0xf]
    %v3203 = vld [vmem:[#allocation18 + $0xe4] sm:$0xf]
    %v3204 = vld [vmem:[#allocation18 + $0xe8] sm:$0xf]
    %v3205 = vld [vmem:[#allocation18 + $0xec] sm:$0xf]
    %v3206 = vld [vmem:[#allocation18 + $0xf0] sm:$0xf]
    %v3207 = vld [vmem:[#allocation18 + $0xf4] sm:$0xf]
    %v3208 = vld [vmem:[#allocation18 + $0xf8] sm:$0xf]
    %v3209 = vld [vmem:[#allocation18 + $0xfc] sm:$0xf]
    %v3274 = vunpack.c.l.b16 %v3146
    %v3275 = vunpack.c.l.b16 %v3147
    %v3276 = vunpack.c.l.b16 %v3148
    %v3277 = vunpack.c.l.b16 %v3149
    %v3278 = vunpack.c.l.b16 %v3150
    %v3279 = vunpack.c.l.b16 %v3151
    %v3280 = vunpack.c.l.b16 %v3152
    %v3281 = vunpack.c.l.b16 %v3153
    %v3282 = vunpack.c.l.b16 %v3154
    %v3283 = vunpack.c.l.b16 %v3155
    %v3284 = vunpack.c.l.b16 %v3156
    %v3285 = vunpack.c.l.b16 %v3157
    %v3286 = vunpack.c.l.b16 %v3158
    %v3287 = vunpack.c.l.b16 %v3159
    %v3288 = vunpack.c.l.b16 %v3160
    %v3289 = vunpack.c.l.b16 %v3161
    %v3290 = vunpack.c.l.b16 %v3162
    %v3291 = vunpack.c.l.b16 %v3163
    %v3292 = vunpack.c.l.b16 %v3164
    %v3293 = vunpack.c.l.b16 %v3165
    %v3294 = vunpack.c.l.b16 %v3166
    %v3295 = vunpack.c.l.b16 %v3167
    %v3296 = vunpack.c.l.b16 %v3168
    %v3297 = vunpack.c.l.b16 %v3169
    %v3298 = vunpack.c.l.b16 %v3170
    %v3299 = vunpack.c.l.b16 %v3171
    %v3300 = vunpack.c.l.b16 %v3172
    %v3301 = vunpack.c.l.b16 %v3173
    %v3302 = vunpack.c.l.b16 %v3174
    %v3303 = vunpack.c.l.b16 %v3175
    %v3304 = vunpack.c.l.b16 %v3176
    %v3305 = vunpack.c.l.b16 %v3177
    %v3306 = vunpack.c.l.b16 %v3178
    %v3307 = vunpack.c.l.b16 %v3179
    %v3308 = vunpack.c.l.b16 %v3180
    %v3309 = vunpack.c.l.b16 %v3181
    %v3310 = vunpack.c.l.b16 %v3182
    %v3311 = vunpack.c.l.b16 %v3183
    %v3312 = vunpack.c.l.b16 %v3184
    %v3313 = vunpack.c.l.b16 %v3185
    %v3314 = vunpack.c.l.b16 %v3186
    %v3315 = vunpack.c.l.b16 %v3187
    %v3316 = vunpack.c.l.b16 %v3188
    %v3317 = vunpack.c.l.b16 %v3189
    %v3318 = vunpack.c.l.b16 %v3190
    %v3319 = vunpack.c.l.b16 %v3191
    %v3320 = vunpack.c.l.b16 %v3192
    %v3321 = vunpack.c.l.b16 %v3193
    %v3322 = vunpack.c.l.b16 %v3194
    %v3323 = vunpack.c.l.b16 %v3195
    %v3324 = vunpack.c.l.b16 %v3196
    %v3325 = vunpack.c.l.b16 %v3197
    %v3326 = vunpack.c.l.b16 %v3198
    %v3327 = vunpack.c.l.b16 %v3199
    %v3328 = vunpack.c.l.b16 %v3200
    %v3329 = vunpack.c.l.b16 %v3201
    %v3330 = vunpack.c.l.b16 %v3202
    %v3331 = vunpack.c.l.b16 %v3203
    %v3332 = vunpack.c.l.b16 %v3204
    %v3333 = vunpack.c.l.b16 %v3205
    %v3334 = vunpack.c.l.b16 %v3206
    %v3335 = vunpack.c.l.b16 %v3207
    %v3336 = vunpack.c.l.b16 %v3208
    %v3337 = vunpack.c.l.b16 %v3209
    %v3338 = vpack.c.b16 %v3275, %v3274
    %v3339 = vpack.c.b16 %v3277, %v3276
    %v3340 = vpack.c.b16 %v3279, %v3278
    %v3341 = vpack.c.b16 %v3281, %v3280
    %v3342 = vpack.c.b16 %v3283, %v3282
    %v3343 = vpack.c.b16 %v3285, %v3284
    %v3344 = vpack.c.b16 %v3287, %v3286
    %v3345 = vpack.c.b16 %v3289, %v3288
    %v3346 = vpack.c.b16 %v3291, %v3290
    %v3347 = vpack.c.b16 %v3293, %v3292
    %v3348 = vpack.c.b16 %v3295, %v3294
    %v3349 = vpack.c.b16 %v3297, %v3296
    %v3350 = vpack.c.b16 %v3299, %v3298
    %v3351 = vpack.c.b16 %v3301, %v3300
    %v3352 = vpack.c.b16 %v3303, %v3302
    %v3353 = vpack.c.b16 %v3305, %v3304
    %v3354 = vpack.c.b16 %v3307, %v3306
    %v3355 = vpack.c.b16 %v3309, %v3308
    %v3356 = vpack.c.b16 %v3311, %v3310
    %v3357 = vpack.c.b16 %v3313, %v3312
    %v3358 = vpack.c.b16 %v3315, %v3314
    %v3359 = vpack.c.b16 %v3317, %v3316
    %v3360 = vpack.c.b16 %v3319, %v3318
    %v3361 = vpack.c.b16 %v3321, %v3320
    %v3362 = vpack.c.b16 %v3323, %v3322
    %v3363 = vpack.c.b16 %v3325, %v3324
    %v3364 = vpack.c.b16 %v3327, %v3326
    %v3365 = vpack.c.b16 %v3329, %v3328
    %v3366 = vpack.c.b16 %v3331, %v3330
    %v3367 = vpack.c.b16 %v3333, %v3332
    %v3368 = vpack.c.b16 %v3335, %v3334
    %v3369 = vpack.c.b16 %v3337, %v3336
    %3402 = vmatprep.subr.bf16.mxu0 0
    %3403 = vmatpush1.bf16.msra.mxu0 %v3338
    %3404 = vmatprep.subr.bf16.mxu0 0
    %3405 = vmatpush1.bf16.msra.mxu0 %v3339
    %3406 = vmatprep.subr.bf16.mxu0 0
    %3407 = vmatpush1.bf16.msra.mxu0 %v3340
    %3408 = vmatprep.subr.bf16.mxu0 0
    %3409 = vmatpush1.bf16.msra.mxu0 %v3341
    %3410 = vmatprep.subr.bf16.mxu0 0
    %3411 = vmatpush1.bf16.msra.mxu0 %v3342
    %3412 = vmatprep.subr.bf16.mxu0 0
    %3413 = vmatpush1.bf16.msra.mxu0 %v3343
    %3414 = vmatprep.subr.bf16.mxu0 0
    %3415 = vmatpush1.bf16.msra.mxu0 %v3344
    %3416 = vmatprep.subr.bf16.mxu0 0
    %3417 = vmatpush1.bf16.msra.mxu0 %v3345
    %3418 = vmatprep.subr.bf16.mxu0 0
    %3419 = vmatpush1.bf16.msra.mxu0 %v3346
    %3420 = vmatprep.subr.bf16.mxu0 0
    %3421 = vmatpush1.bf16.msra.mxu0 %v3347
    %3422 = vmatprep.subr.bf16.mxu0 0
    %3423 = vmatpush1.bf16.msra.mxu0 %v3348
    %3424 = vmatprep.subr.bf16.mxu0 0
    %3425 = vmatpush1.bf16.msra.mxu0 %v3349
    %3426 = vmatprep.subr.bf16.mxu0 0
    %3427 = vmatpush1.bf16.msra.mxu0 %v3350
    %3428 = vmatprep.subr.bf16.mxu0 0
    %3429 = vmatpush1.bf16.msra.mxu0 %v3351
    %3430 = vmatprep.subr.bf16.mxu0 0
    %3431 = vmatpush1.bf16.msra.mxu0 %v3352
    %3432 = vmatprep.subr.bf16.mxu0 0
    %3433 = vmatpush1.bf16.msra.mxu0 %v3353
    %3434 = vmatprep.mubr.bf16.mxu0 %v3143
    %3435 = vmatmul.mubr.bf16.gmra.mrb[0].mxu0 %v3142
    %v3436 = vpop.f32.mrb[0].mxu0
    %v3437 = vadd.f32 0.0, %v3436
    %v3438 = vpop.f32.mrb[0].mxu0
    %v3439 = vpop.f32.mrb[0].mxu0
    %v3440 = vadd.f32 0.0, %v3439
    %v3441 = vpop.f32.mrb[0].mxu0
    %3442 = vdwg.mxu0
    %3443 = vmatprep.subr.bf16.mxu0 0
    %3444 = vmatpush1.bf16.msra.mxu0 %v3354
    %3445 = vmatprep.subr.bf16.mxu0 0
    %3446 = vmatpush1.bf16.msra.mxu0 %v3355
    %3447 = vmatprep.subr.bf16.mxu0 0
    %3448 = vmatpush1.bf16.msra.mxu0 %v3356
    %3449 = vmatprep.subr.bf16.mxu0 0
    %3450 = vmatpush1.bf16.msra.mxu0 %v3357
    %3451 = vmatprep.subr.bf16.mxu0 0
    %3452 = vmatpush1.bf16.msra.mxu0 %v3358
    %3453 = vmatprep.subr.bf16.mxu0 0
    %3454 = vmatpush1.bf16.msra.mxu0 %v3359
    %3455 = vmatprep.subr.bf16.mxu0 0
    %3456 = vmatpush1.bf16.msra.mxu0 %v3360
    %3457 = vmatprep.subr.bf16.mxu0 0
    %3458 = vmatpush1.bf16.msra.mxu0 %v3361
    %3459 = vmatprep.subr.bf16.mxu0 0
    %3460 = vmatpush1.bf16.msra.mxu0 %v3362
    %3461 = vmatprep.subr.bf16.mxu0 0
    %3462 = vmatpush1.bf16.msra.mxu0 %v3363
    %3463 = vmatprep.subr.bf16.mxu0 0
    %3464 = vmatpush1.bf16.msra.mxu0 %v3364
    %3465 = vmatprep.subr.bf16.mxu0 0
    %3466 = vmatpush1.bf16.msra.mxu0 %v3365
    %3467 = vmatprep.subr.bf16.mxu0 0
    %3468 = vmatpush1.bf16.msra.mxu0 %v3366
    %3469 = vmatprep.subr.bf16.mxu0 0
    %3470 = vmatpush1.bf16.msra.mxu0 %v3367
    %3471 = vmatprep.subr.bf16.mxu0 0
    %3472 = vmatpush1.bf16.msra.mxu0 %v3368
    %3473 = vmatprep.subr.bf16.mxu0 0
    %3474 = vmatpush1.bf16.msra.mxu0 %v3369
    %3475 = vmatprep.mubr.bf16.mxu0 %v3145
    %3476 = vmatmul.mubr.bf16.gmra.mrb[0].mxu0 %v3144
    %v3477 = vpop.f32.mrb[0].mxu0
    %v3478 = vadd.f32 %v3437, %v3477
    %v3479 = vpop.f32.mrb[0].mxu0
    %v3480 = vpop.f32.mrb[0].mxu0
    %v3481 = vadd.f32 %v3440, %v3480
    %v3482 = vpop.f32.mrb[0].mxu0
    %3483 = vdwg.mxu0
    %v3485 = vlaneseq
    %v3486 = vshrl.u32 %v3485, 7
    %v3487 = vsub.s32 0, %v3486
    %v3488 = vrot.slane %v3141, %v3487
    %3489 = vset.pattern.permute.xlu0 0
    %3490 = vperm.xlu0 %3489, %v3488
    %v3491 = vpop.permute.xlu0 %3490
    %v3493 = vmul.f32 %v3491, %v3478
    %v3494 = vmul.f32 %v3491, %v3481
    %v3495 = vadd.f32 %v2747, %v3493
    %v3496 = vadd.f32 %v2748, %v3494
    %v3497 = vld [vmem:[%s17] sm:$0x1]
    %v3498 = vmul.f32 %v3495, %v3495
    %v3499 = vmul.f32 %v3496, %v3496
    %3500 = vadd.xlane.f32.xlu0 %v3498
    %v3501 = vpop.xlane.xlu0 %3500
    %3502 = vadd.xlane.f32.xlu0 %v3499
    %v3503 = vpop.xlane.xlu0 %3502
    %v3504 = vmul.f32 %v3501, %v245
    %v3505 = vmul.f32 %v3503, %v245
    %v3506 = vadd.f32 %v3504, 1e-06
    %v3507 = vadd.f32 %v3505, 1e-06
    %v3508 = vrsqrt.pop %v3506
    %v3509 = vrsqrt.pop %v3507
    %v3510 = vmul.f32 %v3495, %v3508
    %v3511 = vmul.f32 %v3496, %v3509
    %v3513 = vlaneseq
    %v3514 = vshrl.u32 %v3513, 7
    %v3515 = vsub.s32 0, %v3514
    %v3516 = vrot.slane %v3497, %v3515
    %v3518 = vmul.f32 %v3510, %v3516
    %v3519 = vmul.f32 %v3511, %v3516
    %v3520 = vpack.c.bf16 %v3519, %v3518
    %v3521 = vld [vmem:[%s18] sm:$0xff]
    %v3522 = vld [vmem:[%s18 + $0x8] sm:$0xff]
    %v3523 = vld [vmem:[%s18 + $0x10] sm:$0xf]
    %v3524 = vld [vmem:[%s18 + $0x14] sm:$0xff]
    %v3525 = vld [vmem:[%s18 + $0x1c] sm:$0xff]
    %v3526 = vld [vmem:[%s18 + $0x24] sm:$0xf]
    %v3527 = vld [vmem:[%s18 + $0x28] sm:$0xff]
    %v3528 = vld [vmem:[%s18 + $0x30] sm:$0xff]
    %v3529 = vld [vmem:[%s18 + $0x38] sm:$0xf]
    %v3530 = vld [vmem:[%s18 + $0x3c] sm:$0xff]
    %v3531 = vld [vmem:[%s18 + $0x44] sm:$0xff]
    %v3532 = vld [vmem:[%s18 + $0x4c] sm:$0xf]
    %v3533 = vld [vmem:[%s18 + $0x50] sm:$0xff]
    %v3534 = vld [vmem:[%s18 + $0x58] sm:$0xff]
    %v3535 = vld [vmem:[%s18 + $0x60] sm:$0xf]
    %v3536 = vld [vmem:[%s18 + $0x64] sm:$0xff]
    %v3537 = vld [vmem:[%s18 + $0x6c] sm:$0xff]
    %v3538 = vld [vmem:[%s18 + $0x74] sm:$0xf]
    %v3539 = vld [vmem:[%s18 + $0x78] sm:$0xff]
    %v3540 = vld [vmem:[%s18 + $0x80] sm:$0xff]
    %v3541 = vld [vmem:[%s18 + $0x88] sm:$0xf]
    %v3542 = vld [vmem:[%s18 + $0x8c] sm:$0xff]
    %v3543 = vld [vmem:[%s18 + $0x94] sm:$0xff]
    %v3544 = vld [vmem:[%s18 + $0x9c] sm:$0xf]
    %v3545 = vld [vmem:[%s18 + $0xa0] sm:$0xff]
    %v3546 = vld [vmem:[%s18 + $0xa8] sm:$0xff]
    %v3547 = vld [vmem:[%s18 + $0xb0] sm:$0xf]
    %v3548 = vld [vmem:[%s18 + $0xb4] sm:$0xff]
    %v3549 = vld [vmem:[%s18 + $0xbc] sm:$0xff]
    %v3550 = vld [vmem:[%s18 + $0xc4] sm:$0xf]
    %v3551 = vld [vmem:[%s18 + $0xc8] sm:$0xff]
    %v3552 = vld [vmem:[%s18 + $0xd0] sm:$0xff]
    %v3553 = vld [vmem:[%s18 + $0xd8] sm:$0xf]
    %v3554 = vld [vmem:[%s18 + $0xdc] sm:$0xff]
    %v3555 = vld [vmem:[%s18 + $0xe4] sm:$0xff]
    %v3556 = vld [vmem:[%s18 + $0xec] sm:$0xf]
    %v3557 = vld [vmem:[%s18 + $0xf0] sm:$0xff]
    %v3558 = vld [vmem:[%s18 + $0xf8] sm:$0xff]
    %v3559 = vld [vmem:[%s18 + $0x100] sm:$0xf]
    %v3560 = vld [vmem:[%s18 + $0x104] sm:$0xff]
    %v3561 = vld [vmem:[%s18 + $0x10c] sm:$0xff]
    %v3562 = vld [vmem:[%s18 + $0x114] sm:$0xf]
    %v3563 = vld [vmem:[%s18 + $0x118] sm:$0xff]
    %v3564 = vld [vmem:[%s18 + $0x120] sm:$0xff]
    %v3565 = vld [vmem:[%s18 + $0x128] sm:$0xf]
    %v3566 = vld [vmem:[%s18 + $0x12c] sm:$0xff]
    %v3567 = vld [vmem:[%s18 + $0x134] sm:$0xff]
    %v3568 = vld [vmem:[%s18 + $0x13c] sm:$0xf]
    %v3617 = vunpack.c.l.b16 %v3521
    %v3618 = vunpack.c.h.b16 %v3521
    %v3619 = vunpack.c.l.b16 %v3522
    %v3620 = vunpack.c.h.b16 %v3522
    %v3621 = vunpack.c.l.b16 %v3523
    %v3622 = vunpack.c.l.b16 %v3524
    %v3623 = vunpack.c.h.b16 %v3524
    %v3624 = vunpack.c.l.b16 %v3525
    %v3625 = vunpack.c.h.b16 %v3525
    %v3626 = vunpack.c.l.b16 %v3526
    %v3627 = vunpack.c.l.b16 %v3527
    %v3628 = vunpack.c.h.b16 %v3527
    %v3629 = vunpack.c.l.b16 %v3528
    %v3630 = vunpack.c.h.b16 %v3528
    %v3631 = vunpack.c.l.b16 %v3529
    %v3632 = vunpack.c.l.b16 %v3530
    %v3633 = vunpack.c.h.b16 %v3530
    %v3634 = vunpack.c.l.b16 %v3531
    %v3635 = vunpack.c.h.b16 %v3531
    %v3636 = vunpack.c.l.b16 %v3532
    %v3637 = vunpack.c.l.b16 %v3533
    %v3638 = vunpack.c.h.b16 %v3533
    %v3639 = vunpack.c.l.b16 %v3534
    %v3640 = vunpack.c.h.b16 %v3534
    %v3641 = vunpack.c.l.b16 %v3535
    %v3642 = vunpack.c.l.b16 %v3536
    %v3643 = vunpack.c.h.b16 %v3536
    %v3644 = vunpack.c.l.b16 %v3537
    %v3645 = vunpack.c.h.b16 %v3537
    %v3646 = vunpack.c.l.b16 %v3538
    %v3647 = vunpack.c.l.b16 %v3539
    %v3648 = vunpack.c.h.b16 %v3539
    %v3649 = vunpack.c.l.b16 %v3540
    %v3650 = vunpack.c.h.b16 %v3540
    %v3651 = vunpack.c.l.b16 %v3541
    %v3652 = vunpack.c.l.b16 %v3542
    %v3653 = vunpack.c.h.b16 %v3542
    %v3654 = vunpack.c.l.b16 %v3543
    %v3655 = vunpack.c.h.b16 %v3543
    %v3656 = vunpack.c.l.b16 %v3544
    %v3657 = vunpack.c.l.b16 %v3545
    %v3658 = vunpack.c.h.b16 %v3545
    %v3659 = vunpack.c.l.b16 %v3546
    %v3660 = vunpack.c.h.b16 %v3546
    %v3661 = vunpack.c.l.b16 %v3547
    %v3662 = vunpack.c.l.b16 %v3548
    %v3663 = vunpack.c.h.b16 %v3548
    %v3664 = vunpack.c.l.b16 %v3549
    %v3665 = vunpack.c.h.b16 %v3549
    %v3666 = vunpack.c.l.b16 %v3550
    %v3667 = vunpack.c.l.b16 %v3551
    %v3668 = vunpack.c.h.b16 %v3551
    %v3669 = vunpack.c.l.b16 %v3552
    %v3670 = vunpack.c.h.b16 %v3552
    %v3671 = vunpack.c.l.b16 %v3553
    %v3672 = vunpack.c.l.b16 %v3554
    %v3673 = vunpack.c.h.b16 %v3554
    %v3674 = vunpack.c.l.b16 %v3555
    %v3675 = vunpack.c.h.b16 %v3555
    %v3676 = vunpack.c.l.b16 %v3556
    %v3677 = vunpack.c.l.b16 %v3557
    %v3678 = vunpack.c.h.b16 %v3557
    %v3679 = vunpack.c.l.b16 %v3558
    %v3680 = vunpack.c.h.b16 %v3558
    %v3681 = vunpack.c.l.b16 %v3559
    %v3682 = vunpack.c.l.b16 %v3560
    %v3683 = vunpack.c.h.b16 %v3560
    %v3684 = vunpack.c.l.b16 %v3561
    %v3685 = vunpack.c.h.b16 %v3561
    %v3686 = vunpack.c.l.b16 %v3562
    %v3687 = vunpack.c.l.b16 %v3563
    %v3688 = vunpack.c.h.b16 %v3563
    %v3689 = vunpack.c.l.b16 %v3564
    %v3690 = vunpack.c.h.b16 %v3564
    %v3691 = vunpack.c.l.b16 %v3565
    %v3692 = vunpack.c.l.b16 %v3566
    %v3693 = vunpack.c.h.b16 %v3566
    %v3694 = vunpack.c.l.b16 %v3567
    %v3695 = vunpack.c.h.b16 %v3567
    %v3696 = vunpack.c.l.b16 %v3568
    %v3697 = vpack.c.b16 %v3622, %v3617
    %v3698 = vpack.c.b16 %v3623, %v3618
    %v3699 = vpack.c.b16 %v3624, %v3619
    %v3700 = vpack.c.b16 %v3625, %v3620
    %v3701 = vpack.c.b16 %v3626, %v3621
    %v3702 = vpack.c.b16 %v3632, %v3627
    %v3703 = vpack.c.b16 %v3633, %v3628
    %v3704 = vpack.c.b16 %v3634, %v3629
    %v3705 = vpack.c.b16 %v3635, %v3630
    %v3706 = vpack.c.b16 %v3636, %v3631
    %v3707 = vpack.c.b16 %v3642, %v3637
    %v3708 = vpack.c.b16 %v3643, %v3638
    %v3709 = vpack.c.b16 %v3644, %v3639
    %v3710 = vpack.c.b16 %v3645, %v3640
    %v3711 = vpack.c.b16 %v3646, %v3641
    %v3712 = vpack.c.b16 %v3652, %v3647
    %v3713 = vpack.c.b16 %v3653, %v3648
    %v3714 = vpack.c.b16 %v3654, %v3649
    %v3715 = vpack.c.b16 %v3655, %v3650
    %v3716 = vpack.c.b16 %v3656, %v3651
    %v3717 = vpack.c.b16 %v3662, %v3657
    %v3718 = vpack.c.b16 %v3663, %v3658
    %v3719 = vpack.c.b16 %v3664, %v3659
    %v3720 = vpack.c.b16 %v3665, %v3660
    %v3721 = vpack.c.b16 %v3666, %v3661
    %v3722 = vpack.c.b16 %v3672, %v3667
    %v3723 = vpack.c.b16 %v3673, %v3668
    %v3724 = vpack.c.b16 %v3674, %v3669
    %v3725 = vpack.c.b16 %v3675, %v3670
    %v3726 = vpack.c.b16 %v3676, %v3671
    %v3727 = vpack.c.b16 %v3682, %v3677
    %v3728 = vpack.c.b16 %v3683, %v3678
    %v3729 = vpack.c.b16 %v3684, %v3679
    %v3730 = vpack.c.b16 %v3685, %v3680
    %v3731 = vpack.c.b16 %v3686, %v3681
    %v3732 = vpack.c.b16 %v3692, %v3687
    %v3733 = vpack.c.b16 %v3693, %v3688
    %v3734 = vpack.c.b16 %v3694, %v3689
    %v3735 = vpack.c.b16 %v3695, %v3690
    %v3736 = vpack.c.b16 %v3696, %v3691
    %3777 = vmatprep.subr.bf16.mxu0 %v3698
    %3778 = vmatpush1.bf16.msra.mxu0 %v3697
    %3779 = vmatprep.subr.bf16.mxu0 %v3703
    %3780 = vmatpush1.bf16.msra.mxu0 %v3702
    %3781 = vmatprep.subr.bf16.mxu0 %v3708
    %3782 = vmatpush1.bf16.msra.mxu0 %v3707
    %3783 = vmatprep.subr.bf16.mxu0 %v3713
    %3784 = vmatpush1.bf16.msra.mxu0 %v3712
    %3785 = vmatprep.subr.bf16.mxu0 %v3718
    %3786 = vmatpush1.bf16.msra.mxu0 %v3717
    %3787 = vmatprep.subr.bf16.mxu0 %v3723
    %3788 = vmatpush1.bf16.msra.mxu0 %v3722
    %3789 = vmatprep.subr.bf16.mxu0 %v3728
    %3790 = vmatpush1.bf16.msra.mxu0 %v3727
    %3791 = vmatprep.subr.bf16.mxu0 %v3733
    %3792 = vmatpush1.bf16.msra.mxu0 %v3732
    %3793 = vmatprep.subr.bf16.mxu0 0
    %3794 = vmatpush1.bf16.msra.mxu0 0
    %3795 = vmatprep.subr.bf16.mxu0 0
    %3796 = vmatpush1.bf16.msra.mxu0 0
    %3797 = vmatprep.subr.bf16.mxu0 0
    %3798 = vmatpush1.bf16.msra.mxu0 0
    %3799 = vmatprep.subr.bf16.mxu0 0
    %3800 = vmatpush1.bf16.msra.mxu0 0
    %3801 = vmatprep.subr.bf16.mxu0 0
    %3802 = vmatpush1.bf16.msra.mxu0 0
    %3803 = vmatprep.subr.bf16.mxu0 0
    %3804 = vmatpush1.bf16.msra.mxu0 0
    %3805 = vmatprep.subr.bf16.mxu0 0
    %3806 = vmatpush1.bf16.msra.mxu0 0
    %3807 = vmatprep.subr.bf16.mxu0 0
    %3808 = vmatpush1.bf16.msra.mxu0 0
    %3809 = vmatprep.mubr.bf16.mxu0 0
    %3810 = vmatmul.mubr.bf16.gmra.mrb[0].mxu0 %v3520
    %v3811 = vpop.f32.mrb[0].mxu0
    %v3812 = vadd.f32 0.0, %v3811
    %v3813 = vpop.f32.mrb[0].mxu0
    %v3814 = vadd.f32 0.0, %v3813
    %v3815 = vpop.f32.mrb[0].mxu0
    %v3816 = vadd.f32 0.0, %v3815
    %v3817 = vpop.f32.mrb[0].mxu0
    %v3818 = vadd.f32 0.0, %v3817
    %3819 = vdwg.mxu0
    %3820 = vmatprep.subr.bf16.mxu0 %v3700
    %3821 = vmatpush1.bf16.msra.mxu0 %v3699
    %3822 = vmatprep.subr.bf16.mxu0 %v3705
    %3823 = vmatpush1.bf16.msra.mxu0 %v3704
    %3824 = vmatprep.subr.bf16.mxu0 %v3710
    %3825 = vmatpush1.bf16.msra.mxu0 %v3709
    %3826 = vmatprep.subr.bf16.mxu0 %v3715
    %3827 = vmatpush1.bf16.msra.mxu0 %v3714
    %3828 = vmatprep.subr.bf16.mxu0 %v3720
    %3829 = vmatpush1.bf16.msra.mxu0 %v3719
    %3830 = vmatprep.subr.bf16.mxu0 %v3725
    %3831 = vmatpush1.bf16.msra.mxu0 %v3724
    %3832 = vmatprep.subr.bf16.mxu0 %v3730
    %3833 = vmatpush1.bf16.msra.mxu0 %v3729
    %3834 = vmatprep.subr.bf16.mxu0 %v3735
    %3835 = vmatpush1.bf16.msra.mxu0 %v3734
    %3836 = vmatprep.subr.bf16.mxu0 0
    %3837 = vmatpush1.bf16.msra.mxu0 0
    %3838 = vmatprep.subr.bf16.mxu0 0
    %3839 = vmatpush1.bf16.msra.mxu0 0
    %3840 = vmatprep.subr.bf16.mxu0 0
    %3841 = vmatpush1.bf16.msra.mxu0 0
    %3842 = vmatprep.subr.bf16.mxu0 0
    %3843 = vmatpush1.bf16.msra.mxu0 0
    %3844 = vmatprep.subr.bf16.mxu0 0
    %3845 = vmatpush1.bf16.msra.mxu0 0
    %3846 = vmatprep.subr.bf16.mxu0 0
    %3847 = vmatpush1.bf16.msra.mxu0 0
    %3848 = vmatprep.subr.bf16.mxu0 0
    %3849 = vmatpush1.bf16.msra.mxu0 0
    %3850 = vmatprep.subr.bf16.mxu0 0
    %3851 = vmatpush1.bf16.msra.mxu0 0
    %3852 = vmatprep.mubr.bf16.mxu0 0
    %3853 = vmatmul.mubr.bf16.gmra.mrb[0].mxu0 %v3520
    %v3854 = vpop.f32.mrb[0].mxu0
    %v3855 = vadd.f32 0.0, %v3854
    %v3856 = vpop.f32.mrb[0].mxu0
    %v3857 = vadd.f32 0.0, %v3856
    %v3858 = vpop.f32.mrb[0].mxu0
    %v3859 = vadd.f32 0.0, %v3858
    %v3860 = vpop.f32.mrb[0].mxu0
    %v3861 = vadd.f32 0.0, %v3860
    %3862 = vdwg.mxu0
    %3863 = vmatprep.subr.bf16.mxu0 0
    %3864 = vmatpush1.bf16.msra.mxu0 %v3701
    %3865 = vmatprep.subr.bf16.mxu0 0
    %3866 = vmatpush1.bf16.msra.mxu0 %v3706
    %3867 = vmatprep.subr.bf16.mxu0 0
    %3868 = vmatpush1.bf16.msra.mxu0 %v3711
    %3869 = vmatprep.subr.bf16.mxu0 0
    %3870 = vmatpush1.bf16.msra.mxu0 %v3716
    %3871 = vmatprep.subr.bf16.mxu0 0
    %3872 = vmatpush1.bf16.msra.mxu0 %v3721
    %3873 = vmatprep.subr.bf16.mxu0 0
    %3874 = vmatpush1.bf16.msra.mxu0 %v3726
    %3875 = vmatprep.subr.bf16.mxu0 0
    %3876 = vmatpush1.bf16.msra.mxu0 %v3731
    %3877 = vmatprep.subr.bf16.mxu0 0
    %3878 = vmatpush1.bf16.msra.mxu0 %v3736
    %3879 = vmatprep.subr.bf16.mxu0 0
    %3880 = vmatpush1.bf16.msra.mxu0 0
    %3881 = vmatprep.subr.bf16.mxu0 0
    %3882 = vmatpush1.bf16.msra.mxu0 0
    %3883 = vmatprep.subr.bf16.mxu0 0
    %3884 = vmatpush1.bf16.msra.mxu0 0
    %3885 = vmatprep.subr.bf16.mxu0 0
    %3886 = vmatpush1.bf16.msra.mxu0 0
    %3887 = vmatprep.subr.bf16.mxu0 0
    %3888 = vmatpush1.bf16.msra.mxu0 0
    %3889 = vmatprep.subr.bf16.mxu0 0
    %3890 = vmatpush1.bf16.msra.mxu0 0
    %3891 = vmatprep.subr.bf16.mxu0 0
    %3892 = vmatpush1.bf16.msra.mxu0 0
    %3893 = vmatprep.subr.bf16.mxu0 0
    %3894 = vmatpush1.bf16.msra.mxu0 0
    %3895 = vmatprep.mubr.bf16.mxu0 0
    %3896 = vmatmul.mubr.bf16.gmra.mrb[0].mxu0 %v3520
    %v3897 = vpop.f32.mrb[0].mxu0
    %v3898 = vadd.f32 0.0, %v3897
    %v3899 = vpop.f32.mrb[0].mxu0
    %v3900 = vpop.f32.mrb[0].mxu0
    %v3901 = vadd.f32 0.0, %v3900
    %v3902 = vpop.f32.mrb[0].mxu0
    %3903 = vdwg.mxu0
    %v3904 = vld [vmem:[%s1] sm:$0xff]
    %v3905 = vld [vmem:[%s1 + $0x8] sm:$0xff]
    %v3906 = vld [vmem:[%s2] sm:$0xff]
    %v3907 = vld [vmem:[%s2 + $0x8] sm:$0xff]
    %v3908 = vmul.f32 %v3812, %v3904
    %v3909 = vmul.f32 %v3816, %v3905
    %v3910 = vmul.f32 %v3814, %v3906
    %v3911 = vmul.f32 %v3818, %v3907
    %v3912 = vadd.f32 %v3908, %v3910
    %v3913 = vadd.f32 %v3909, %v3911
    %v3914 = vmul.f32 %v3855, %v3904
    %v3915 = vmul.f32 %v3859, %v3905
    %v3916 = vmul.f32 %v3857, %v3906
    %v3917 = vmul.f32 %v3861, %v3907
    %v3918 = vadd.f32 %v3914, %v3916
    %v3919 = vadd.f32 %v3915, %v3917
    %v3920 = vpack.c.bf16 %v3913, %v3912
    %v3921 = vpack.c.bf16 %v3919, %v3918
    %v3922 = vpack.c.bf16 %v3901, %v3898
    %v3923 = vld [vmem:[%s3] sm:$0xff]
    %v3924 = vld [vmem:[%s3 + $0x8] sm:$0xff]
    %3926 = vrot.lane.b32.xlu0 %v3920, 96
    %v3927 = vpop.permute.xlu0 %3926
    %3928 = vrot.lane.b32.xlu0 %v3920, 64
    %v3929 = vpop.permute.xlu0 %3928
    %3930 = vrot.lane.b32.xlu0 %v3920, 32
    %v3931 = vpop.permute.xlu0 %3930
    %v3934 = vpack.i.b16 %v3927, %v3920
    %v3936 = vshrl.u32 %v3920, 16
    %v3937 = vshrl.u32 %v3927, 16
    %v3938 = vpack.i.b16 %v3937, %v3936
    %v3942 = vpack.i.b16 %v3931, %v3929
    %v3944 = vshrl.u32 %v3929, 16
    %v3945 = vshrl.u32 %v3931, 16
    %v3946 = vpack.i.b16 %v3945, %v3944
    %v3948 = vcombine.high %v3934, %v515
    %v3950 = vunpack.c.l.s4 1983009808
    %v3951 = vunpack.c.0.s8 %v3950
    %v3952 = vlaneseq
    %v3953 = vshrl.u32 %v3952, 7
    %v3954 = vsub.s32 %v3951, %v3953
    %v3955 = vrot.slane %v3934, %v3954
    %v3957 = vunpack.c.l.s4 1983009808
    %v3958 = vunpack.c.0.s8 %v3957
    %v3959 = vlaneseq
    %v3960 = vshrl.u32 %v3959, 7
    %v3961 = vsub.s32 %v3958, %v3960
    %v3962 = vrot.slane %v3948, %v3961
    %v3963 = vcombine.high %v3942, %v515
    %v3965 = vunpack.c.l.s4 1983009808
    %v3966 = vunpack.c.0.s8 %v3965
    %v3967 = vlaneseq
    %v3968 = vshrl.u32 %v3967, 7
    %v3969 = vsub.s32 %v3966, %v3968
    %v3970 = vrot.slane %v3942, %v3969
    %v3972 = vunpack.c.l.s4 1983009808
    %v3973 = vunpack.c.0.s8 %v3972
    %v3974 = vlaneseq
    %v3975 = vshrl.u32 %v3974, 7
    %v3976 = vsub.s32 %v3973, %v3975
    %v3977 = vrot.slane %v3963, %v3976
    %v3978 = vcombine.low %v3955, %v3970
    %v3979 = vcombine.high %v3955, %v3970
    %v3981 = vunpack.c.l.s4 1934713408
    %v3982 = vunpack.c.0.s8 %v3981
    %v3983 = vlaneseq
    %v3984 = vshrl.u32 %v3983, 7
    %v3985 = vsub.s32 %v3982, %v3984
    %v3986 = vrot.slane %v3978, %v3985
    %v3988 = vunpack.c.l.s4 1934713408
    %v3989 = vunpack.c.0.s8 %v3988
    %v3990 = vlaneseq
    %v3991 = vshrl.u32 %v3990, 7
    %v3992 = vsub.s32 %v3989, %v3991
    %v3993 = vrot.slane %v3979, %v3992
    %v3994 = vcombine.low %v3962, %v3977
    %v3995 = vcombine.high %v3962, %v3977
    %v3997 = vunpack.c.l.s4 1934713408
    %v3998 = vunpack.c.0.s8 %v3997
    %v3999 = vlaneseq
    %v4000 = vshrl.u32 %v3999, 7
    %v4001 = vsub.s32 %v3998, %v4000
    %v4002 = vrot.slane %v3994, %v4001
    %v4004 = vunpack.c.l.s4 1934713408
    %v4005 = vunpack.c.0.s8 %v4004
    %v4006 = vlaneseq
    %v4007 = vshrl.u32 %v4006, 7
    %v4008 = vsub.s32 %v4005, %v4007
    %v4009 = vrot.slane %v3995, %v4008
    %v4010 = vcombine.high %v3986, 0
    %v4011 = vcombine.high %v3993, 0
    %v4012 = vcombine.high %v4002, 0
    %v4013 = vcombine.high %v4009, 0
    %v4014 = vcombine.high %v3938, %v518
    %v4016 = vunpack.c.l.s4 1983009808
    %v4017 = vunpack.c.0.s8 %v4016
    %v4018 = vlaneseq
    %v4019 = vshrl.u32 %v4018, 7
    %v4020 = vsub.s32 %v4017, %v4019
    %v4021 = vrot.slane %v3938, %v4020
    %v4023 = vunpack.c.l.s4 1983009808
    %v4024 = vunpack.c.0.s8 %v4023
    %v4025 = vlaneseq
    %v4026 = vshrl.u32 %v4025, 7
    %v4027 = vsub.s32 %v4024, %v4026
    %v4028 = vrot.slane %v4014, %v4027
    %v4029 = vcombine.high %v3946, %v518
    %v4031 = vunpack.c.l.s4 1983009808
    %v4032 = vunpack.c.0.s8 %v4031
    %v4033 = vlaneseq
    %v4034 = vshrl.u32 %v4033, 7
    %v4035 = vsub.s32 %v4032, %v4034
    %v4036 = vrot.slane %v3946, %v4035
    %v4038 = vunpack.c.l.s4 1983009808
    %v4039 = vunpack.c.0.s8 %v4038
    %v4040 = vlaneseq
    %v4041 = vshrl.u32 %v4040, 7
    %v4042 = vsub.s32 %v4039, %v4041
    %v4043 = vrot.slane %v4029, %v4042
    %v4044 = vcombine.low %v4021, %v4036
    %v4045 = vcombine.high %v4021, %v4036
    %v4047 = vunpack.c.l.s4 1934713408
    %v4048 = vunpack.c.0.s8 %v4047
    %v4049 = vlaneseq
    %v4050 = vshrl.u32 %v4049, 7
    %v4051 = vsub.s32 %v4048, %v4050
    %v4052 = vrot.slane %v4044, %v4051
    %v4054 = vunpack.c.l.s4 1934713408
    %v4055 = vunpack.c.0.s8 %v4054
    %v4056 = vlaneseq
    %v4057 = vshrl.u32 %v4056, 7
    %v4058 = vsub.s32 %v4055, %v4057
    %v4059 = vrot.slane %v4045, %v4058
    %v4060 = vcombine.low %v4028, %v4043
    %v4061 = vcombine.high %v4028, %v4043
    %v4063 = vunpack.c.l.s4 1934713408
    %v4064 = vunpack.c.0.s8 %v4063
    %v4065 = vlaneseq
    %v4066 = vshrl.u32 %v4065, 7
    %v4067 = vsub.s32 %v4064, %v4066
    %v4068 = vrot.slane %v4060, %v4067
    %v4070 = vunpack.c.l.s4 1934713408
    %v4071 = vunpack.c.0.s8 %v4070
    %v4072 = vlaneseq
    %v4073 = vshrl.u32 %v4072, 7
    %v4074 = vsub.s32 %v4071, %v4073
    %v4075 = vrot.slane %v4061, %v4074
    %v4076 = vcombine.high %v4052, 0
    %v4077 = vcombine.high %v4059, 0
    %v4078 = vcombine.high %v4068, 0
    %v4079 = vcombine.high %v4075, 0
    %v4080 = vcombine.low %v3986, %v3993
    %v4082 = vunpack.c.l.s4 1983009808
    %v4083 = vunpack.c.0.s8 %v4082
    %v4084 = vlaneseq
    %v4085 = vshrl.u32 %v4084, 7
    %v4086 = vsub.s32 %v4083, %v4085
    %v4087 = vrot.slane %v4080, %v4086
    %v4088 = vcombine.low %v4010, %v4011
    %v4090 = vunpack.c.l.s4 1983009808
    %v4091 = vunpack.c.0.s8 %v4090
    %v4092 = vlaneseq
    %v4093 = vshrl.u32 %v4092, 7
    %v4094 = vsub.s32 %v4091, %v4093
    %v4095 = vrot.slane %v4088, %v4094
    %v4096 = vcombine.low %v4002, %v4009
    %v4098 = vunpack.c.l.s4 1983009808
    %v4099 = vunpack.c.0.s8 %v4098
    %v4100 = vlaneseq
    %v4101 = vshrl.u32 %v4100, 7
    %v4102 = vsub.s32 %v4099, %v4101
    %v4103 = vrot.slane %v4096, %v4102
    %v4104 = vcombine.low %v4012, %v4013
    %v4106 = vunpack.c.l.s4 1983009808
    %v4107 = vunpack.c.0.s8 %v4106
    %v4108 = vlaneseq
    %v4109 = vshrl.u32 %v4108, 7
    %v4110 = vsub.s32 %v4107, %v4109
    %v4111 = vrot.slane %v4104, %v4110
    %v4112 = vcombine.low %v4087, %v4095
    %v4114 = vunpack.c.l.s4 1934713408
    %v4115 = vunpack.c.0.s8 %v4114
    %v4116 = vlaneseq
    %v4117 = vshrl.u32 %v4116, 7
    %v4118 = vsub.s32 %v4115, %v4117
    %v4119 = vrot.slane %v4112, %v4118
    %v4120 = vcombine.low %v4103, %v4111
    %v4122 = vunpack.c.l.s4 1934713408
    %v4123 = vunpack.c.0.s8 %v4122
    %v4124 = vlaneseq
    %v4125 = vshrl.u32 %v4124, 7
    %v4126 = vsub.s32 %v4123, %v4125
    %v4127 = vrot.slane %v4120, %v4126
    %v4128 = vcombine.low %v4119, %v4127
    %v4129 = vcombine.high %v4119, %v4127
    %v4130 = vcombine.low %v4052, %v4059
    %v4132 = vunpack.c.l.s4 1983009808
    %v4133 = vunpack.c.0.s8 %v4132
    %v4134 = vlaneseq
    %v4135 = vshrl.u32 %v4134, 7
    %v4136 = vsub.s32 %v4133, %v4135
    %v4137 = vrot.slane %v4130, %v4136
    %v4138 = vcombine.low %v4076, %v4077
    %v4140 = vunpack.c.l.s4 1983009808
    %v4141 = vunpack.c.0.s8 %v4140
    %v4142 = vlaneseq
    %v4143 = vshrl.u32 %v4142, 7
    %v4144 = vsub.s32 %v4141, %v4143
    %v4145 = vrot.slane %v4138, %v4144
    %v4146 = vcombine.low %v4068, %v4075
    %v4148 = vunpack.c.l.s4 1983009808
    %v4149 = vunpack.c.0.s8 %v4148
    %v4150 = vlaneseq
    %v4151 = vshrl.u32 %v4150, 7
    %v4152 = vsub.s32 %v4149, %v4151
    %v4153 = vrot.slane %v4146, %v4152
    %v4154 = vcombine.low %v4078, %v4079
    %v4156 = vunpack.c.l.s4 1983009808
    %v4157 = vunpack.c.0.s8 %v4156
    %v4158 = vlaneseq
    %v4159 = vshrl.u32 %v4158, 7
    %v4160 = vsub.s32 %v4157, %v4159
    %v4161 = vrot.slane %v4154, %v4160
    %v4162 = vcombine.low %v4137, %v4145
    %v4164 = vunpack.c.l.s4 1934713408
    %v4165 = vunpack.c.0.s8 %v4164
    %v4166 = vlaneseq
    %v4167 = vshrl.u32 %v4166, 7
    %v4168 = vsub.s32 %v4165, %v4167
    %v4169 = vrot.slane %v4162, %v4168
    %v4170 = vcombine.low %v4153, %v4161
    %v4172 = vunpack.c.l.s4 1934713408
    %v4173 = vunpack.c.0.s8 %v4172
    %v4174 = vlaneseq
    %v4175 = vshrl.u32 %v4174, 7
    %v4176 = vsub.s32 %v4173, %v4175
    %v4177 = vrot.slane %v4170, %v4176
    %v4178 = vcombine.low %v4169, %v4177
    %v4179 = vcombine.high %v4169, %v4177
    %v4182 = vpack.i.b16 %v4178, %v4128
    %v4183 = vshrl.u32 %v4128, 16
    %v4184 = vshrl.u32 %v4178, 16
    %v4185 = vpack.i.b16 %v4184, %v4183
    %v4188 = vpack.i.b16 %v4179, %v4129
    %v4189 = vshrl.u32 %v4129, 16
    %v4190 = vshrl.u32 %v4179, 16
    %v4191 = vpack.i.b16 %v4190, %v4189
    %4193 = vrot.lane.b32.xlu0 %v3921, 96
    %v4194 = vpop.permute.xlu0 %4193
    %4195 = vrot.lane.b32.xlu0 %v3921, 64
    %v4196 = vpop.permute.xlu0 %4195
    %4197 = vrot.lane.b32.xlu0 %v3921, 32
    %v4198 = vpop.permute.xlu0 %4197
    %v4201 = vpack.i.b16 %v4194, %v3921
    %v4203 = vshrl.u32 %v3921, 16
    %v4204 = vshrl.u32 %v4194, 16
    %v4205 = vpack.i.b16 %v4204, %v4203
    %v4209 = vpack.i.b16 %v4198, %v4196
    %v4211 = vshrl.u32 %v4196, 16
    %v4212 = vshrl.u32 %v4198, 16
    %v4213 = vpack.i.b16 %v4212, %v4211
    %v4215 = vcombine.high %v4201, %v515
    %v4217 = vunpack.c.l.s4 1983009808
    %v4218 = vunpack.c.0.s8 %v4217
    %v4219 = vlaneseq
    %v4220 = vshrl.u32 %v4219, 7
    %v4221 = vsub.s32 %v4218, %v4220
    %v4222 = vrot.slane %v4201, %v4221
    %v4224 = vunpack.c.l.s4 1983009808
    %v4225 = vunpack.c.0.s8 %v4224
    %v4226 = vlaneseq
    %v4227 = vshrl.u32 %v4226, 7
    %v4228 = vsub.s32 %v4225, %v4227
    %v4229 = vrot.slane %v4215, %v4228
    %v4230 = vcombine.high %v4209, %v515
    %v4232 = vunpack.c.l.s4 1983009808
    %v4233 = vunpack.c.0.s8 %v4232
    %v4234 = vlaneseq
    %v4235 = vshrl.u32 %v4234, 7
    %v4236 = vsub.s32 %v4233, %v4235
    %v4237 = vrot.slane %v4209, %v4236
    %v4239 = vunpack.c.l.s4 1983009808
    %v4240 = vunpack.c.0.s8 %v4239
    %v4241 = vlaneseq
    %v4242 = vshrl.u32 %v4241, 7
    %v4243 = vsub.s32 %v4240, %v4242
    %v4244 = vrot.slane %v4230, %v4243
    %v4245 = vcombine.low %v4222, %v4237
    %v4246 = vcombine.high %v4222, %v4237
    %v4248 = vunpack.c.l.s4 1934713408
    %v4249 = vunpack.c.0.s8 %v4248
    %v4250 = vlaneseq
    %v4251 = vshrl.u32 %v4250, 7
    %v4252 = vsub.s32 %v4249, %v4251
    %v4253 = vrot.slane %v4245, %v4252
    %v4255 = vunpack.c.l.s4 1934713408
    %v4256 = vunpack.c.0.s8 %v4255
    %v4257 = vlaneseq
    %v4258 = vshrl.u32 %v4257, 7
    %v4259 = vsub.s32 %v4256, %v4258
    %v4260 = vrot.slane %v4246, %v4259
    %v4261 = vcombine.low %v4229, %v4244
    %v4262 = vcombine.high %v4229, %v4244
    %v4264 = vunpack.c.l.s4 1934713408
    %v4265 = vunpack.c.0.s8 %v4264
    %v4266 = vlaneseq
    %v4267 = vshrl.u32 %v4266, 7
    %v4268 = vsub.s32 %v4265, %v4267
    %v4269 = vrot.slane %v4261, %v4268
    %v4271 = vunpack.c.l.s4 1934713408
    %v4272 = vunpack.c.0.s8 %v4271
    %v4273 = vlaneseq
    %v4274 = vshrl.u32 %v4273, 7
    %v4275 = vsub.s32 %v4272, %v4274
    %v4276 = vrot.slane %v4262, %v4275
    %v4277 = vcombine.high %v4253, 0
    %v4278 = vcombine.high %v4260, 0
    %v4279 = vcombine.high %v4269, 0
    %v4280 = vcombine.high %v4276, 0
    %v4281 = vcombine.high %v4205, %v518
    %v4283 = vunpack.c.l.s4 1983009808
    %v4284 = vunpack.c.0.s8 %v4283
    %v4285 = vlaneseq
    %v4286 = vshrl.u32 %v4285, 7
    %v4287 = vsub.s32 %v4284, %v4286
    %v4288 = vrot.slane %v4205, %v4287
    %v4290 = vunpack.c.l.s4 1983009808
    %v4291 = vunpack.c.0.s8 %v4290
    %v4292 = vlaneseq
    %v4293 = vshrl.u32 %v4292, 7
    %v4294 = vsub.s32 %v4291, %v4293
    %v4295 = vrot.slane %v4281, %v4294
    %v4296 = vcombine.high %v4213, %v518
    %v4298 = vunpack.c.l.s4 1983009808
    %v4299 = vunpack.c.0.s8 %v4298
    %v4300 = vlaneseq
    %v4301 = vshrl.u32 %v4300, 7
    %v4302 = vsub.s32 %v4299, %v4301
    %v4303 = vrot.slane %v4213, %v4302
    %v4305 = vunpack.c.l.s4 1983009808
    %v4306 = vunpack.c.0.s8 %v4305
    %v4307 = vlaneseq
    %v4308 = vshrl.u32 %v4307, 7
    %v4309 = vsub.s32 %v4306, %v4308
    %v4310 = vrot.slane %v4296, %v4309
    %v4311 = vcombine.low %v4288, %v4303
    %v4312 = vcombine.high %v4288, %v4303
    %v4314 = vunpack.c.l.s4 1934713408
    %v4315 = vunpack.c.0.s8 %v4314
    %v4316 = vlaneseq
    %v4317 = vshrl.u32 %v4316, 7
    %v4318 = vsub.s32 %v4315, %v4317
    %v4319 = vrot.slane %v4311, %v4318
    %v4321 = vunpack.c.l.s4 1934713408
    %v4322 = vunpack.c.0.s8 %v4321
    %v4323 = vlaneseq
    %v4324 = vshrl.u32 %v4323, 7
    %v4325 = vsub.s32 %v4322, %v4324
    %v4326 = vrot.slane %v4312, %v4325
    %v4327 = vcombine.low %v4295, %v4310
    %v4328 = vcombine.high %v4295, %v4310
    %v4330 = vunpack.c.l.s4 1934713408
    %v4331 = vunpack.c.0.s8 %v4330
    %v4332 = vlaneseq
    %v4333 = vshrl.u32 %v4332, 7
    %v4334 = vsub.s32 %v4331, %v4333
    %v4335 = vrot.slane %v4327, %v4334
    %v4337 = vunpack.c.l.s4 1934713408
    %v4338 = vunpack.c.0.s8 %v4337
    %v4339 = vlaneseq
    %v4340 = vshrl.u32 %v4339, 7
    %v4341 = vsub.s32 %v4338, %v4340
    %v4342 = vrot.slane %v4328, %v4341
    %v4343 = vcombine.high %v4319, 0
    %v4344 = vcombine.high %v4326, 0
    %v4345 = vcombine.high %v4335, 0
    %v4346 = vcombine.high %v4342, 0
    %v4347 = vcombine.low %v4253, %v4260
    %v4349 = vunpack.c.l.s4 1983009808
    %v4350 = vunpack.c.0.s8 %v4349
    %v4351 = vlaneseq
    %v4352 = vshrl.u32 %v4351, 7
    %v4353 = vsub.s32 %v4350, %v4352
    %v4354 = vrot.slane %v4347, %v4353
    %v4355 = vcombine.low %v4277, %v4278
    %v4357 = vunpack.c.l.s4 1983009808
    %v4358 = vunpack.c.0.s8 %v4357
    %v4359 = vlaneseq
    %v4360 = vshrl.u32 %v4359, 7
    %v4361 = vsub.s32 %v4358, %v4360
    %v4362 = vrot.slane %v4355, %v4361
    %v4363 = vcombine.low %v4269, %v4276
    %v4365 = vunpack.c.l.s4 1983009808
    %v4366 = vunpack.c.0.s8 %v4365
    %v4367 = vlaneseq
    %v4368 = vshrl.u32 %v4367, 7
    %v4369 = vsub.s32 %v4366, %v4368
    %v4370 = vrot.slane %v4363, %v4369
    %v4371 = vcombine.low %v4279, %v4280
    %v4373 = vunpack.c.l.s4 1983009808
    %v4374 = vunpack.c.0.s8 %v4373
    %v4375 = vlaneseq
    %v4376 = vshrl.u32 %v4375, 7
    %v4377 = vsub.s32 %v4374, %v4376
    %v4378 = vrot.slane %v4371, %v4377
    %v4379 = vcombine.low %v4354, %v4362
    %v4381 = vunpack.c.l.s4 1934713408
    %v4382 = vunpack.c.0.s8 %v4381
    %v4383 = vlaneseq
    %v4384 = vshrl.u32 %v4383, 7
    %v4385 = vsub.s32 %v4382, %v4384
    %v4386 = vrot.slane %v4379, %v4385
    %v4387 = vcombine.low %v4370, %v4378
    %v4389 = vunpack.c.l.s4 1934713408
    %v4390 = vunpack.c.0.s8 %v4389
    %v4391 = vlaneseq
    %v4392 = vshrl.u32 %v4391, 7
    %v4393 = vsub.s32 %v4390, %v4392
    %v4394 = vrot.slane %v4387, %v4393
    %v4395 = vcombine.low %v4386, %v4394
    %v4396 = vcombine.high %v4386, %v4394
    %v4397 = vcombine.low %v4319, %v4326
    %v4399 = vunpack.c.l.s4 1983009808
    %v4400 = vunpack.c.0.s8 %v4399
    %v4401 = vlaneseq
    %v4402 = vshrl.u32 %v4401, 7
    %v4403 = vsub.s32 %v4400, %v4402
    %v4404 = vrot.slane %v4397, %v4403
    %v4405 = vcombine.low %v4343, %v4344
    %v4407 = vunpack.c.l.s4 1983009808
    %v4408 = vunpack.c.0.s8 %v4407
    %v4409 = vlaneseq
    %v4410 = vshrl.u32 %v4409, 7
    %v4411 = vsub.s32 %v4408, %v4410
    %v4412 = vrot.slane %v4405, %v4411
    %v4413 = vcombine.low %v4335, %v4342
    %v4415 = vunpack.c.l.s4 1983009808
    %v4416 = vunpack.c.0.s8 %v4415
    %v4417 = vlaneseq
    %v4418 = vshrl.u32 %v4417, 7
    %v4419 = vsub.s32 %v4416, %v4418
    %v4420 = vrot.slane %v4413, %v4419
    %v4421 = vcombine.low %v4345, %v4346
    %v4423 = vunpack.c.l.s4 1983009808
    %v4424 = vunpack.c.0.s8 %v4423
    %v4425 = vlaneseq
    %v4426 = vshrl.u32 %v4425, 7
    %v4427 = vsub.s32 %v4424, %v4426
    %v4428 = vrot.slane %v4421, %v4427
    %v4429 = vcombine.low %v4404, %v4412
    %v4431 = vunpack.c.l.s4 1934713408
    %v4432 = vunpack.c.0.s8 %v4431
    %v4433 = vlaneseq
    %v4434 = vshrl.u32 %v4433, 7
    %v4435 = vsub.s32 %v4432, %v4434
    %v4436 = vrot.slane %v4429, %v4435
    %v4437 = vcombine.low %v4420, %v4428
    %v4439 = vunpack.c.l.s4 1934713408
    %v4440 = vunpack.c.0.s8 %v4439
    %v4441 = vlaneseq
    %v4442 = vshrl.u32 %v4441, 7
    %v4443 = vsub.s32 %v4440, %v4442
    %v4444 = vrot.slane %v4437, %v4443
    %v4445 = vcombine.low %v4436, %v4444
    %v4446 = vcombine.high %v4436, %v4444
    %v4449 = vpack.i.b16 %v4445, %v4395
    %v4450 = vshrl.u32 %v4395, 16
    %v4451 = vshrl.u32 %v4445, 16
    %v4452 = vpack.i.b16 %v4451, %v4450
    %v4455 = vpack.i.b16 %v4446, %v4396
    %v4456 = vshrl.u32 %v4396, 16
    %v4457 = vshrl.u32 %v4446, 16
    %v4458 = vpack.i.b16 %v4457, %v4456
    %4460 = vrot.lane.b32.xlu0 %v3922, 96
    %v4461 = vpop.permute.xlu0 %4460
    %4462 = vrot.lane.b32.xlu0 %v3922, 64
    %v4463 = vpop.permute.xlu0 %4462
    %4464 = vrot.lane.b32.xlu0 %v3922, 32
    %v4465 = vpop.permute.xlu0 %4464
    %v4468 = vpack.i.b16 %v4461, %v3922
    %v4470 = vshrl.u32 %v3922, 16
    %v4471 = vshrl.u32 %v4461, 16
    %v4472 = vpack.i.b16 %v4471, %v4470
    %v4476 = vpack.i.b16 %v4465, %v4463
    %v4478 = vshrl.u32 %v4463, 16
    %v4479 = vshrl.u32 %v4465, 16
    %v4480 = vpack.i.b16 %v4479, %v4478
    %v4482 = vcombine.high %v4468, %v515
    %v4484 = vunpack.c.l.s4 1983009808
    %v4485 = vunpack.c.0.s8 %v4484
    %v4486 = vlaneseq
    %v4487 = vshrl.u32 %v4486, 7
    %v4488 = vsub.s32 %v4485, %v4487
    %v4489 = vrot.slane %v4468, %v4488
    %v4491 = vunpack.c.l.s4 1983009808
    %v4492 = vunpack.c.0.s8 %v4491
    %v4493 = vlaneseq
    %v4494 = vshrl.u32 %v4493, 7
    %v4495 = vsub.s32 %v4492, %v4494
    %v4496 = vrot.slane %v4482, %v4495
    %v4497 = vcombine.high %v4476, %v515
    %v4499 = vunpack.c.l.s4 1983009808
    %v4500 = vunpack.c.0.s8 %v4499
    %v4501 = vlaneseq
    %v4502 = vshrl.u32 %v4501, 7
    %v4503 = vsub.s32 %v4500, %v4502
    %v4504 = vrot.slane %v4476, %v4503
    %v4506 = vunpack.c.l.s4 1983009808
    %v4507 = vunpack.c.0.s8 %v4506
    %v4508 = vlaneseq
    %v4509 = vshrl.u32 %v4508, 7
    %v4510 = vsub.s32 %v4507, %v4509
    %v4511 = vrot.slane %v4497, %v4510
    %v4512 = vcombine.low %v4489, %v4504
    %v4513 = vcombine.high %v4489, %v4504
    %v4515 = vunpack.c.l.s4 1934713408
    %v4516 = vunpack.c.0.s8 %v4515
    %v4517 = vlaneseq
    %v4518 = vshrl.u32 %v4517, 7
    %v4519 = vsub.s32 %v4516, %v4518
    %v4520 = vrot.slane %v4512, %v4519
    %v4522 = vunpack.c.l.s4 1934713408
    %v4523 = vunpack.c.0.s8 %v4522
    %v4524 = vlaneseq
    %v4525 = vshrl.u32 %v4524, 7
    %v4526 = vsub.s32 %v4523, %v4525
    %v4527 = vrot.slane %v4513, %v4526
    %v4528 = vcombine.low %v4496, %v4511
    %v4529 = vcombine.high %v4496, %v4511
    %v4531 = vunpack.c.l.s4 1934713408
    %v4532 = vunpack.c.0.s8 %v4531
    %v4533 = vlaneseq
    %v4534 = vshrl.u32 %v4533, 7
    %v4535 = vsub.s32 %v4532, %v4534
    %v4536 = vrot.slane %v4528, %v4535
    %v4538 = vunpack.c.l.s4 1934713408
    %v4539 = vunpack.c.0.s8 %v4538
    %v4540 = vlaneseq
    %v4541 = vshrl.u32 %v4540, 7
    %v4542 = vsub.s32 %v4539, %v4541
    %v4543 = vrot.slane %v4529, %v4542
    %v4544 = vcombine.high %v4520, 0
    %v4545 = vcombine.high %v4527, 0
    %v4546 = vcombine.high %v4536, 0
    %v4547 = vcombine.high %v4543, 0
    %v4548 = vcombine.high %v4472, %v518
    %v4550 = vunpack.c.l.s4 1983009808
    %v4551 = vunpack.c.0.s8 %v4550
    %v4552 = vlaneseq
    %v4553 = vshrl.u32 %v4552, 7
    %v4554 = vsub.s32 %v4551, %v4553
    %v4555 = vrot.slane %v4472, %v4554
    %v4557 = vunpack.c.l.s4 1983009808
    %v4558 = vunpack.c.0.s8 %v4557
    %v4559 = vlaneseq
    %v4560 = vshrl.u32 %v4559, 7
    %v4561 = vsub.s32 %v4558, %v4560
    %v4562 = vrot.slane %v4548, %v4561
    %v4563 = vcombine.high %v4480, %v518
    %v4565 = vunpack.c.l.s4 1983009808
    %v4566 = vunpack.c.0.s8 %v4565
    %v4567 = vlaneseq
    %v4568 = vshrl.u32 %v4567, 7
    %v4569 = vsub.s32 %v4566, %v4568
    %v4570 = vrot.slane %v4480, %v4569
    %v4572 = vunpack.c.l.s4 1983009808
    %v4573 = vunpack.c.0.s8 %v4572
    %v4574 = vlaneseq
    %v4575 = vshrl.u32 %v4574, 7
    %v4576 = vsub.s32 %v4573, %v4575
    %v4577 = vrot.slane %v4563, %v4576
    %v4578 = vcombine.low %v4555, %v4570
    %v4579 = vcombine.high %v4555, %v4570
    %v4581 = vunpack.c.l.s4 1934713408
    %v4582 = vunpack.c.0.s8 %v4581
    %v4583 = vlaneseq
    %v4584 = vshrl.u32 %v4583, 7
    %v4585 = vsub.s32 %v4582, %v4584
    %v4586 = vrot.slane %v4578, %v4585
    %v4588 = vunpack.c.l.s4 1934713408
    %v4589 = vunpack.c.0.s8 %v4588
    %v4590 = vlaneseq
    %v4591 = vshrl.u32 %v4590, 7
    %v4592 = vsub.s32 %v4589, %v4591
    %v4593 = vrot.slane %v4579, %v4592
    %v4594 = vcombine.low %v4562, %v4577
    %v4595 = vcombine.high %v4562, %v4577
    %v4597 = vunpack.c.l.s4 1934713408
    %v4598 = vunpack.c.0.s8 %v4597
    %v4599 = vlaneseq
    %v4600 = vshrl.u32 %v4599, 7
    %v4601 = vsub.s32 %v4598, %v4600
    %v4602 = vrot.slane %v4594, %v4601
    %v4604 = vunpack.c.l.s4 1934713408
    %v4605 = vunpack.c.0.s8 %v4604
    %v4606 = vlaneseq
    %v4607 = vshrl.u32 %v4606, 7
    %v4608 = vsub.s32 %v4605, %v4607
    %v4609 = vrot.slane %v4595, %v4608
    %v4610 = vcombine.high %v4586, 0
    %v4611 = vcombine.high %v4593, 0
    %v4612 = vcombine.high %v4602, 0
    %v4613 = vcombine.high %v4609, 0
    %v4614 = vcombine.low %v4520, %v4527
    %v4616 = vunpack.c.l.s4 1983009808
    %v4617 = vunpack.c.0.s8 %v4616
    %v4618 = vlaneseq
    %v4619 = vshrl.u32 %v4618, 7
    %v4620 = vsub.s32 %v4617, %v4619
    %v4621 = vrot.slane %v4614, %v4620
    %v4622 = vcombine.low %v4544, %v4545
    %v4624 = vunpack.c.l.s4 1983009808
    %v4625 = vunpack.c.0.s8 %v4624
    %v4626 = vlaneseq
    %v4627 = vshrl.u32 %v4626, 7
    %v4628 = vsub.s32 %v4625, %v4627
    %v4629 = vrot.slane %v4622, %v4628
    %v4630 = vcombine.low %v4536, %v4543
    %v4632 = vunpack.c.l.s4 1983009808
    %v4633 = vunpack.c.0.s8 %v4632
    %v4634 = vlaneseq
    %v4635 = vshrl.u32 %v4634, 7
    %v4636 = vsub.s32 %v4633, %v4635
    %v4637 = vrot.slane %v4630, %v4636
    %v4638 = vcombine.low %v4546, %v4547
    %v4640 = vunpack.c.l.s4 1983009808
    %v4641 = vunpack.c.0.s8 %v4640
    %v4642 = vlaneseq
    %v4643 = vshrl.u32 %v4642, 7
    %v4644 = vsub.s32 %v4641, %v4643
    %v4645 = vrot.slane %v4638, %v4644
    %v4646 = vcombine.low %v4621, %v4629
    %v4648 = vunpack.c.l.s4 1934713408
    %v4649 = vunpack.c.0.s8 %v4648
    %v4650 = vlaneseq
    %v4651 = vshrl.u32 %v4650, 7
    %v4652 = vsub.s32 %v4649, %v4651
    %v4653 = vrot.slane %v4646, %v4652
    %v4654 = vcombine.low %v4637, %v4645
    %v4656 = vunpack.c.l.s4 1934713408
    %v4657 = vunpack.c.0.s8 %v4656
    %v4658 = vlaneseq
    %v4659 = vshrl.u32 %v4658, 7
    %v4660 = vsub.s32 %v4657, %v4659
    %v4661 = vrot.slane %v4654, %v4660
    %v4662 = vcombine.low %v4653, %v4661
    %v4663 = vcombine.high %v4653, %v4661
    %v4664 = vcombine.low %v4586, %v4593
    %v4666 = vunpack.c.l.s4 1983009808
    %v4667 = vunpack.c.0.s8 %v4666
    %v4668 = vlaneseq
    %v4669 = vshrl.u32 %v4668, 7
    %v4670 = vsub.s32 %v4667, %v4669
    %v4671 = vrot.slane %v4664, %v4670
    %v4672 = vcombine.low %v4610, %v4611
    %v4674 = vunpack.c.l.s4 1983009808
    %v4675 = vunpack.c.0.s8 %v4674
    %v4676 = vlaneseq
    %v4677 = vshrl.u32 %v4676, 7
    %v4678 = vsub.s32 %v4675, %v4677
    %v4679 = vrot.slane %v4672, %v4678
    %v4680 = vcombine.low %v4602, %v4609
    %v4682 = vunpack.c.l.s4 1983009808
    %v4683 = vunpack.c.0.s8 %v4682
    %v4684 = vlaneseq
    %v4685 = vshrl.u32 %v4684, 7
    %v4686 = vsub.s32 %v4683, %v4685
    %v4687 = vrot.slane %v4680, %v4686
    %v4688 = vcombine.low %v4612, %v4613
    %v4690 = vunpack.c.l.s4 1983009808
    %v4691 = vunpack.c.0.s8 %v4690
    %v4692 = vlaneseq
    %v4693 = vshrl.u32 %v4692, 7
    %v4694 = vsub.s32 %v4691, %v4693
    %v4695 = vrot.slane %v4688, %v4694
    %v4696 = vcombine.low %v4671, %v4679
    %v4698 = vunpack.c.l.s4 1934713408
    %v4699 = vunpack.c.0.s8 %v4698
    %v4700 = vlaneseq
    %v4701 = vshrl.u32 %v4700, 7
    %v4702 = vsub.s32 %v4699, %v4701
    %v4703 = vrot.slane %v4696, %v4702
    %v4704 = vcombine.low %v4687, %v4695
    %v4706 = vunpack.c.l.s4 1934713408
    %v4707 = vunpack.c.0.s8 %v4706
    %v4708 = vlaneseq
    %v4709 = vshrl.u32 %v4708, 7
    %v4710 = vsub.s32 %v4707, %v4709
    %v4711 = vrot.slane %v4704, %v4710
    %v4712 = vcombine.low %v4703, %v4711
    %v4713 = vcombine.high %v4703, %v4711
    %v4716 = vpack.i.b16 %v4712, %v4662
    %v4718 = vshrl.u32 %v4662, 16
    %v4719 = vshrl.u32 %v4712, 16
    %v4720 = vpack.i.b16 %v4719, %v4718
    %v4724 = vpack.i.b16 %v4713, %v4663
    %v4726 = vshrl.u32 %v4663, 16
    %v4727 = vshrl.u32 %v4713, 16
    %v4728 = vpack.i.b16 %v4727, %v4726
    %v4731 = vsel %vm424, %v4182, 0
    %v4734 = vsel %vm424, %v4449, 0
    %4736 = vmatprep.subr.bf16.mxu0 0
    %4737 = vmatpush1.bf16.xpose.msra.mxu0 %v4734
    %4738 = vmatprep.subr.bf16.mxu0 0
    %4739 = vmatpush1.bf16.xpose.msra.mxu0 0
    %4740 = vmatprep.subr.bf16.mxu0 0
    %4741 = vmatpush1.bf16.xpose.msra.mxu0 0
    %4742 = vmatprep.subr.bf16.mxu0 0
    %4743 = vmatpush1.bf16.xpose.msra.mxu0 0
    %4744 = vmatprep.subr.bf16.mxu0 0
    %4745 = vmatpush1.bf16.xpose.msra.mxu0 0
    %4746 = vmatprep.subr.bf16.mxu0 0
    %4747 = vmatpush1.bf16.xpose.msra.mxu0 0
    %4748 = vmatprep.subr.bf16.mxu0 0
    %4749 = vmatpush1.bf16.xpose.msra.mxu0 0
    %4750 = vmatprep.subr.bf16.mxu0 0
    %4751 = vmatpush1.bf16.xpose.msra.mxu0 0
    %4752 = vmatprep.subr.bf16.mxu0 0
    %4753 = vmatpush1.bf16.xpose.msra.mxu0 0
    %4754 = vmatprep.subr.bf16.mxu0 0
    %4755 = vmatpush1.bf16.xpose.msra.mxu0 0
    %4756 = vmatprep.subr.bf16.mxu0 0
    %4757 = vmatpush1.bf16.xpose.msra.mxu0 0
    %4758 = vmatprep.subr.bf16.mxu0 0
    %4759 = vmatpush1.bf16.xpose.msra.mxu0 0
    %4760 = vmatprep.subr.bf16.mxu0 0
    %4761 = vmatpush1.bf16.xpose.msra.mxu0 0
    %4762 = vmatprep.subr.bf16.mxu0 0
    %4763 = vmatpush1.bf16.xpose.msra.mxu0 0
    %4764 = vmatprep.subr.bf16.mxu0 0
    %4765 = vmatpush1.bf16.xpose.msra.mxu0 0
    %4766 = vmatprep.subr.bf16.mxu0 0
    %4767 = vmatpush1.bf16.xpose.msra.mxu0 0
    %4768 = vmatprep.mubr.bf16.mxu0 0
    %4769 = vmatmul.mubr.bf16.gmra.mrb[0].mxu0 %v4731
    %v4770 = vpop.f32.mrb[0].mxu0
    %v4771 = vadd.f32 0.0, %v4770
    %v4772 = vpop.f32.mrb[0].mxu0
    %v4773 = vpop.f32.mrb[0].mxu0
    %v4774 = vadd.f32 0.0, %v4773
    %v4775 = vpop.f32.mrb[0].mxu0
    %4776 = vdwg.mxu0
    %v4778 = vsel %vm424, %v4185, 0
    %v4781 = vsel %vm424, %v4452, 0
    %4783 = vmatprep.subr.bf16.mxu0 0
    %4784 = vmatpush1.bf16.xpose.msra.mxu0 %v4781
    %4785 = vmatprep.subr.bf16.mxu0 0
    %4786 = vmatpush1.bf16.xpose.msra.mxu0 0
    %4787 = vmatprep.subr.bf16.mxu0 0
    %4788 = vmatpush1.bf16.xpose.msra.mxu0 0
    %4789 = vmatprep.subr.bf16.mxu0 0
    %4790 = vmatpush1.bf16.xpose.msra.mxu0 0
    %4791 = vmatprep.subr.bf16.mxu0 0
    %4792 = vmatpush1.bf16.xpose.msra.mxu0 0
    %4793 = vmatprep.subr.bf16.mxu0 0
    %4794 = vmatpush1.bf16.xpose.msra.mxu0 0
    %4795 = vmatprep.subr.bf16.mxu0 0
    %4796 = vmatpush1.bf16.xpose.msra.mxu0 0
    %4797 = vmatprep.subr.bf16.mxu0 0
    %4798 = vmatpush1.bf16.xpose.msra.mxu0 0
    %4799 = vmatprep.subr.bf16.mxu0 0
    %4800 = vmatpush1.bf16.xpose.msra.mxu0 0
    %4801 = vmatprep.subr.bf16.mxu0 0
    %4802 = vmatpush1.bf16.xpose.msra.mxu0 0
    %4803 = vmatprep.subr.bf16.mxu0 0
    %4804 = vmatpush1.bf16.xpose.msra.mxu0 0
    %4805 = vmatprep.subr.bf16.mxu0 0
    %4806 = vmatpush1.bf16.xpose.msra.mxu0 0
    %4807 = vmatprep.subr.bf16.mxu0 0
    %4808 = vmatpush1.bf16.xpose.msra.mxu0 0
    %4809 = vmatprep.subr.bf16.mxu0 0
    %4810 = vmatpush1.bf16.xpose.msra.mxu0 0
    %4811 = vmatprep.subr.bf16.mxu0 0
    %4812 = vmatpush1.bf16.xpose.msra.mxu0 0
    %4813 = vmatprep.subr.bf16.mxu0 0
    %4814 = vmatpush1.bf16.xpose.msra.mxu0 0
    %4815 = vmatprep.mubr.bf16.mxu0 0
    %4816 = vmatmul.mubr.bf16.gmra.mrb[0].mxu0 %v4778
    %v4817 = vpop.f32.mrb[0].mxu0
    %v4818 = vadd.f32 0.0, %v4817
    %v4819 = vpop.f32.mrb[0].mxu0
    %v4820 = vpop.f32.mrb[0].mxu0
    %v4821 = vadd.f32 0.0, %v4820
    %v4822 = vpop.f32.mrb[0].mxu0
    %4823 = vdwg.mxu0
    %v4825 = vsel %vm424, %v4188, 0
    %v4828 = vsel %vm424, %v4455, 0
    %4830 = vmatprep.subr.bf16.mxu0 0
    %4831 = vmatpush1.bf16.xpose.msra.mxu0 %v4828
    %4832 = vmatprep.subr.bf16.mxu0 0
    %4833 = vmatpush1.bf16.xpose.msra.mxu0 0
    %4834 = vmatprep.subr.bf16.mxu0 0
    %4835 = vmatpush1.bf16.xpose.msra.mxu0 0
    %4836 = vmatprep.subr.bf16.mxu0 0
    %4837 = vmatpush1.bf16.xpose.msra.mxu0 0
    %4838 = vmatprep.subr.bf16.mxu0 0
    %4839 = vmatpush1.bf16.xpose.msra.mxu0 0
    %4840 = vmatprep.subr.bf16.mxu0 0
    %4841 = vmatpush1.bf16.xpose.msra.mxu0 0
    %4842 = vmatprep.subr.bf16.mxu0 0
    %4843 = vmatpush1.bf16.xpose.msra.mxu0 0
    %4844 = vmatprep.subr.bf16.mxu0 0
    %4845 = vmatpush1.bf16.xpose.msra.mxu0 0
    %4846 = vmatprep.subr.bf16.mxu0 0
    %4847 = vmatpush1.bf16.xpose.msra.mxu0 0
    %4848 = vmatprep.subr.bf16.mxu0 0
    %4849 = vmatpush1.bf16.xpose.msra.mxu0 0
    %4850 = vmatprep.subr.bf16.mxu0 0
    %4851 = vmatpush1.bf16.xpose.msra.mxu0 0
    %4852 = vmatprep.subr.bf16.mxu0 0
    %4853 = vmatpush1.bf16.xpose.msra.mxu0 0
    %4854 = vmatprep.subr.bf16.mxu0 0
    %4855 = vmatpush1.bf16.xpose.msra.mxu0 0
    %4856 = vmatprep.subr.bf16.mxu0 0
    %4857 = vmatpush1.bf16.xpose.msra.mxu0 0
    %4858 = vmatprep.subr.bf16.mxu0 0
    %4859 = vmatpush1.bf16.xpose.msra.mxu0 0
    %4860 = vmatprep.subr.bf16.mxu0 0
    %4861 = vmatpush1.bf16.xpose.msra.mxu0 0
    %4862 = vmatprep.mubr.bf16.mxu0 0
    %4863 = vmatmul.mubr.bf16.gmra.mrb[0].mxu0 %v4825
    %v4864 = vpop.f32.mrb[0].mxu0
    %v4865 = vadd.f32 0.0, %v4864
    %v4866 = vpop.f32.mrb[0].mxu0
    %v4867 = vpop.f32.mrb[0].mxu0
    %v4868 = vadd.f32 0.0, %v4867
    %v4869 = vpop.f32.mrb[0].mxu0
    %4870 = vdwg.mxu0
    %v4872 = vsel %vm424, %v4191, 0
    %v4875 = vsel %vm424, %v4458, 0
    %4877 = vmatprep.subr.bf16.mxu0 0
    %4878 = vmatpush1.bf16.xpose.msra.mxu0 %v4875
    %4879 = vmatprep.subr.bf16.mxu0 0
    %4880 = vmatpush1.bf16.xpose.msra.mxu0 0
    %4881 = vmatprep.subr.bf16.mxu0 0
    %4882 = vmatpush1.bf16.xpose.msra.mxu0 0
    %4883 = vmatprep.subr.bf16.mxu0 0
    %4884 = vmatpush1.bf16.xpose.msra.mxu0 0
    %4885 = vmatprep.subr.bf16.mxu0 0
    %4886 = vmatpush1.bf16.xpose.msra.mxu0 0
    %4887 = vmatprep.subr.bf16.mxu0 0
    %4888 = vmatpush1.bf16.xpose.msra.mxu0 0
    %4889 = vmatprep.subr.bf16.mxu0 0
    %4890 = vmatpush1.bf16.xpose.msra.mxu0 0
    %4891 = vmatprep.subr.bf16.mxu0 0
    %4892 = vmatpush1.bf16.xpose.msra.mxu0 0
    %4893 = vmatprep.subr.bf16.mxu0 0
    %4894 = vmatpush1.bf16.xpose.msra.mxu0 0
    %4895 = vmatprep.subr.bf16.mxu0 0
    %4896 = vmatpush1.bf16.xpose.msra.mxu0 0
    %4897 = vmatprep.subr.bf16.mxu0 0
    %4898 = vmatpush1.bf16.xpose.msra.mxu0 0
    %4899 = vmatprep.subr.bf16.mxu0 0
    %4900 = vmatpush1.bf16.xpose.msra.mxu0 0
    %4901 = vmatprep.subr.bf16.mxu0 0
    %4902 = vmatpush1.bf16.xpose.msra.mxu0 0
    %4903 = vmatprep.subr.bf16.mxu0 0
    %4904 = vmatpush1.bf16.xpose.msra.mxu0 0
    %4905 = vmatprep.subr.bf16.mxu0 0
    %4906 = vmatpush1.bf16.xpose.msra.mxu0 0
    %4907 = vmatprep.subr.bf16.mxu0 0
    %4908 = vmatpush1.bf16.xpose.msra.mxu0 0
    %4909 = vmatprep.mubr.bf16.mxu0 0
    %4910 = vmatmul.mubr.bf16.gmra.mrb[0].mxu0 %v4872
    %v4911 = vpop.f32.mrb[0].mxu0
    %v4912 = vadd.f32 0.0, %v4911
    %v4913 = vpop.f32.mrb[0].mxu0
    %v4914 = vpop.f32.mrb[0].mxu0
    %v4915 = vadd.f32 0.0, %v4914
    %v4916 = vpop.f32.mrb[0].mxu0
    %4917 = vdwg.mxu0
    %v4918 = vmul.f32 %v4771, 0.17677669
    %v4919 = vmul.f32 %v4774, 0.17677669
    %v4920 = vmul.f32 %v4818, 0.17677669
    %v4921 = vmul.f32 %v4821, 0.17677669
    %v4922 = vmul.f32 %v4865, 0.17677669
    %v4923 = vmul.f32 %v4868, 0.17677669
    %v4924 = vmul.f32 %v4912, 0.17677669
    %v4925 = vmul.f32 %v4915, 0.17677669
    %v4926 = vadd.f32 %v4918, %v3923
    %v4927 = vadd.f32 %v4919, %v3924
    %v4928 = vadd.f32 %v4920, %v3923
    %v4929 = vadd.f32 %v4921, %v3924
    %v4930 = vadd.f32 %v4922, %v3923
    %v4931 = vadd.f32 %v4923, %v3924
    %v4932 = vadd.f32 %v4924, %v3923
    %v4933 = vadd.f32 %v4925, %v3924
    %vm4934 = vcmask 130048
    %v4935 = vsel %vm4934, %v4926, -inf
    %4936 = vmax.xlane.f32.xlu0 %v4935
    %v4937 = vpop.xlane.xlu0 %4936
    %v4938 = vsel %vm4934, %v4927, -inf
    %4939 = vmax.xlane.f32.xlu0 %v4938
    %v4940 = vpop.xlane.xlu0 %4939
    %v4941 = vsel %vm4934, %v4928, -inf
    %4942 = vmax.xlane.f32.xlu0 %v4941
    %v4943 = vpop.xlane.xlu0 %4942
    %v4944 = vsel %vm4934, %v4929, -inf
    %4945 = vmax.xlane.f32.xlu0 %v4944
    %v4946 = vpop.xlane.xlu0 %4945
    %v4947 = vsel %vm4934, %v4930, -inf
    %4948 = vmax.xlane.f32.xlu0 %v4947
    %v4949 = vpop.xlane.xlu0 %4948
    %v4950 = vsel %vm4934, %v4931, -inf
    %4951 = vmax.xlane.f32.xlu0 %v4950
    %v4952 = vpop.xlane.xlu0 %4951
    %v4953 = vsel %vm4934, %v4932, -inf
    %4954 = vmax.xlane.f32.xlu0 %v4953
    %v4955 = vpop.xlane.xlu0 %4954
    %v4956 = vsel %vm4934, %v4933, -inf
    %4957 = vmax.xlane.f32.xlu0 %v4956
    %v4958 = vpop.xlane.xlu0 %4957
    %v4959 = vsub.f32 %v4926, %v4937
    %v4960 = vsub.f32 %v4927, %v4940
    %v4961 = vsub.f32 %v4928, %v4943
    %v4962 = vsub.f32 %v4929, %v4946
    %v4963 = vsub.f32 %v4930, %v4949
    %v4964 = vsub.f32 %v4931, %v4952
    %v4965 = vsub.f32 %v4932, %v4955
    %v4966 = vsub.f32 %v4933, %v4958
    %v4967 = vmul.f32 %v4959, 1.442695
    %v4968 = vpow.pop %v4967
    %v4969 = vmul.f32 %v4960, 1.442695
    %v4970 = vpow.pop %v4969
    %v4971 = vmul.f32 %v4961, 1.442695
    %v4972 = vpow.pop %v4971
    %v4973 = vmul.f32 %v4962, 1.442695
    %v4974 = vpow.pop %v4973
    %v4975 = vmul.f32 %v4963, 1.442695
    %v4976 = vpow.pop %v4975
    %v4977 = vmul.f32 %v4964, 1.442695
    %v4978 = vpow.pop %v4977
    %v4979 = vmul.f32 %v4965, 1.442695
    %v4980 = vpow.pop %v4979
    %v4981 = vmul.f32 %v4966, 1.442695
    %v4982 = vpow.pop %v4981
    %v4983 = vsel %vm4934, %v4968, 0.0
    %4984 = vadd.xlane.f32.xlu0 %v4983
    %v4985 = vpop.xlane.xlu0 %4984
    %v4986 = vsel %vm4934, %v4970, 0.0
    %4987 = vadd.xlane.f32.xlu0 %v4986
    %v4988 = vpop.xlane.xlu0 %4987
    %v4989 = vsel %vm4934, %v4972, 0.0
    %4990 = vadd.xlane.f32.xlu0 %v4989
    %v4991 = vpop.xlane.xlu0 %4990
    %v4992 = vsel %vm4934, %v4974, 0.0
    %4993 = vadd.xlane.f32.xlu0 %v4992
    %v4994 = vpop.xlane.xlu0 %4993
    %v4995 = vsel %vm4934, %v4976, 0.0
    %4996 = vadd.xlane.f32.xlu0 %v4995
    %v4997 = vpop.xlane.xlu0 %4996
    %v4998 = vsel %vm4934, %v4978, 0.0
    %4999 = vadd.xlane.f32.xlu0 %v4998
    %v5000 = vpop.xlane.xlu0 %4999
    %v5001 = vsel %vm4934, %v4980, 0.0
    %5002 = vadd.xlane.f32.xlu0 %v5001
    %v5003 = vpop.xlane.xlu0 %5002
    %v5004 = vsel %vm4934, %v4982, 0.0
    %5005 = vadd.xlane.f32.xlu0 %v5004
    %v5006 = vpop.xlane.xlu0 %5005
    %v5007 = vrcp.pop %v4985
    %v5008 = vrcp.pop %v4988
    %v5009 = vrcp.pop %v4991
    %v5010 = vrcp.pop %v4994
    %v5011 = vrcp.pop %v4997
    %v5012 = vrcp.pop %v5000
    %v5013 = vrcp.pop %v5003
    %v5014 = vrcp.pop %v5006
    %v5015 = vmul.f32 %v4968, %v5007
    %v5016 = vmul.f32 %v4970, %v5008
    %v5017 = vmul.f32 %v4972, %v5009
    %v5018 = vmul.f32 %v4974, %v5010
    %v5019 = vmul.f32 %v4976, %v5011
    %v5020 = vmul.f32 %v4978, %v5012
    %v5021 = vmul.f32 %v4980, %v5013
    %v5022 = vmul.f32 %v4982, %v5014
    %v5023 = vpack.c.bf16 %v5016, %v5015
    %v5024 = vpack.c.bf16 %v5018, %v5017
    %v5025 = vpack.c.bf16 %v5020, %v5019
    %v5026 = vpack.c.bf16 %v5022, %v5021
    %v5028 = vsel %vm4934, %v5023, 0
    %5030 = vmatprep.subr.bf16.mxu0 0
    %5031 = vmatpush1.bf16.msra.mxu0 %v4716
    %5032 = vmatprep.subr.bf16.mxu0 0
    %5033 = vmatpush1.bf16.msra.mxu0 0
    %5034 = vmatprep.subr.bf16.mxu0 0
    %5035 = vmatpush1.bf16.msra.mxu0 0
    %5036 = vmatprep.subr.bf16.mxu0 0
    %5037 = vmatpush1.bf16.msra.mxu0 0
    %5038 = vmatprep.subr.bf16.mxu0 0
    %5039 = vmatpush1.bf16.msra.mxu0 0
    %5040 = vmatprep.subr.bf16.mxu0 0
    %5041 = vmatpush1.bf16.msra.mxu0 0
    %5042 = vmatprep.subr.bf16.mxu0 0
    %5043 = vmatpush1.bf16.msra.mxu0 0
    %5044 = vmatprep.subr.bf16.mxu0 0
    %5045 = vmatpush1.bf16.msra.mxu0 0
    %5046 = vmatprep.subr.bf16.mxu0 0
    %5047 = vmatpush1.bf16.msra.mxu0 0
    %5048 = vmatprep.subr.bf16.mxu0 0
    %5049 = vmatpush1.bf16.msra.mxu0 0
    %5050 = vmatprep.subr.bf16.mxu0 0
    %5051 = vmatpush1.bf16.msra.mxu0 0
    %5052 = vmatprep.subr.bf16.mxu0 0
    %5053 = vmatpush1.bf16.msra.mxu0 0
    %5054 = vmatprep.subr.bf16.mxu0 0
    %5055 = vmatpush1.bf16.msra.mxu0 0
    %5056 = vmatprep.subr.bf16.mxu0 0
    %5057 = vmatpush1.bf16.msra.mxu0 0
    %5058 = vmatprep.subr.bf16.mxu0 0
    %5059 = vmatpush1.bf16.msra.mxu0 0
    %5060 = vmatprep.subr.bf16.mxu0 0
    %5061 = vmatpush1.bf16.msra.mxu0 0
    %5062 = vmatprep.mubr.bf16.mxu0 0
    %5063 = vmatmul.mubr.bf16.gmra.mrb[0].mxu0 %v5028
    %v5064 = vpop.f32.mrb[0].mxu0
    %v5065 = vadd.f32 0.0, %v5064
    %v5066 = vpop.f32.mrb[0].mxu0
    %v5067 = vpop.f32.mrb[0].mxu0
    %v5068 = vadd.f32 0.0, %v5067
    %v5069 = vpop.f32.mrb[0].mxu0
    %5070 = vdwg.mxu0
    %v5072 = vsel %vm4934, %v5024, 0
    %5074 = vmatprep.subr.bf16.mxu0 0
    %5075 = vmatpush1.bf16.msra.mxu0 %v4720
    %5076 = vmatprep.subr.bf16.mxu0 0
    %5077 = vmatpush1.bf16.msra.mxu0 0
    %5078 = vmatprep.subr.bf16.mxu0 0
    %5079 = vmatpush1.bf16.msra.mxu0 0
    %5080 = vmatprep.subr.bf16.mxu0 0
    %5081 = vmatpush1.bf16.msra.mxu0 0
    %5082 = vmatprep.subr.bf16.mxu0 0
    %5083 = vmatpush1.bf16.msra.mxu0 0
    %5084 = vmatprep.subr.bf16.mxu0 0
    %5085 = vmatpush1.bf16.msra.mxu0 0
    %5086 = vmatprep.subr.bf16.mxu0 0
    %5087 = vmatpush1.bf16.msra.mxu0 0
    %5088 = vmatprep.subr.bf16.mxu0 0
    %5089 = vmatpush1.bf16.msra.mxu0 0
    %5090 = vmatprep.subr.bf16.mxu0 0
    %5091 = vmatpush1.bf16.msra.mxu0 0
    %5092 = vmatprep.subr.bf16.mxu0 0
    %5093 = vmatpush1.bf16.msra.mxu0 0
    %5094 = vmatprep.subr.bf16.mxu0 0
    %5095 = vmatpush1.bf16.msra.mxu0 0
    %5096 = vmatprep.subr.bf16.mxu0 0
    %5097 = vmatpush1.bf16.msra.mxu0 0
    %5098 = vmatprep.subr.bf16.mxu0 0
    %5099 = vmatpush1.bf16.msra.mxu0 0
    %5100 = vmatprep.subr.bf16.mxu0 0
    %5101 = vmatpush1.bf16.msra.mxu0 0
    %5102 = vmatprep.subr.bf16.mxu0 0
    %5103 = vmatpush1.bf16.msra.mxu0 0
    %5104 = vmatprep.subr.bf16.mxu0 0
    %5105 = vmatpush1.bf16.msra.mxu0 0
    %5106 = vmatprep.mubr.bf16.mxu0 0
    %5107 = vmatmul.mubr.bf16.gmra.mrb[0].mxu0 %v5072
    %v5108 = vpop.f32.mrb[0].mxu0
    %v5109 = vadd.f32 0.0, %v5108
    %v5110 = vpop.f32.mrb[0].mxu0
    %v5111 = vpop.f32.mrb[0].mxu0
    %v5112 = vadd.f32 0.0, %v5111
    %v5113 = vpop.f32.mrb[0].mxu0
    %5114 = vdwg.mxu0
    %v5116 = vsel %vm4934, %v5025, 0
    %5118 = vmatprep.subr.bf16.mxu0 0
    %5119 = vmatpush1.bf16.msra.mxu0 %v4724
    %5120 = vmatprep.subr.bf16.mxu0 0
    %5121 = vmatpush1.bf16.msra.mxu0 0
    %5122 = vmatprep.subr.bf16.mxu0 0
    %5123 = vmatpush1.bf16.msra.mxu0 0
    %5124 = vmatprep.subr.bf16.mxu0 0
    %5125 = vmatpush1.bf16.msra.mxu0 0
    %5126 = vmatprep.subr.bf16.mxu0 0
    %5127 = vmatpush1.bf16.msra.mxu0 0
    %5128 = vmatprep.subr.bf16.mxu0 0
    %5129 = vmatpush1.bf16.msra.mxu0 0
    %5130 = vmatprep.subr.bf16.mxu0 0
    %5131 = vmatpush1.bf16.msra.mxu0 0
    %5132 = vmatprep.subr.bf16.mxu0 0
    %5133 = vmatpush1.bf16.msra.mxu0 0
    %5134 = vmatprep.subr.bf16.mxu0 0
    %5135 = vmatpush1.bf16.msra.mxu0 0
    %5136 = vmatprep.subr.bf16.mxu0 0
    %5137 = vmatpush1.bf16.msra.mxu0 0
    %5138 = vmatprep.subr.bf16.mxu0 0
    %5139 = vmatpush1.bf16.msra.mxu0 0
    %5140 = vmatprep.subr.bf16.mxu0 0
    %5141 = vmatpush1.bf16.msra.mxu0 0
    %5142 = vmatprep.subr.bf16.mxu0 0
    %5143 = vmatpush1.bf16.msra.mxu0 0
    %5144 = vmatprep.subr.bf16.mxu0 0
    %5145 = vmatpush1.bf16.msra.mxu0 0
    %5146 = vmatprep.subr.bf16.mxu0 0
    %5147 = vmatpush1.bf16.msra.mxu0 0
    %5148 = vmatprep.subr.bf16.mxu0 0
    %5149 = vmatpush1.bf16.msra.mxu0 0
    %5150 = vmatprep.mubr.bf16.mxu0 0
    %5151 = vmatmul.mubr.bf16.gmra.mrb[0].mxu0 %v5116
    %v5152 = vpop.f32.mrb[0].mxu0
    %v5153 = vadd.f32 0.0, %v5152
    %v5154 = vpop.f32.mrb[0].mxu0
    %v5155 = vpop.f32.mrb[0].mxu0
    %v5156 = vadd.f32 0.0, %v5155
    %v5157 = vpop.f32.mrb[0].mxu0
    %5158 = vdwg.mxu0
    %v5160 = vsel %vm4934, %v5026, 0
    %5162 = vmatprep.subr.bf16.mxu0 0
    %5163 = vmatpush1.bf16.msra.mxu0 %v4728
    %5164 = vmatprep.subr.bf16.mxu0 0
    %5165 = vmatpush1.bf16.msra.mxu0 0
    %5166 = vmatprep.subr.bf16.mxu0 0
    %5167 = vmatpush1.bf16.msra.mxu0 0
    %5168 = vmatprep.subr.bf16.mxu0 0
    %5169 = vmatpush1.bf16.msra.mxu0 0
    %5170 = vmatprep.subr.bf16.mxu0 0
    %5171 = vmatpush1.bf16.msra.mxu0 0
    %5172 = vmatprep.subr.bf16.mxu0 0
    %5173 = vmatpush1.bf16.msra.mxu0 0
    %5174 = vmatprep.subr.bf16.mxu0 0
    %5175 = vmatpush1.bf16.msra.mxu0 0
    %5176 = vmatprep.subr.bf16.mxu0 0
    %5177 = vmatpush1.bf16.msra.mxu0 0
    %5178 = vmatprep.subr.bf16.mxu0 0
    %5179 = vmatpush1.bf16.msra.mxu0 0
    %5180 = vmatprep.subr.bf16.mxu0 0
    %5181 = vmatpush1.bf16.msra.mxu0 0
    %5182 = vmatprep.subr.bf16.mxu0 0
    %5183 = vmatpush1.bf16.msra.mxu0 0
    %5184 = vmatprep.subr.bf16.mxu0 0
    %5185 = vmatpush1.bf16.msra.mxu0 0
    %5186 = vmatprep.subr.bf16.mxu0 0
    %5187 = vmatpush1.bf16.msra.mxu0 0
    %5188 = vmatprep.subr.bf16.mxu0 0
    %5189 = vmatpush1.bf16.msra.mxu0 0
    %5190 = vmatprep.subr.bf16.mxu0 0
    %5191 = vmatpush1.bf16.msra.mxu0 0
    %5192 = vmatprep.subr.bf16.mxu0 0
    %5193 = vmatpush1.bf16.msra.mxu0 0
    %5194 = vmatprep.mubr.bf16.mxu0 0
    %5195 = vmatmul.mubr.bf16.gmra.mrb[0].mxu0 %v5160
    %v5196 = vpop.f32.mrb[0].mxu0
    %v5197 = vadd.f32 0.0, %v5196
    %v5198 = vpop.f32.mrb[0].mxu0
    %v5199 = vpop.f32.mrb[0].mxu0
    %v5200 = vadd.f32 0.0, %v5199
    %v5201 = vpop.f32.mrb[0].mxu0
    %5202 = vdwg.mxu0
    %v5203 = vcombine.low %v5065, %v5153
    %v5204 = vcombine.high %v5065, %v5153
    %v5206 = vunpack.c.l.s4 1983009808
    %v5207 = vunpack.c.0.s8 %v5206
    %v5208 = vlaneseq
    %v5209 = vshrl.u32 %v5208, 7
    %v5210 = vsub.s32 %v5207, %v5209
    %v5211 = vrot.slane %v5203, %v5210
    %v5213 = vunpack.c.l.s4 1983009808
    %v5214 = vunpack.c.0.s8 %v5213
    %v5215 = vlaneseq
    %v5216 = vshrl.u32 %v5215, 7
    %v5217 = vsub.s32 %v5214, %v5216
    %v5218 = vrot.slane %v5204, %v5217
    %v5219 = vcombine.low %v5109, %v5197
    %v5220 = vcombine.high %v5109, %v5197
    %v5222 = vunpack.c.l.s4 1983009808
    %v5223 = vunpack.c.0.s8 %v5222
    %v5224 = vlaneseq
    %v5225 = vshrl.u32 %v5224, 7
    %v5226 = vsub.s32 %v5223, %v5225
    %v5227 = vrot.slane %v5219, %v5226
    %v5229 = vunpack.c.l.s4 1983009808
    %v5230 = vunpack.c.0.s8 %v5229
    %v5231 = vlaneseq
    %v5232 = vshrl.u32 %v5231, 7
    %v5233 = vsub.s32 %v5230, %v5232
    %v5234 = vrot.slane %v5220, %v5233
    %v5235 = vcombine.low %v5211, %v5227
    %v5236 = vcombine.high %v5211, %v5227
    %v5238 = vunpack.c.l.s4 1934713408
    %v5239 = vunpack.c.0.s8 %v5238
    %v5240 = vlaneseq
    %v5241 = vshrl.u32 %v5240, 7
    %v5242 = vsub.s32 %v5239, %v5241
    %v5243 = vrot.slane %v5235, %v5242
    %v5245 = vunpack.c.l.s4 1934713408
    %v5246 = vunpack.c.0.s8 %v5245
    %v5247 = vlaneseq
    %v5248 = vshrl.u32 %v5247, 7
    %v5249 = vsub.s32 %v5246, %v5248
    %v5250 = vrot.slane %v5236, %v5249
    %v5251 = vcombine.low %v5218, %v5234
    %v5252 = vcombine.high %v5218, %v5234
    %v5254 = vunpack.c.l.s4 1934713408
    %v5255 = vunpack.c.0.s8 %v5254
    %v5256 = vlaneseq
    %v5257 = vshrl.u32 %v5256, 7
    %v5258 = vsub.s32 %v5255, %v5257
    %v5259 = vrot.slane %v5251, %v5258
    %v5261 = vunpack.c.l.s4 1934713408
    %v5262 = vunpack.c.0.s8 %v5261
    %v5263 = vlaneseq
    %v5264 = vshrl.u32 %v5263, 7
    %v5265 = vsub.s32 %v5262, %v5264
    %v5266 = vrot.slane %v5252, %v5265
    %v5267 = vcombine.high %v5243, 0.0
    %v5268 = vcombine.high %v5250, 0.0
    %v5269 = vcombine.high %v5259, 0.0
    %v5270 = vcombine.high %v5266, 0.0
    %v5271 = vcombine.low %v5068, %v5156
    %v5272 = vcombine.high %v5068, %v5156
    %v5274 = vunpack.c.l.s4 1983009808
    %v5275 = vunpack.c.0.s8 %v5274
    %v5276 = vlaneseq
    %v5277 = vshrl.u32 %v5276, 7
    %v5278 = vsub.s32 %v5275, %v5277
    %v5279 = vrot.slane %v5271, %v5278
    %v5281 = vunpack.c.l.s4 1983009808
    %v5282 = vunpack.c.0.s8 %v5281
    %v5283 = vlaneseq
    %v5284 = vshrl.u32 %v5283, 7
    %v5285 = vsub.s32 %v5282, %v5284
    %v5286 = vrot.slane %v5272, %v5285
    %v5287 = vcombine.low %v5112, %v5200
    %v5288 = vcombine.high %v5112, %v5200
    %v5290 = vunpack.c.l.s4 1983009808
    %v5291 = vunpack.c.0.s8 %v5290
    %v5292 = vlaneseq
    %v5293 = vshrl.u32 %v5292, 7
    %v5294 = vsub.s32 %v5291, %v5293
    %v5295 = vrot.slane %v5287, %v5294
    %v5297 = vunpack.c.l.s4 1983009808
    %v5298 = vunpack.c.0.s8 %v5297
    %v5299 = vlaneseq
    %v5300 = vshrl.u32 %v5299, 7
    %v5301 = vsub.s32 %v5298, %v5300
    %v5302 = vrot.slane %v5288, %v5301
    %v5303 = vcombine.low %v5279, %v5295
    %v5304 = vcombine.high %v5279, %v5295
    %v5306 = vunpack.c.l.s4 1934713408
    %v5307 = vunpack.c.0.s8 %v5306
    %v5308 = vlaneseq
    %v5309 = vshrl.u32 %v5308, 7
    %v5310 = vsub.s32 %v5307, %v5309
    %v5311 = vrot.slane %v5303, %v5310
    %v5313 = vunpack.c.l.s4 1934713408
    %v5314 = vunpack.c.0.s8 %v5313
    %v5315 = vlaneseq
    %v5316 = vshrl.u32 %v5315, 7
    %v5317 = vsub.s32 %v5314, %v5316
    %v5318 = vrot.slane %v5304, %v5317
    %v5319 = vcombine.low %v5286, %v5302
    %v5320 = vcombine.high %v5286, %v5302
    %v5322 = vunpack.c.l.s4 1934713408
    %v5323 = vunpack.c.0.s8 %v5322
    %v5324 = vlaneseq
    %v5325 = vshrl.u32 %v5324, 7
    %v5326 = vsub.s32 %v5323, %v5325
    %v5327 = vrot.slane %v5319, %v5326
    %v5329 = vunpack.c.l.s4 1934713408
    %v5330 = vunpack.c.0.s8 %v5329
    %v5331 = vlaneseq
    %v5332 = vshrl.u32 %v5331, 7
    %v5333 = vsub.s32 %v5330, %v5332
    %v5334 = vrot.slane %v5320, %v5333
    %v5335 = vcombine.high %v5311, 0.0
    %v5336 = vcombine.high %v5318, 0.0
    %v5337 = vcombine.high %v5327, 0.0
    %v5338 = vcombine.high %v5334, 0.0
    %v5339 = vcombine.low %v5243, %v5250
    %v5341 = vunpack.c.l.s4 1983009808
    %v5342 = vunpack.c.0.s8 %v5341
    %v5343 = vlaneseq
    %v5344 = vshrl.u32 %v5343, 7
    %v5345 = vsub.s32 %v5342, %v5344
    %v5346 = vrot.slane %v5339, %v5345
    %v5347 = vcombine.low %v5267, %v5268
    %v5349 = vunpack.c.l.s4 1983009808
    %v5350 = vunpack.c.0.s8 %v5349
    %v5351 = vlaneseq
    %v5352 = vshrl.u32 %v5351, 7
    %v5353 = vsub.s32 %v5350, %v5352
    %v5354 = vrot.slane %v5347, %v5353
    %v5355 = vcombine.low %v5259, %v5266
    %v5357 = vunpack.c.l.s4 1983009808
    %v5358 = vunpack.c.0.s8 %v5357
    %v5359 = vlaneseq
    %v5360 = vshrl.u32 %v5359, 7
    %v5361 = vsub.s32 %v5358, %v5360
    %v5362 = vrot.slane %v5355, %v5361
    %v5363 = vcombine.low %v5269, %v5270
    %v5365 = vunpack.c.l.s4 1983009808
    %v5366 = vunpack.c.0.s8 %v5365
    %v5367 = vlaneseq
    %v5368 = vshrl.u32 %v5367, 7
    %v5369 = vsub.s32 %v5366, %v5368
    %v5370 = vrot.slane %v5363, %v5369
    %v5371 = vcombine.low %v5346, %v5354
    %v5372 = vcombine.high %v5346, %v5354
    %v5374 = vunpack.c.l.s4 1934713408
    %v5375 = vunpack.c.0.s8 %v5374
    %v5376 = vlaneseq
    %v5377 = vshrl.u32 %v5376, 7
    %v5378 = vsub.s32 %v5375, %v5377
    %v5379 = vrot.slane %v5371, %v5378
    %v5381 = vunpack.c.l.s4 1934713408
    %v5382 = vunpack.c.0.s8 %v5381
    %v5383 = vlaneseq
    %v5384 = vshrl.u32 %v5383, 7
    %v5385 = vsub.s32 %v5382, %v5384
    %v5386 = vrot.slane %v5372, %v5385
    %v5387 = vcombine.low %v5362, %v5370
    %v5388 = vcombine.high %v5362, %v5370
    %v5390 = vunpack.c.l.s4 1934713408
    %v5391 = vunpack.c.0.s8 %v5390
    %v5392 = vlaneseq
    %v5393 = vshrl.u32 %v5392, 7
    %v5394 = vsub.s32 %v5391, %v5393
    %v5395 = vrot.slane %v5387, %v5394
    %v5397 = vunpack.c.l.s4 1934713408
    %v5398 = vunpack.c.0.s8 %v5397
    %v5399 = vlaneseq
    %v5400 = vshrl.u32 %v5399, 7
    %v5401 = vsub.s32 %v5398, %v5400
    %v5402 = vrot.slane %v5388, %v5401
    %v5403 = vcombine.low %v5379, %v5395
    %v5404 = vcombine.high %v5379, %v5395
    %v5405 = vcombine.low %v5386, %v5402
    %v5406 = vcombine.high %v5386, %v5402
    %v5407 = vcombine.low %v5311, %v5318
    %v5409 = vunpack.c.l.s4 1983009808
    %v5410 = vunpack.c.0.s8 %v5409
    %v5411 = vlaneseq
    %v5412 = vshrl.u32 %v5411, 7
    %v5413 = vsub.s32 %v5410, %v5412
    %v5414 = vrot.slane %v5407, %v5413
    %v5415 = vcombine.low %v5335, %v5336
    %v5417 = vunpack.c.l.s4 1983009808
    %v5418 = vunpack.c.0.s8 %v5417
    %v5419 = vlaneseq
    %v5420 = vshrl.u32 %v5419, 7
    %v5421 = vsub.s32 %v5418, %v5420
    %v5422 = vrot.slane %v5415, %v5421
    %v5423 = vcombine.low %v5327, %v5334
    %v5425 = vunpack.c.l.s4 1983009808
    %v5426 = vunpack.c.0.s8 %v5425
    %v5427 = vlaneseq
    %v5428 = vshrl.u32 %v5427, 7
    %v5429 = vsub.s32 %v5426, %v5428
    %v5430 = vrot.slane %v5423, %v5429
    %v5431 = vcombine.low %v5337, %v5338
    %v5433 = vunpack.c.l.s4 1983009808
    %v5434 = vunpack.c.0.s8 %v5433
    %v5435 = vlaneseq
    %v5436 = vshrl.u32 %v5435, 7
    %v5437 = vsub.s32 %v5434, %v5436
    %v5438 = vrot.slane %v5431, %v5437
    %v5439 = vcombine.low %v5414, %v5422
    %v5440 = vcombine.high %v5414, %v5422
    %v5442 = vunpack.c.l.s4 1934713408
    %v5443 = vunpack.c.0.s8 %v5442
    %v5444 = vlaneseq
    %v5445 = vshrl.u32 %v5444, 7
    %v5446 = vsub.s32 %v5443, %v5445
    %v5447 = vrot.slane %v5439, %v5446
    %v5449 = vunpack.c.l.s4 1934713408
    %v5450 = vunpack.c.0.s8 %v5449
    %v5451 = vlaneseq
    %v5452 = vshrl.u32 %v5451, 7
    %v5453 = vsub.s32 %v5450, %v5452
    %v5454 = vrot.slane %v5440, %v5453
    %v5455 = vcombine.low %v5430, %v5438
    %v5456 = vcombine.high %v5430, %v5438
    %v5458 = vunpack.c.l.s4 1934713408
    %v5459 = vunpack.c.0.s8 %v5458
    %v5460 = vlaneseq
    %v5461 = vshrl.u32 %v5460, 7
    %v5462 = vsub.s32 %v5459, %v5461
    %v5463 = vrot.slane %v5455, %v5462
    %v5465 = vunpack.c.l.s4 1934713408
    %v5466 = vunpack.c.0.s8 %v5465
    %v5467 = vlaneseq
    %v5468 = vshrl.u32 %v5467, 7
    %v5469 = vsub.s32 %v5466, %v5468
    %v5470 = vrot.slane %v5456, %v5469
    %v5471 = vcombine.low %v5447, %v5463
    %v5472 = vcombine.high %v5447, %v5463
    %v5473 = vcombine.low %v5454, %v5470
    %v5474 = vcombine.high %v5454, %v5470
    %5477 = vrot.lane.b32.xlu0 %v5404, 32
    %v5478 = vpop.permute.xlu0 %5477
    %5479 = vrot.lane.b32.xlu0 %v5472, 32
    %v5480 = vpop.permute.xlu0 %5479
    %5485 = vrot.lane.b32.xlu0 %v5405, 64
    %v5486 = vpop.permute.xlu0 %5485
    %5487 = vrot.lane.b32.xlu0 %v5473, 64
    %v5488 = vpop.permute.xlu0 %5487
    %5493 = vrot.lane.b32.xlu0 %v5406, 96
    %v5494 = vpop.permute.xlu0 %5493
    %5495 = vrot.lane.b32.xlu0 %v5474, 96
    %v5496 = vpop.permute.xlu0 %5495
    %v5499 = vsel %vm424, %v5403, %v5478
    %v5500 = vsel %vm424, %v5471, %v5480
    %v5501 = vsel %vm2622, %v5499, %v5486
    %v5502 = vsel %vm2622, %v5500, %v5488
    %v5503 = vsel %vm2625, %v5501, %v5494
    %v5504 = vsel %vm2625, %v5502, %v5496
    %v5505 = vpack.c.bf16 %v5504, %v5503
    %v5506 = vld [vmem:[#allocation19] sm:$0xf]
    %v5507 = vld [vmem:[#allocation19 + $0x4] sm:$0xf]
    %v5508 = vld [vmem:[#allocation19 + $0x8] sm:$0xf]
    %v5509 = vld [vmem:[#allocation19 + $0xc] sm:$0xf]
    %v5510 = vld [vmem:[#allocation19 + $0x10] sm:$0xf]
    %v5511 = vld [vmem:[#allocation19 + $0x14] sm:$0xf]
    %v5512 = vld [vmem:[#allocation19 + $0x18] sm:$0xf]
    %v5513 = vld [vmem:[#allocation19 + $0x1c] sm:$0xf]
    %v5514 = vld [vmem:[#allocation19 + $0x20] sm:$0xf]
    %v5515 = vld [vmem:[#allocation19 + $0x24] sm:$0xf]
    %v5516 = vld [vmem:[#allocation19 + $0x28] sm:$0xf]
    %v5517 = vld [vmem:[#allocation19 + $0x2c] sm:$0xf]
    %v5518 = vld [vmem:[#allocation19 + $0x30] sm:$0xf]
    %v5519 = vld [vmem:[#allocation19 + $0x34] sm:$0xf]
    %v5520 = vld [vmem:[#allocation19 + $0x38] sm:$0xf]
    %v5521 = vld [vmem:[#allocation19 + $0x3c] sm:$0xf]
    %v5538 = vunpack.c.l.b16 %v5506
    %v5539 = vunpack.c.l.b16 %v5507
    %v5540 = vunpack.c.l.b16 %v5508
    %v5541 = vunpack.c.l.b16 %v5509
    %v5542 = vunpack.c.l.b16 %v5510
    %v5543 = vunpack.c.l.b16 %v5511
    %v5544 = vunpack.c.l.b16 %v5512
    %v5545 = vunpack.c.l.b16 %v5513
    %v5546 = vunpack.c.l.b16 %v5514
    %v5547 = vunpack.c.l.b16 %v5515
    %v5548 = vunpack.c.l.b16 %v5516
    %v5549 = vunpack.c.l.b16 %v5517
    %v5550 = vunpack.c.l.b16 %v5518
    %v5551 = vunpack.c.l.b16 %v5519
    %v5552 = vunpack.c.l.b16 %v5520
    %v5553 = vunpack.c.l.b16 %v5521
    %v5554 = vpack.c.b16 %v5539, %v5538
    %v5555 = vpack.c.b16 %v5541, %v5540
    %v5556 = vpack.c.b16 %v5543, %v5542
    %v5557 = vpack.c.b16 %v5545, %v5544
    %v5558 = vpack.c.b16 %v5547, %v5546
    %v5559 = vpack.c.b16 %v5549, %v5548
    %v5560 = vpack.c.b16 %v5551, %v5550
    %v5561 = vpack.c.b16 %v5553, %v5552
    %5570 = vmatprep.subr.bf16.mxu0 0
    %5571 = vmatpush1.bf16.msra.mxu0 %v5554
    %5572 = vmatprep.subr.bf16.mxu0 0
    %5573 = vmatpush1.bf16.msra.mxu0 %v5555
    %5574 = vmatprep.subr.bf16.mxu0 0
    %5575 = vmatpush1.bf16.msra.mxu0 %v5556
    %5576 = vmatprep.subr.bf16.mxu0 0
    %5577 = vmatpush1.bf16.msra.mxu0 %v5557
    %5578 = vmatprep.subr.bf16.mxu0 0
    %5579 = vmatpush1.bf16.msra.mxu0 %v5558
    %5580 = vmatprep.subr.bf16.mxu0 0
    %5581 = vmatpush1.bf16.msra.mxu0 %v5559
    %5582 = vmatprep.subr.bf16.mxu0 0
    %5583 = vmatpush1.bf16.msra.mxu0 %v5560
    %5584 = vmatprep.subr.bf16.mxu0 0
    %5585 = vmatpush1.bf16.msra.mxu0 %v5561
    %5586 = vmatprep.subr.bf16.mxu0 0
    %5587 = vmatpush1.bf16.msra.mxu0 0
    %5588 = vmatprep.subr.bf16.mxu0 0
    %5589 = vmatpush1.bf16.msra.mxu0 0
    %5590 = vmatprep.subr.bf16.mxu0 0
    %5591 = vmatpush1.bf16.msra.mxu0 0
    %5592 = vmatprep.subr.bf16.mxu0 0
    %5593 = vmatpush1.bf16.msra.mxu0 0
    %5594 = vmatprep.subr.bf16.mxu0 0
    %5595 = vmatpush1.bf16.msra.mxu0 0
    %5596 = vmatprep.subr.bf16.mxu0 0
    %5597 = vmatpush1.bf16.msra.mxu0 0
    %5598 = vmatprep.subr.bf16.mxu0 0
    %5599 = vmatpush1.bf16.msra.mxu0 0
    %5600 = vmatprep.subr.bf16.mxu0 0
    %5601 = vmatpush1.bf16.msra.mxu0 0
    %5602 = vmatprep.mubr.bf16.mxu0 0
    %5603 = vmatmul.mubr.bf16.gmra.mrb[0].mxu0 %v5505
    %v5604 = vpop.f32.mrb[0].mxu0
    %v5605 = vadd.f32 0.0, %v5604
    %v5606 = vpop.f32.mrb[0].mxu0
    %v5607 = vpop.f32.mrb[0].mxu0
    %v5608 = vadd.f32 0.0, %v5607
    %v5609 = vpop.f32.mrb[0].mxu0
    %5610 = vdwg.mxu0
    %v5611 = vadd.f32 %v3495, %v5605
    %v5612 = vadd.f32 %v3496, %v5608
    %v5613 = vld [vmem:[%s20] sm:$0x1]
    %v5614 = vmul.f32 %v5611, %v5611
    %v5615 = vmul.f32 %v5612, %v5612
    %5616 = vadd.xlane.f32.xlu0 %v5614
    %v5617 = vpop.xlane.xlu0 %5616
    %5618 = vadd.xlane.f32.xlu0 %v5615
    %v5619 = vpop.xlane.xlu0 %5618
    %v5620 = vmul.f32 %v5617, %v245
    %v5621 = vmul.f32 %v5619, %v245
    %v5622 = vadd.f32 %v5620, 1e-06
    %v5623 = vadd.f32 %v5621, 1e-06
    %v5624 = vrsqrt.pop %v5622
    %v5625 = vrsqrt.pop %v5623
    %v5626 = vmul.f32 %v5611, %v5624
    %v5627 = vmul.f32 %v5612, %v5625
    %v5629 = vlaneseq
    %v5630 = vshrl.u32 %v5629, 7
    %v5631 = vsub.s32 0, %v5630
    %v5632 = vrot.slane %v5613, %v5631
    %v5634 = vmul.f32 %v5626, %v5632
    %v5635 = vmul.f32 %v5627, %v5632
    %v5636 = vpack.c.bf16 %v5635, %v5634
    %v5637 = vld [vmem:[#allocation21] sm:$0xff]
    %v5638 = vld [vmem:[#allocation21 + $0x8] sm:$0xff]
    %v5639 = vld [vmem:[#allocation21 + $0x10] sm:$0xff]
    %v5640 = vld [vmem:[#allocation21 + $0x18] sm:$0xff]
    %v5641 = vld [vmem:[#allocation21 + $0x20] sm:$0xff]
    %v5642 = vld [vmem:[#allocation21 + $0x28] sm:$0xff]
    %v5643 = vld [vmem:[#allocation21 + $0x30] sm:$0xff]
    %v5644 = vld [vmem:[#allocation21 + $0x38] sm:$0xff]
    %v5645 = vld [vmem:[#allocation21 + $0x40] sm:$0xff]
    %v5646 = vld [vmem:[#allocation21 + $0x48] sm:$0xff]
    %v5647 = vld [vmem:[#allocation21 + $0x50] sm:$0xff]
    %v5648 = vld [vmem:[#allocation21 + $0x58] sm:$0xff]
    %v5649 = vld [vmem:[#allocation21 + $0x60] sm:$0xff]
    %v5650 = vld [vmem:[#allocation21 + $0x68] sm:$0xff]
    %v5651 = vld [vmem:[#allocation21 + $0x70] sm:$0xff]
    %v5652 = vld [vmem:[#allocation21 + $0x78] sm:$0xff]
    %v5653 = vld [vmem:[#allocation21 + $0x80] sm:$0xff]
    %v5654 = vld [vmem:[#allocation21 + $0x88] sm:$0xff]
    %v5655 = vld [vmem:[#allocation21 + $0x90] sm:$0xff]
    %v5656 = vld [vmem:[#allocation21 + $0x98] sm:$0xff]
    %v5657 = vld [vmem:[#allocation21 + $0xa0] sm:$0xff]
    %v5658 = vld [vmem:[#allocation21 + $0xa8] sm:$0xff]
    %v5659 = vld [vmem:[#allocation21 + $0xb0] sm:$0xff]
    %v5660 = vld [vmem:[#allocation21 + $0xb8] sm:$0xff]
    %v5661 = vld [vmem:[#allocation21 + $0xc0] sm:$0xff]
    %v5662 = vld [vmem:[#allocation21 + $0xc8] sm:$0xff]
    %v5663 = vld [vmem:[#allocation21 + $0xd0] sm:$0xff]
    %v5664 = vld [vmem:[#allocation21 + $0xd8] sm:$0xff]
    %v5665 = vld [vmem:[#allocation21 + $0xe0] sm:$0xff]
    %v5666 = vld [vmem:[#allocation21 + $0xe8] sm:$0xff]
    %v5667 = vld [vmem:[#allocation21 + $0xf0] sm:$0xff]
    %v5668 = vld [vmem:[#allocation21 + $0xf8] sm:$0xff]
    %v5701 = vunpack.c.l.b16 %v5637
    %v5702 = vunpack.c.h.b16 %v5637
    %v5703 = vunpack.c.l.b16 %v5638
    %v5704 = vunpack.c.h.b16 %v5638
    %v5705 = vunpack.c.l.b16 %v5639
    %v5706 = vunpack.c.h.b16 %v5639
    %v5707 = vunpack.c.l.b16 %v5640
    %v5708 = vunpack.c.h.b16 %v5640
    %v5709 = vunpack.c.l.b16 %v5641
    %v5710 = vunpack.c.h.b16 %v5641
    %v5711 = vunpack.c.l.b16 %v5642
    %v5712 = vunpack.c.h.b16 %v5642
    %v5713 = vunpack.c.l.b16 %v5643
    %v5714 = vunpack.c.h.b16 %v5643
    %v5715 = vunpack.c.l.b16 %v5644
    %v5716 = vunpack.c.h.b16 %v5644
    %v5717 = vunpack.c.l.b16 %v5645
    %v5718 = vunpack.c.h.b16 %v5645
    %v5719 = vunpack.c.l.b16 %v5646
    %v5720 = vunpack.c.h.b16 %v5646
    %v5721 = vunpack.c.l.b16 %v5647
    %v5722 = vunpack.c.h.b16 %v5647
    %v5723 = vunpack.c.l.b16 %v5648
    %v5724 = vunpack.c.h.b16 %v5648
    %v5725 = vunpack.c.l.b16 %v5649
    %v5726 = vunpack.c.h.b16 %v5649
    %v5727 = vunpack.c.l.b16 %v5650
    %v5728 = vunpack.c.h.b16 %v5650
    %v5729 = vunpack.c.l.b16 %v5651
    %v5730 = vunpack.c.h.b16 %v5651
    %v5731 = vunpack.c.l.b16 %v5652
    %v5732 = vunpack.c.h.b16 %v5652
    %v5733 = vunpack.c.l.b16 %v5653
    %v5734 = vunpack.c.h.b16 %v5653
    %v5735 = vunpack.c.l.b16 %v5654
    %v5736 = vunpack.c.h.b16 %v5654
    %v5737 = vunpack.c.l.b16 %v5655
    %v5738 = vunpack.c.h.b16 %v5655
    %v5739 = vunpack.c.l.b16 %v5656
    %v5740 = vunpack.c.h.b16 %v5656
    %v5741 = vunpack.c.l.b16 %v5657
    %v5742 = vunpack.c.h.b16 %v5657
    %v5743 = vunpack.c.l.b16 %v5658
    %v5744 = vunpack.c.h.b16 %v5658
    %v5745 = vunpack.c.l.b16 %v5659
    %v5746 = vunpack.c.h.b16 %v5659
    %v5747 = vunpack.c.l.b16 %v5660
    %v5748 = vunpack.c.h.b16 %v5660
    %v5749 = vunpack.c.l.b16 %v5661
    %v5750 = vunpack.c.h.b16 %v5661
    %v5751 = vunpack.c.l.b16 %v5662
    %v5752 = vunpack.c.h.b16 %v5662
    %v5753 = vunpack.c.l.b16 %v5663
    %v5754 = vunpack.c.h.b16 %v5663
    %v5755 = vunpack.c.l.b16 %v5664
    %v5756 = vunpack.c.h.b16 %v5664
    %v5757 = vunpack.c.l.b16 %v5665
    %v5758 = vunpack.c.h.b16 %v5665
    %v5759 = vunpack.c.l.b16 %v5666
    %v5760 = vunpack.c.h.b16 %v5666
    %v5761 = vunpack.c.l.b16 %v5667
    %v5762 = vunpack.c.h.b16 %v5667
    %v5763 = vunpack.c.l.b16 %v5668
    %v5764 = vunpack.c.h.b16 %v5668
    %v5765 = vpack.c.b16 %v5705, %v5701
    %v5766 = vpack.c.b16 %v5706, %v5702
    %v5767 = vpack.c.b16 %v5707, %v5703
    %v5768 = vpack.c.b16 %v5708, %v5704
    %v5769 = vpack.c.b16 %v5713, %v5709
    %v5770 = vpack.c.b16 %v5714, %v5710
    %v5771 = vpack.c.b16 %v5715, %v5711
    %v5772 = vpack.c.b16 %v5716, %v5712
    %v5773 = vpack.c.b16 %v5721, %v5717
    %v5774 = vpack.c.b16 %v5722, %v5718
    %v5775 = vpack.c.b16 %v5723, %v5719
    %v5776 = vpack.c.b16 %v5724, %v5720
    %v5777 = vpack.c.b16 %v5729, %v5725
    %v5778 = vpack.c.b16 %v5730, %v5726
    %v5779 = vpack.c.b16 %v5731, %v5727
    %v5780 = vpack.c.b16 %v5732, %v5728
    %v5781 = vpack.c.b16 %v5737, %v5733
    %v5782 = vpack.c.b16 %v5738, %v5734
    %v5783 = vpack.c.b16 %v5739, %v5735
    %v5784 = vpack.c.b16 %v5740, %v5736
    %v5785 = vpack.c.b16 %v5745, %v5741
    %v5786 = vpack.c.b16 %v5746, %v5742
    %v5787 = vpack.c.b16 %v5747, %v5743
    %v5788 = vpack.c.b16 %v5748, %v5744
    %v5789 = vpack.c.b16 %v5753, %v5749
    %v5790 = vpack.c.b16 %v5754, %v5750
    %v5791 = vpack.c.b16 %v5755, %v5751
    %v5792 = vpack.c.b16 %v5756, %v5752
    %v5793 = vpack.c.b16 %v5761, %v5757
    %v5794 = vpack.c.b16 %v5762, %v5758
    %v5795 = vpack.c.b16 %v5763, %v5759
    %v5796 = vpack.c.b16 %v5764, %v5760
    %5829 = vmatprep.subr.bf16.mxu0 %v5766
    %5830 = vmatpush1.bf16.msra.mxu0 %v5765
    %5831 = vmatprep.subr.bf16.mxu0 %v5770
    %5832 = vmatpush1.bf16.msra.mxu0 %v5769
    %5833 = vmatprep.subr.bf16.mxu0 %v5774
    %5834 = vmatpush1.bf16.msra.mxu0 %v5773
    %5835 = vmatprep.subr.bf16.mxu0 %v5778
    %5836 = vmatpush1.bf16.msra.mxu0 %v5777
    %5837 = vmatprep.subr.bf16.mxu0 %v5782
    %5838 = vmatpush1.bf16.msra.mxu0 %v5781
    %5839 = vmatprep.subr.bf16.mxu0 %v5786
    %5840 = vmatpush1.bf16.msra.mxu0 %v5785
    %5841 = vmatprep.subr.bf16.mxu0 %v5790
    %5842 = vmatpush1.bf16.msra.mxu0 %v5789
    %5843 = vmatprep.subr.bf16.mxu0 %v5794
    %5844 = vmatpush1.bf16.msra.mxu0 %v5793
    %5845 = vmatprep.subr.bf16.mxu0 0
    %5846 = vmatpush1.bf16.msra.mxu0 0
    %5847 = vmatprep.subr.bf16.mxu0 0
    %5848 = vmatpush1.bf16.msra.mxu0 0
    %5849 = vmatprep.subr.bf16.mxu0 0
    %5850 = vmatpush1.bf16.msra.mxu0 0
    %5851 = vmatprep.subr.bf16.mxu0 0
    %5852 = vmatpush1.bf16.msra.mxu0 0
    %5853 = vmatprep.subr.bf16.mxu0 0
    %5854 = vmatpush1.bf16.msra.mxu0 0
    %5855 = vmatprep.subr.bf16.mxu0 0
    %5856 = vmatpush1.bf16.msra.mxu0 0
    %5857 = vmatprep.subr.bf16.mxu0 0
    %5858 = vmatpush1.bf16.msra.mxu0 0
    %5859 = vmatprep.subr.bf16.mxu0 0
    %5860 = vmatpush1.bf16.msra.mxu0 0
    %5861 = vmatprep.mubr.bf16.mxu0 0
    %5862 = vmatmul.mubr.bf16.gmra.mrb[0].mxu0 %v5636
    %v5863 = vpop.f32.mrb[0].mxu0
    %v5864 = vadd.f32 0.0, %v5863
    %v5865 = vpop.f32.mrb[0].mxu0
    %v5866 = vadd.f32 0.0, %v5865
    %v5867 = vpop.f32.mrb[0].mxu0
    %v5868 = vadd.f32 0.0, %v5867
    %v5869 = vpop.f32.mrb[0].mxu0
    %v5870 = vadd.f32 0.0, %v5869
    %5871 = vdwg.mxu0
    %5872 = vmatprep.subr.bf16.mxu0 %v5768
    %5873 = vmatpush1.bf16.msra.mxu0 %v5767
    %5874 = vmatprep.subr.bf16.mxu0 %v5772
    %5875 = vmatpush1.bf16.msra.mxu0 %v5771
    %5876 = vmatprep.subr.bf16.mxu0 %v5776
    %5877 = vmatpush1.bf16.msra.mxu0 %v5775
    %5878 = vmatprep.subr.bf16.mxu0 %v5780
    %5879 = vmatpush1.bf16.msra.mxu0 %v5779
    %5880 = vmatprep.subr.bf16.mxu0 %v5784
    %5881 = vmatpush1.bf16.msra.mxu0 %v5783
    %5882 = vmatprep.subr.bf16.mxu0 %v5788
    %5883 = vmatpush1.bf16.msra.mxu0 %v5787
    %5884 = vmatprep.subr.bf16.mxu0 %v5792
    %5885 = vmatpush1.bf16.msra.mxu0 %v5791
    %5886 = vmatprep.subr.bf16.mxu0 %v5796
    %5887 = vmatpush1.bf16.msra.mxu0 %v5795
    %5888 = vmatprep.subr.bf16.mxu0 0
    %5889 = vmatpush1.bf16.msra.mxu0 0
    %5890 = vmatprep.subr.bf16.mxu0 0
    %5891 = vmatpush1.bf16.msra.mxu0 0
    %5892 = vmatprep.subr.bf16.mxu0 0
    %5893 = vmatpush1.bf16.msra.mxu0 0
    %5894 = vmatprep.subr.bf16.mxu0 0
    %5895 = vmatpush1.bf16.msra.mxu0 0
    %5896 = vmatprep.subr.bf16.mxu0 0
    %5897 = vmatpush1.bf16.msra.mxu0 0
    %5898 = vmatprep.subr.bf16.mxu0 0
    %5899 = vmatpush1.bf16.msra.mxu0 0
    %5900 = vmatprep.subr.bf16.mxu0 0
    %5901 = vmatpush1.bf16.msra.mxu0 0
    %5902 = vmatprep.subr.bf16.mxu0 0
    %5903 = vmatpush1.bf16.msra.mxu0 0
    %5904 = vmatprep.mubr.bf16.mxu0 0
    %5905 = vmatmul.mubr.bf16.gmra.mrb[0].mxu0 %v5636
    %v5906 = vpop.f32.mrb[0].mxu0
    %v5907 = vadd.f32 0.0, %v5906
    %v5908 = vpop.f32.mrb[0].mxu0
    %v5909 = vadd.f32 0.0, %v5908
    %v5910 = vpop.f32.mrb[0].mxu0
    %v5911 = vadd.f32 0.0, %v5910
    %v5912 = vpop.f32.mrb[0].mxu0
    %v5913 = vadd.f32 0.0, %v5912
    %5914 = vdwg.mxu0
    %v5915 = vxor.u32 %v5864, 2147483648
    %v5916 = vxor.u32 %v5866, 2147483648
    %v5917 = vxor.u32 %v5868, 2147483648
    %v5918 = vxor.u32 %v5870, 2147483648
    %v5919 = vmul.f32 %v5915, 1.442695
    %v5920 = vpow.pop %v5919
    %v5921 = vmul.f32 %v5916, 1.442695
    %v5922 = vpow.pop %v5921
    %v5923 = vmul.f32 %v5917, 1.442695
    %v5924 = vpow.pop %v5923
    %v5925 = vmul.f32 %v5918, 1.442695
    %v5926 = vpow.pop %v5925
    %v5927 = vadd.f32 %v5920, 1.0
    %v5928 = vadd.f32 %v5922, 1.0
    %v5929 = vadd.f32 %v5924, 1.0
    %v5930 = vadd.f32 %v5926, 1.0
    %v5931 = vrcp.pop %v5927
    %v5932 = vmul.f32 1.0, %v5931
    %v5933 = vrcp.pop %v5928
    %v5934 = vmul.f32 1.0, %v5933
    %v5935 = vrcp.pop %v5929
    %v5936 = vmul.f32 1.0, %v5935
    %v5937 = vrcp.pop %v5930
    %v5938 = vmul.f32 1.0, %v5937
    %v5939 = vmul.f32 %v5864, %v5932
    %v5940 = vmul.f32 %v5866, %v5934
    %v5941 = vmul.f32 %v5868, %v5936
    %v5942 = vmul.f32 %v5870, %v5938
    %v5943 = vmul.f32 %v5939, %v5907
    %v5944 = vmul.f32 %v5940, %v5909
    %v5945 = vmul.f32 %v5941, %v5911
    %v5946 = vmul.f32 %v5942, %v5913
    %v5947 = vpack.c.bf16 %v5945, %v5943
    %v5948 = vpack.c.bf16 %v5946, %v5944
    %v5949 = vld [vmem:[#allocation22] sm:$0xf]
    %v5950 = vld [vmem:[#allocation22 + $0x4] sm:$0xf]
    %v5951 = vld [vmem:[#allocation22 + $0x8] sm:$0xf]
    %v5952 = vld [vmem:[#allocation22 + $0xc] sm:$0xf]
    %v5953 = vld [vmem:[#allocation22 + $0x10] sm:$0xf]
    %v5954 = vld [vmem:[#allocation22 + $0x14] sm:$0xf]
    %v5955 = vld [vmem:[#allocation22 + $0x18] sm:$0xf]
    %v5956 = vld [vmem:[#allocation22 + $0x1c] sm:$0xf]
    %v5957 = vld [vmem:[#allocation22 + $0x20] sm:$0xf]
    %v5958 = vld [vmem:[#allocation22 + $0x24] sm:$0xf]
    %v5959 = vld [vmem:[#allocation22 + $0x28] sm:$0xf]
    %v5960 = vld [vmem:[#allocation22 + $0x2c] sm:$0xf]
    %v5961 = vld [vmem:[#allocation22 + $0x30] sm:$0xf]
    %v5962 = vld [vmem:[#allocation22 + $0x34] sm:$0xf]
    %v5963 = vld [vmem:[#allocation22 + $0x38] sm:$0xf]
    %v5964 = vld [vmem:[#allocation22 + $0x3c] sm:$0xf]
    %v5965 = vld [vmem:[#allocation22 + $0x40] sm:$0xf]
    %v5966 = vld [vmem:[#allocation22 + $0x44] sm:$0xf]
    %v5967 = vld [vmem:[#allocation22 + $0x48] sm:$0xf]
    %v5968 = vld [vmem:[#allocation22 + $0x4c] sm:$0xf]
    %v5969 = vld [vmem:[#allocation22 + $0x50] sm:$0xf]
    %v5970 = vld [vmem:[#allocation22 + $0x54] sm:$0xf]
    %v5971 = vld [vmem:[#allocation22 + $0x58] sm:$0xf]
    %v5972 = vld [vmem:[#allocation22 + $0x5c] sm:$0xf]
    %v5973 = vld [vmem:[#allocation22 + $0x60] sm:$0xf]
    %v5974 = vld [vmem:[#allocation22 + $0x64] sm:$0xf]
    %v5975 = vld [vmem:[#allocation22 + $0x68] sm:$0xf]
    %v5976 = vld [vmem:[#allocation22 + $0x6c] sm:$0xf]
    %v5977 = vld [vmem:[#allocation22 + $0x70] sm:$0xf]
    %v5978 = vld [vmem:[#allocation22 + $0x74] sm:$0xf]
    %v5979 = vld [vmem:[#allocation22 + $0x78] sm:$0xf]
    %v5980 = vld [vmem:[#allocation22 + $0x7c] sm:$0xf]
    %v6013 = vunpack.c.l.b16 %v5949
    %v6014 = vunpack.c.l.b16 %v5950
    %v6015 = vunpack.c.l.b16 %v5951
    %v6016 = vunpack.c.l.b16 %v5952
    %v6017 = vunpack.c.l.b16 %v5953
    %v6018 = vunpack.c.l.b16 %v5954
    %v6019 = vunpack.c.l.b16 %v5955
    %v6020 = vunpack.c.l.b16 %v5956
    %v6021 = vunpack.c.l.b16 %v5957
    %v6022 = vunpack.c.l.b16 %v5958
    %v6023 = vunpack.c.l.b16 %v5959
    %v6024 = vunpack.c.l.b16 %v5960
    %v6025 = vunpack.c.l.b16 %v5961
    %v6026 = vunpack.c.l.b16 %v5962
    %v6027 = vunpack.c.l.b16 %v5963
    %v6028 = vunpack.c.l.b16 %v5964
    %v6029 = vunpack.c.l.b16 %v5965
    %v6030 = vunpack.c.l.b16 %v5966
    %v6031 = vunpack.c.l.b16 %v5967
    %v6032 = vunpack.c.l.b16 %v5968
    %v6033 = vunpack.c.l.b16 %v5969
    %v6034 = vunpack.c.l.b16 %v5970
    %v6035 = vunpack.c.l.b16 %v5971
    %v6036 = vunpack.c.l.b16 %v5972
    %v6037 = vunpack.c.l.b16 %v5973
    %v6038 = vunpack.c.l.b16 %v5974
    %v6039 = vunpack.c.l.b16 %v5975
    %v6040 = vunpack.c.l.b16 %v5976
    %v6041 = vunpack.c.l.b16 %v5977
    %v6042 = vunpack.c.l.b16 %v5978
    %v6043 = vunpack.c.l.b16 %v5979
    %v6044 = vunpack.c.l.b16 %v5980
    %v6045 = vpack.c.b16 %v6014, %v6013
    %v6046 = vpack.c.b16 %v6016, %v6015
    %v6047 = vpack.c.b16 %v6018, %v6017
    %v6048 = vpack.c.b16 %v6020, %v6019
    %v6049 = vpack.c.b16 %v6022, %v6021
    %v6050 = vpack.c.b16 %v6024, %v6023
    %v6051 = vpack.c.b16 %v6026, %v6025
    %v6052 = vpack.c.b16 %v6028, %v6027
    %v6053 = vpack.c.b16 %v6030, %v6029
    %v6054 = vpack.c.b16 %v6032, %v6031
    %v6055 = vpack.c.b16 %v6034, %v6033
    %v6056 = vpack.c.b16 %v6036, %v6035
    %v6057 = vpack.c.b16 %v6038, %v6037
    %v6058 = vpack.c.b16 %v6040, %v6039
    %v6059 = vpack.c.b16 %v6042, %v6041
    %v6060 = vpack.c.b16 %v6044, %v6043
    %6077 = vmatprep.subr.bf16.mxu0 0
    %6078 = vmatpush1.bf16.msra.mxu0 %v6045
    %6079 = vmatprep.subr.bf16.mxu0 0
    %6080 = vmatpush1.bf16.msra.mxu0 %v6046
    %6081 = vmatprep.subr.bf16.mxu0 0
    %6082 = vmatpush1.bf16.msra.mxu0 %v6047
    %6083 = vmatprep.subr.bf16.mxu0 0
    %6084 = vmatpush1.bf16.msra.mxu0 %v6048
    %6085 = vmatprep.subr.bf16.mxu0 0
    %6086 = vmatpush1.bf16.msra.mxu0 %v6049
    %6087 = vmatprep.subr.bf16.mxu0 0
    %6088 = vmatpush1.bf16.msra.mxu0 %v6050
    %6089 = vmatprep.subr.bf16.mxu0 0
    %6090 = vmatpush1.bf16.msra.mxu0 %v6051
    %6091 = vmatprep.subr.bf16.mxu0 0
    %6092 = vmatpush1.bf16.msra.mxu0 %v6052
    %6093 = vmatprep.subr.bf16.mxu0 0
    %6094 = vmatpush1.bf16.msra.mxu0 %v6053
    %6095 = vmatprep.subr.bf16.mxu0 0
    %6096 = vmatpush1.bf16.msra.mxu0 %v6054
    %6097 = vmatprep.subr.bf16.mxu0 0
    %6098 = vmatpush1.bf16.msra.mxu0 %v6055
    %6099 = vmatprep.subr.bf16.mxu0 0
    %6100 = vmatpush1.bf16.msra.mxu0 %v6056
    %6101 = vmatprep.subr.bf16.mxu0 0
    %6102 = vmatpush1.bf16.msra.mxu0 %v6057
    %6103 = vmatprep.subr.bf16.mxu0 0
    %6104 = vmatpush1.bf16.msra.mxu0 %v6058
    %6105 = vmatprep.subr.bf16.mxu0 0
    %6106 = vmatpush1.bf16.msra.mxu0 %v6059
    %6107 = vmatprep.subr.bf16.mxu0 0
    %6108 = vmatpush1.bf16.msra.mxu0 %v6060
    %6109 = vmatprep.mubr.bf16.mxu0 %v5948
    %6110 = vmatmul.mubr.bf16.gmra.mrb[0].mxu0 %v5947
    %v6111 = vpop.f32.mrb[0].mxu0
    %v6112 = vadd.f32 0.0, %v6111
    %v6113 = vpop.f32.mrb[0].mxu0
    %v6114 = vpop.f32.mrb[0].mxu0
    %v6115 = vadd.f32 0.0, %v6114
    %v6116 = vpop.f32.mrb[0].mxu0
    %6117 = vdwg.mxu0
    %v6118 = vadd.f32 %v5611, %v6112
    %v6119 = vadd.f32 %v5612, %v6115
    %v6120 = vpack.c.bf16 %v6119, %v6118
    %v6122 = vunpack.c.l.b16 %v6120
    %v6123 = vunpack.c.h.b16 %v6120
    %v6124 = vpack.c.b16 %v6122, %v6122
    %v6125 = vpack.c.b16 %v6123, %v6123
    %6128 = vst [vmem:[#allocation24] sm:$0xf] %v6124
    %6129 = vst [vmem:[#allocation24 + $0x4] sm:$0xf] %v6125
    // Predicated region
    $region142: #{llama_decoder_layer.1} parent=1 // pred_check
      _
    $region143: #{llama_decoder_layer.1} parent=1 // pred_check_branch
      %6131 = sbr.rel (0) target = $region145
    $region144: #{llama_decoder_layer.1} parent=1 // pred_region
      %s6133 = ssub.s32 128, 128
      %6134 = vsyncadd [#allocation6], %s6133
      %s6135 = sshll.u32 [#allocation24], 4
      %s6136 = int_to_ptr.vmem [resolvable:$true] %s6135
      %6141 = dma.vmem_to_hbm [thread:$0]  %s6136, 128, %s23, [#allocation6], 64, 64, 4
    $region145: #{llama_decoder_layer.1} parent=1 // pred_fallthru
      _
    // Predicated region
    $region146: #{llama_decoder_layer.1} parent=1 // pred_check
      _
    $region147: #{llama_decoder_layer.1} parent=1 // pred_check_branch
      %6143 = sbr.rel (0) target = $region149
    $region148: #{llama_decoder_layer.1} parent=1 // pred_region
      %6144 = dma.done [#allocation6], 128
    $region149: #{llama_decoder_layer.1} parent=1 // pred_fallthru
      _
    %6145 = vsyncpa [#allocation5], 1
    %6146 = vsyncpa [#allocation8], 1
    %6147 = vsyncpa [#allocation11], 1
    %6148 = vsyncpa [#allocation14], 1
    %6149 = vsyncpa [#allocation17], 1
    %6150 = vsyncpa [#allocation20], 1
    %6151 = vsyncpa [#allocation23], 1
    %6152 = vsyncpa [#allocation6], 1

</llo_original>
